<compile_context>
chip_gen: v7x
topology: tpu7x:2x2x1
jax: 0.10.0
libtpu: 0.0.40
codegen_flags: <defaults>
</compile_context>

<pallas_src>
import numpy as np
import jax
import jax.numpy as jnp
from jax.experimental import pallas as pl
from jax.experimental.pallas import tpu as pltpu

GN_EPS = 1e-5  # MONAI / torch GroupNorm default


def _round_up(x, m):
    return (x + m - 1) // m * m


def _make_kernel(C, S, D, H, W, CP):
    HWp = H * W
    HIGHEST = jax.lax.Precision.HIGHEST

    def kernel(x_ref, gn1w_ref, gn1b_ref, w1_ref, b1_ref,
               gn2w_ref, gn2b_ref, w2_ref, b2_ref,
               gmat_ref, inmask_ref, dmask_ref, film_ref,
               out_ref, stack_ref):
        x = x_ref[0]            # (C, S) lane-dense slab for this batch element
        gmat = gmat_ref[...]    # (C, C) block-diagonal, entries 1/(CG*S) within a group

        # Channel-padding rows of the tap stack multiply zero weight columns, but must
        # not hold uninitialized VMEM (NaN * 0 = NaN).  Zero the buffer when C is not
        # a multiple of the f32 sublane tile (test shapes only; free at production C=32).
        if CP != C:
            stack_ref[...] = jnp.zeros((9 * CP, S), jnp.float32)

        def gn_silu(h, w_col, b_col):
            # Fused GroupNorm + SiLU.  Stats are reduced BEFORE the group matmul:
            # one lane reduce (XLU) per statistic plus a tiny (C,C)@(C,1) dot,
            # instead of two full-slab (C,C)@(C,S) matmuls.
            s1 = jnp.sum(h, axis=1, keepdims=True)             # (C, 1)
            s2 = jnp.sum(h * h, axis=1, keepdims=True)         # (C, 1)
            mean = jnp.dot(gmat, s1, precision=HIGHEST,
                           preferred_element_type=jnp.float32)  # (C, 1)
            ex2 = jnp.dot(gmat, s2, precision=HIGHEST,
                          preferred_element_type=jnp.float32)   # (C, 1)
            var = jnp.maximum(ex2 - mean * mean, 0.0)           # clamp E[x^2]-E[x]^2 >= 0
            scale = jax.lax.rsqrt(var + GN_EPS) * w_col
            shift = b_col - mean * scale
            a = h * scale + shift
            return a * jax.nn.sigmoid(a)                        # swish / SiLU

        def conv3x3x3(a, w_ref, b_col):
            # "same" 3x3x3 conv:
            #   1) the 9 in-plane (kh,kw) taps are built once (8 lane rolls + h/w
            #      boundary masks) and stored into the tap-stack staging buffer at
            #      tile-aligned row offsets, so the contraction over all 9 taps and
            #      all input channels is a single bf16 MXU dot per kd chunk;
            #   2) the kd=0 / kd=2 chunk results are shifted by one depth plane on the
            #      OUTPUT (one roll + one depth-boundary mask each) instead of rolling
            #      the inputs per kd  ->  10 slab rolls per conv instead of 26.
            for j in range(9):
                kh, kw = divmod(j, 3)
                delta = (kh - 1) * W + (kw - 1)
                if delta == 0:
                    tap = a
                else:
                    rolled = pltpu.roll(a, shift=(-delta) % S, axis=1)
                    tap = rolled * inmask_ref[j:j + 1, :]
                stack_ref[j * CP:j * CP + C, :] = tap           # tile-aligned store
            stack = stack_ref[...].astype(jnp.bfloat16)         # (9*CP, S) single-pass MXU operand
            q = [jnp.dot(w_ref[kd], stack, preferred_element_type=jnp.float32)
                 for kd in range(3)]                            # 3 x (C, S), f32 accumulate
            y = q[1] + b_col
            y = y + pltpu.roll(q[0], shift=HWp, axis=1) * dmask_ref[0:1, :]
            y = y + pltpu.roll(q[2], shift=S - HWp, axis=1) * dmask_ref[1:2, :]
            return y

        h = conv3x3x3(gn_silu(x, gn1w_ref[...], gn1b_ref[...]), w1_ref, b1_ref[...])
        h = conv3x3x3(gn_silu(h, gn2w_ref[...], gn2b_ref[...]), w2_ref, b2_ref[...])
        h = h + x                                               # residual

        film = film_ref[0]                                      # (2C, 1)
        out_ref[0] = h * film[:C] + film[C:]                    # FiLM, one dense store

    return kernel


def _vmem_limit_bytes(C, CP, S):
    f32, bf16 = 4, 2
    io = 2 * 2 * C * S * f32                        # x / out blocks, double-buffered
    consts = 2 * ((11 * S + C * C + 6 * C) * f32 + 2 * 3 * C * 9 * CP * bf16)
    scratch = 9 * CP * S * f32                      # tap-stack staging buffer
    temps = 6 * C * S * f32 + 9 * CP * S * bf16     # a / h / q live values + bf16 stack
    need = io + consts + scratch + temps
    # Cap at 48 MiB: leaves headroom inside v7x's 64 MiB physical VMEM; on v5e/v6e
    # (128 MiB) this could be raised to buy larger spatial tiles.
    return int(min(48 * 2**20, max(16 * 2**20, 4 * need)))


def seg_res_blockpp(x_ncdhw, temb, params, num_groups):
    """x_ncdhw: (N, C, D, H, W) float32 (PyTorch layout); temb: (N, temb_dim)."""
    N, C, D, H, W = x_ncdhw.shape
    S = D * H * W
    HWp = H * W
    G = num_groups
    CG = C // G
    CP = _round_up(C, 8)   # per-tap channel block padded to the f32 sublane tile

    x2 = x_ncdhw.reshape(N, C, S).astype(jnp.float32)   # lane-dense: spatial on lanes

    def wstack(w):
        # (Cout, Cin, 3,3,3) -> (3, Cout, 9*CP) bf16; column index = j*CP + ci with
        # j = kh*3 + kw, padded input-channel columns are zero.
        w_t = jnp.transpose(jnp.asarray(w, jnp.float32), (2, 0, 3, 4, 1))  # (kd,co,kh,kw,ci)
        w_t = w_t.reshape(3, C, 9, C)
        if CP != C:
            w_t = jnp.pad(w_t, ((0, 0), (0, 0), (0, 0), (0, CP - C)))
        return w_t.reshape(3, C, 9 * CP).astype(jnp.bfloat16)

    def col(v):
        return jnp.asarray(v, jnp.float32).reshape(C, 1)

    # FiLM params: the tiny dense(SiLU(temb)) runs once in the wrapper, not per-voxel.
    t = temb.astype(jnp.float32)
    cond = (t * jax.nn.sigmoid(t)) @ params["dense_w"].astype(jnp.float32) \
        + params["dense_b"].astype(jnp.float32)                       # (N, 2C)
    film = cond.reshape(N, 2 * C, 1)

    # Block-diagonal group-averaging matrix (folds the 1/(CG*S) normalization).
    gmat_np = np.zeros((C, C), np.float32)
    for g in range(G):
        gmat_np[g * CG:(g + 1) * CG, g * CG:(g + 1) * CG] = 1.0 / (CG * S)
    gmat = jnp.asarray(gmat_np)

    # 9 in-plane (kh,kw) boundary masks (the conv's h/w zero padding).  The depth (kd)
    # padding is handled by 2 output-plane masks, not 18 more mask rows.
    hz = np.arange(H)[:, None]
    wz = np.arange(W)[None, :]
    mlist = []
    for kh in range(3):
        for kw in range(3):
            m2 = ((hz + kh - 1 >= 0) & (hz + kh - 1 < H) &
                  (wz + kw - 1 >= 0) & (wz + kw - 1 < W)).astype(np.float32)  # (H, W)
            mlist.append(np.tile(m2.reshape(1, HWp), (D, 1)).reshape(S))
    inmask = jnp.asarray(np.stack(mlist))                              # (9, S)

    dmask_np = np.ones((2, S), np.float32)
    dmask_np[0, :HWp] = 0.0          # kd = 0 chunk: no input plane above d = 0
    dmask_np[1, S - HWp:] = 0.0      # kd = 2 chunk: no input plane below d = D-1
    dmask = jnp.asarray(dmask_np)

    # TODO(synk): production volumes (e.g. 64^3 x 32ch) need a spatial (D-tile) grid
    # axis (smaller tiles on v7x, also feeds its 2 TensorCores), but GroupNorm reduces
    # over the FULL volume, so that requires a two-pass (stats, then normalize+conv)
    # schedule with halo'd D tiles; not implemented at these test shapes.
    kernel = _make_kernel(C, S, D, H, W, CP)
    out2 = pl.pallas_call(
        kernel,
        out_shape=jax.ShapeDtypeStruct((N, C, S), jnp.float32),
        grid=(N,),
        in_specs=[
            pl.BlockSpec((1, C, S), lambda n: (n, 0, 0)),        # x (lane-dense slab)
            # Constant operands below could use pipeline_mode=pl.Buffered(1) to halve
            # their VMEM; left at the default since they are tiny at these shapes.
            pl.BlockSpec((C, 1), lambda n: (0, 0)),              # gn1 weight
            pl.BlockSpec((C, 1), lambda n: (0, 0)),              # gn1 bias
            pl.BlockSpec((3, C, 9 * CP), lambda n: (0, 0, 0)),   # conv1 weight (kd, co, j*CP+ci)
            pl.BlockSpec((C, 1), lambda n: (0, 0)),              # conv1 bias
            pl.BlockSpec((C, 1), lambda n: (0, 0)),              # gn2 weight
            pl.BlockSpec((C, 1), lambda n: (0, 0)),              # gn2 bias
            pl.BlockSpec((3, C, 9 * CP), lambda n: (0, 0, 0)),   # conv2 weight
            pl.BlockSpec((C, 1), lambda n: (0, 0)),              # conv2 bias
            pl.BlockSpec((C, C), lambda n: (0, 0)),              # group-average matrix
            pl.BlockSpec((9, S), lambda n: (0, 0)),              # in-plane (kh,kw) masks
            pl.BlockSpec((2, S), lambda n: (0, 0)),              # depth-boundary masks
            pl.BlockSpec((1, 2 * C, 1), lambda n: (n, 0, 0)),    # FiLM gamma/beta
        ],
        out_specs=pl.BlockSpec((1, C, S), lambda n: (n, 0, 0)),
        scratch_shapes=[pltpu.VMEM((9 * CP, S), jnp.float32)],   # tap-stack staging
        compiler_params=pltpu.CompilerParams(
            dimension_semantics=("parallel",),                   # batch steps -> megacore
            vmem_limit_bytes=_vmem_limit_bytes(C, CP, S),
        ),
    )(
        x2,
        col(params["gn1_w"]), col(params["gn1_b"]),
        wstack(params["conv1_w"]), col(params["conv1_b"]),
        col(params["gn2_w"]), col(params["gn2_b"]),
        wstack(params["conv2_w"]), col(params["conv2_b"]),
        gmat, inmask, dmask, film,
    )
    return out2.reshape(N, C, D, H, W)


def ref_forward(x, temb, params, num_groups, conv_dtype=jnp.float32):
    """Pure-JAX reference with the module's semantics (NCDHW).  conv_dtype=bfloat16
    reproduces the kernel's bf16-operand / f32-accumulate MXU arithmetic."""
    N, C, D, H, W = x.shape
    G = num_groups

    def gnorm(h, w, b):
        hg = h.reshape(N, G, C // G, D, H, W)
        mean = hg.mean(axis=(2, 3, 4, 5), keepdims=True)
        var = ((hg - mean) ** 2).mean(axis=(2, 3, 4, 5), keepdims=True)
        hn = ((hg - mean) / jnp.sqrt(var + GN_EPS)).reshape(N, C, D, H, W)
        return hn * w[None, :, None, None, None] + b[None, :, None, None, None]

    def silu(h):
        return h * jax.nn.sigmoid(h)

    def conv(h, w, b):
        y = jax.lax.conv_general_dilated(
            h.astype(conv_dtype), w.astype(conv_dtype),
            window_strides=(1, 1, 1), padding=[(1, 1)] * 3,
            dimension_numbers=("NCDHW", "OIDHW", "NCDHW"),
            preferred_element_type=jnp.float32,
            precision=jax.lax.Precision.HIGHEST)
        return y + b[None, :, None, None, None]

    h = conv(silu(gnorm(x, params["gn1_w"], params["gn1_b"])),
             params["conv1_w"], params["conv1_b"])
    h = conv(silu(gnorm(h, params["gn2_w"], params["gn2_b"])),
             params["conv2_w"], params["conv2_b"])
    h = h + x
    cond = silu(temb) @ params["dense_w"] + params["dense_b"]
    gamma, beta = cond[:, :C], cond[:, C:]
    return h * gamma[:, :, None, None, None] + beta[:, :, None, None, None]


if __name__ == "__main__":
    # Small shapes consistent with the module: 3D volume, in_channels=4,
    # norm = ("group", {"num_groups": 2}), temb_dim=8.
    N, C, D, H, W = 2, 4, 8, 8, 8
    T = 8   # temb_dim
    G = 2   # GroupNorm num_groups

    key = jax.random.PRNGKey(0)
    ks = jax.random.split(key, 6)
    x = jax.random.normal(ks[0], (N, C, D, H, W), jnp.float32)
    temb = jax.random.normal(ks[1], (N, T), jnp.float32)

    conv_std = (1.0 / (C * 27)) ** 0.5
    params = dict(
        gn1_w=jnp.ones((C,), jnp.float32), gn1_b=jnp.zeros((C,), jnp.float32),
        gn2_w=jnp.ones((C,), jnp.float32), gn2_b=jnp.zeros((C,), jnp.float32),
        conv1_w=conv_std * jax.random.normal(ks[2], (C, C, 3, 3, 3), jnp.float32),
        conv1_b=jnp.zeros((C,), jnp.float32),
        # NOTE: the original module uses init_scale=0.0 (near-zero DDPM init) for
        # conv2; a non-zero deterministic init keeps the numeric check meaningful.
        conv2_w=conv_std * jax.random.normal(ks[3], (C, C, 3, 3, 3), jnp.float32),
        conv2_b=jnp.zeros((C,), jnp.float32),
        dense_w=(1.0 / T) ** 0.5 * jax.random.normal(ks[4], (T, 2 * C), jnp.float32),
        dense_b=jnp.zeros((2 * C,), jnp.float32),
    )

    out = jax.block_until_ready(seg_res_blockpp(x, temb, params, G))
    assert out.shape == x.shape, out.shape

    # Structural check: reference using the same bf16-operand / f32-accumulate conv
    # arithmetic as the kernel's MXU path (isolates any decomposition error).
    err_struct = float(jnp.max(jnp.abs(
        out - ref_forward(x, temb, params, G, conv_dtype=jnp.bfloat16))))
    assert err_struct < 1e-2, f"structural max abs err {err_struct}"

    # End-to-end check against the full-f32 module semantics; residual error is the
    # bf16 MXU quantization (review: loosen the old 1e-3 f32-HIGHEST bound).
    err_full = float(jnp.max(jnp.abs(
        out - ref_forward(x, temb, params, G, conv_dtype=jnp.float32))))
    assert err_full < 1e-1, f"full-precision max abs err {err_full}"

    print("KERNEL_OK")
</pallas_src>

<mosaic_0001>
module attributes {stable_mosaic.version = 11 : i64} {
  func.func @kernel(%arg0: i32, %arg1: memref<1x4x512xf32, #tpu.memory_space<vmem>>, %arg2: memref<4x1xf32, #tpu.memory_space<vmem>>, %arg3: memref<4x1xf32, #tpu.memory_space<vmem>>, %arg4: memref<3x4x72xbf16, #tpu.memory_space<vmem>>, %arg5: memref<4x1xf32, #tpu.memory_space<vmem>>, %arg6: memref<4x1xf32, #tpu.memory_space<vmem>>, %arg7: memref<4x1xf32, #tpu.memory_space<vmem>>, %arg8: memref<3x4x72xbf16, #tpu.memory_space<vmem>>, %arg9: memref<4x1xf32, #tpu.memory_space<vmem>>, %arg10: memref<4x4xf32, #tpu.memory_space<vmem>>, %arg11: memref<9x512xf32, #tpu.memory_space<vmem>>, %arg12: memref<2x512xf32, #tpu.memory_space<vmem>>, %arg13: memref<1x8x1xf32, #tpu.memory_space<vmem>>, %arg14: memref<1x4x512xf32, #tpu.memory_space<vmem>>, %arg15: memref<72x512xf32, #tpu.memory_space<vmem>>) attributes {dimension_semantics = [#tpu.dimension_semantics<parallel>], iteration_bounds = array<i64: 2>, scalar_prefetch = 0 : i64, scratch_operands = 1 : i64, tpu.core_type = #tpu.core_type<tc>, window_params = [{transform_indices = @transform_0, window_bounds = array<i64: 1, 4, 512>}, {pipeline_mode = #tpu.pipeline_mode<synchronous>, transform_indices = @transform_1, window_bounds = array<i64: 4, 1>}, {pipeline_mode = #tpu.pipeline_mode<synchronous>, transform_indices = @transform_2, window_bounds = array<i64: 4, 1>}, {pipeline_mode = #tpu.pipeline_mode<synchronous>, transform_indices = @transform_3, window_bounds = array<i64: 3, 4, 72>}, {pipeline_mode = #tpu.pipeline_mode<synchronous>, transform_indices = @transform_4, window_bounds = array<i64: 4, 1>}, {pipeline_mode = #tpu.pipeline_mode<synchronous>, transform_indices = @transform_5, window_bounds = array<i64: 4, 1>}, {pipeline_mode = #tpu.pipeline_mode<synchronous>, transform_indices = @transform_6, window_bounds = array<i64: 4, 1>}, {pipeline_mode = #tpu.pipeline_mode<synchronous>, transform_indices = @transform_7, window_bounds = array<i64: 3, 4, 72>}, {pipeline_mode = #tpu.pipeline_mode<synchronous>, transform_indices = @transform_8, window_bounds = array<i64: 4, 1>}, {pipeline_mode = #tpu.pipeline_mode<synchronous>, transform_indices = @transform_9, window_bounds = array<i64: 4, 4>}, {pipeline_mode = #tpu.pipeline_mode<synchronous>, transform_indices = @transform_10, window_bounds = array<i64: 9, 512>}, {pipeline_mode = #tpu.pipeline_mode<synchronous>, transform_indices = @transform_11, window_bounds = array<i64: 2, 512>}, {transform_indices = @transform_12, window_bounds = array<i64: 1, 8, 1>}, {transform_indices = @transform_13, window_bounds = array<i64: 1, 4, 512>}]} {
    %c0 = arith.constant 0 : index
    %c0_0 = arith.constant 0 : index
    %c0_1 = arith.constant 0 : index
    %0 = vector.load %arg1[%c0, %c0_0, %c0_1] : memref<1x4x512xf32, #tpu.memory_space<vmem>>, vector<1x4x512xf32>
    %1 = vector.shape_cast %0 : vector<1x4x512xf32> to vector<4x512xf32>
    %c0_2 = arith.constant 0 : index
    %c0_3 = arith.constant 0 : index
    %2 = vector.load %arg10[%c0_2, %c0_3] : memref<4x4xf32, #tpu.memory_space<vmem>>, vector<4x4xf32>
    %cst = arith.constant 0.000000e+00 : f32
    %3 = vector.broadcast %cst : f32 to vector<72x512xf32>
    %c0_4 = arith.constant 0 : index
    %c0_5 = arith.constant 0 : index
    %4 = vector.load %arg15[%c0_4, %c0_5] : memref<72x512xf32, #tpu.memory_space<vmem>>, vector<72x512xf32>
    tpu.vector_store %arg15[%c0_4, %c0_5], %3 {strides = array<i32>} : memref<72x512xf32, #tpu.memory_space<vmem>>, vector<72x512xf32>,
    %c0_6 = arith.constant 0 : index
    %c0_7 = arith.constant 0 : index
    %5 = vector.load %arg2[%c0_6, %c0_7] : memref<4x1xf32, #tpu.memory_space<vmem>>, vector<4x1xf32>
    %c0_8 = arith.constant 0 : index
    %c0_9 = arith.constant 0 : index
    %6 = vector.load %arg3[%c0_8, %c0_9] : memref<4x1xf32, #tpu.memory_space<vmem>>, vector<4x1xf32>
    %cst_10 = arith.constant dense<0.000000e+00> : vector<4xf32>
    %7 = vector.multi_reduction <add>, %1, %cst_10 [1] : vector<4x512xf32> to vector<4xf32>
    %8 = vector.shape_cast %7 : vector<4xf32> to vector<4x1xf32>
    %9 = arith.mulf %1, %1 : vector<4x512xf32>
    %cst_11 = arith.constant dense<0.000000e+00> : vector<4xf32>
    %10 = vector.multi_reduction <add>, %9, %cst_11 [1] : vector<4x512xf32> to vector<4xf32>
    %11 = vector.shape_cast %10 : vector<4xf32> to vector<4x1xf32>
    %cst_12 = arith.constant dense<0.000000e+00> : vector<4x1xf32>
    %12 = tpu.matmul %2, %8, %cst_12 {dimension_numbers = #tpu.dot_dimension_numbers<[1], [0], [0], [1], [0, 0, 1, 1], [], []>, precision = #tpu.contract_precision<fp32>} : vector<4x4xf32>, vector<4x1xf32>, vector<4x1xf32> -> vector<4x1xf32>
    %cst_13 = arith.constant dense<0.000000e+00> : vector<4x1xf32>
    %13 = tpu.matmul %2, %11, %cst_13 {dimension_numbers = #tpu.dot_dimension_numbers<[1], [0], [0], [1], [0, 0, 1, 1], [], []>, precision = #tpu.contract_precision<fp32>} : vector<4x4xf32>, vector<4x1xf32>, vector<4x1xf32> -> vector<4x1xf32>
    %14 = arith.mulf %12, %12 : vector<4x1xf32>
    %15 = arith.subf %13, %14 : vector<4x1xf32>
    %cst_14 = arith.constant 0.000000e+00 : f32
    %16 = vector.broadcast %cst_14 : f32 to vector<4x1xf32>
    %17 = arith.maximumf %15, %16 : vector<4x1xf32>
    %cst_15 = arith.constant 9.99999974E-6 : f32
    %18 = vector.broadcast %cst_15 : f32 to vector<4x1xf32>
    %19 = arith.addf %17, %18 : vector<4x1xf32>
    %20 = math.rsqrt %19 : vector<4x1xf32>
    %21 = arith.mulf %20, %5 : vector<4x1xf32>
    %22 = arith.mulf %12, %21 : vector<4x1xf32>
    %23 = arith.subf %6, %22 : vector<4x1xf32>
    %24 = vector.broadcast %21 : vector<4x1xf32> to vector<4x512xf32>
    %25 = arith.mulf %1, %24 : vector<4x512xf32>
    %26 = vector.broadcast %23 : vector<4x1xf32> to vector<4x512xf32>
    %27 = arith.addf %25, %26 : vector<4x512xf32>
    %28 = arith.negf %27 : vector<4x512xf32>
    %29 = math.exp %28 : vector<4x512xf32>
    %cst_16 = arith.constant 1.000000e+00 : f32
    %30 = vector.broadcast %cst_16 : f32 to vector<4x512xf32>
    %31 = arith.addf %30, %29 : vector<4x512xf32>
    %32 = arith.divf %30, %31 : vector<4x512xf32>
    %33 = arith.mulf %27, %32 : vector<4x512xf32>
    %c0_17 = arith.constant 0 : index
    %c0_18 = arith.constant 0 : index
    %34 = vector.load %arg5[%c0_17, %c0_18] : memref<4x1xf32, #tpu.memory_space<vmem>>, vector<4x1xf32>
    %c9_i32 = arith.constant 9 : i32
    %35 = tpu.dynamic_rotate %33 by %c9_i32 dim 1 : vector<4x512xf32>, i32 -> vector<4x512xf32>
    %c0_19 = arith.constant 0 : index
    %c0_20 = arith.constant 0 : index
    %36 = vector.load %arg11[%c0_19, %c0_20] : memref<9x512xf32, #tpu.memory_space<vmem>>, vector<1x512xf32>
    %37 = vector.broadcast %36 : vector<1x512xf32> to vector<4x512xf32>
    %38 = arith.mulf %35, %37 : vector<4x512xf32>
    %c0_21 = arith.constant 0 : index
    %c0_22 = arith.constant 0 : index
    %39 = vector.load %arg15[%c0_21, %c0_22] : memref<72x512xf32, #tpu.memory_space<vmem>>, vector<4x512xf32>
    tpu.vector_store %arg15[%c0_21, %c0_22], %38 {strides = array<i32>} : memref<72x512xf32, #tpu.memory_space<vmem>>, vector<4x512xf32>,
    %c8_i32 = arith.constant 8 : i32
    %40 = tpu.dynamic_rotate %33 by %c8_i32 dim 1 : vector<4x512xf32>, i32 -> vector<4x512xf32>
    %c1 = arith.constant 1 : index
    %c0_23 = arith.constant 0 : index
    %41 = vector.load %arg11[%c1, %c0_23] : memref<9x512xf32, #tpu.memory_space<vmem>>, vector<1x512xf32>
    %42 = vector.broadcast %41 : vector<1x512xf32> to vector<4x512xf32>
    %43 = arith.mulf %40, %42 : vector<4x512xf32>
    %c8 = arith.constant 8 : index
    %c0_24 = arith.constant 0 : index
    %44 = vector.load %arg15[%c8, %c0_24] : memref<72x512xf32, #tpu.memory_space<vmem>>, vector<4x512xf32>
    tpu.vector_store %arg15[%c8, %c0_24], %43 {strides = array<i32>} : memref<72x512xf32, #tpu.memory_space<vmem>>, vector<4x512xf32>,
    %c7_i32 = arith.constant 7 : i32
    %45 = tpu.dynamic_rotate %33 by %c7_i32 dim 1 : vector<4x512xf32>, i32 -> vector<4x512xf32>
    %c2 = arith.constant 2 : index
    %c0_25 = arith.constant 0 : index
    %46 = vector.load %arg11[%c2, %c0_25] : memref<9x512xf32, #tpu.memory_space<vmem>>, vector<1x512xf32>
    %47 = vector.broadcast %46 : vector<1x512xf32> to vector<4x512xf32>
    %48 = arith.mulf %45, %47 : vector<4x512xf32>
    %c16 = arith.constant 16 : index
    %c0_26 = arith.constant 0 : index
    %49 = vector.load %arg15[%c16, %c0_26] : memref<72x512xf32, #tpu.memory_space<vmem>>, vector<4x512xf32>
    tpu.vector_store %arg15[%c16, %c0_26], %48 {strides = array<i32>} : memref<72x512xf32, #tpu.memory_space<vmem>>, vector<4x512xf32>,
    %c1_i32 = arith.constant 1 : i32
    %50 = tpu.dynamic_rotate %33 by %c1_i32 dim 1 : vector<4x512xf32>, i32 -> vector<4x512xf32>
    %c3 = arith.constant 3 : index
    %c0_27 = arith.constant 0 : index
    %51 = vector.load %arg11[%c3, %c0_27] : memref<9x512xf32, #tpu.memory_space<vmem>>, vector<1x512xf32>
    %52 = vector.broadcast %51 : vector<1x512xf32> to vector<4x512xf32>
    %53 = arith.mulf %50, %52 : vector<4x512xf32>
    %c24 = arith.constant 24 : index
    %c0_28 = arith.constant 0 : index
    %54 = vector.load %arg15[%c24, %c0_28] : memref<72x512xf32, #tpu.memory_space<vmem>>, vector<4x512xf32>
    tpu.vector_store %arg15[%c24, %c0_28], %53 {strides = array<i32>} : memref<72x512xf32, #tpu.memory_space<vmem>>, vector<4x512xf32>,
    %c32 = arith.constant 32 : index
    %c0_29 = arith.constant 0 : index
    %55 = vector.load %arg15[%c32, %c0_29] : memref<72x512xf32, #tpu.memory_space<vmem>>, vector<4x512xf32>
    tpu.vector_store %arg15[%c32, %c0_29], %33 {strides = array<i32>} : memref<72x512xf32, #tpu.memory_space<vmem>>, vector<4x512xf32>,
    %c511_i32 = arith.constant 511 : i32
    %56 = tpu.dynamic_rotate %33 by %c511_i32 dim 1 : vector<4x512xf32>, i32 -> vector<4x512xf32>
    %c5 = arith.constant 5 : index
    %c0_30 = arith.constant 0 : index
    %57 = vector.load %arg11[%c5, %c0_30] : memref<9x512xf32, #tpu.memory_space<vmem>>, vector<1x512xf32>
    %58 = vector.broadcast %57 : vector<1x512xf32> to vector<4x512xf32>
    %59 = arith.mulf %56, %58 : vector<4x512xf32>
    %c40 = arith.constant 40 : index
    %c0_31 = arith.constant 0 : index
    %60 = vector.load %arg15[%c40, %c0_31] : memref<72x512xf32, #tpu.memory_space<vmem>>, vector<4x512xf32>
    tpu.vector_store %arg15[%c40, %c0_31], %59 {strides = array<i32>} : memref<72x512xf32, #tpu.memory_space<vmem>>, vector<4x512xf32>,
    %c505_i32 = arith.constant 505 : i32
    %61 = tpu.dynamic_rotate %33 by %c505_i32 dim 1 : vector<4x512xf32>, i32 -> vector<4x512xf32>
    %c6 = arith.constant 6 : index
    %c0_32 = arith.constant 0 : index
    %62 = vector.load %arg11[%c6, %c0_32] : memref<9x512xf32, #tpu.memory_space<vmem>>, vector<1x512xf32>
    %63 = vector.broadcast %62 : vector<1x512xf32> to vector<4x512xf32>
    %64 = arith.mulf %61, %63 : vector<4x512xf32>
    %c48 = arith.constant 48 : index
    %c0_33 = arith.constant 0 : index
    %65 = vector.load %arg15[%c48, %c0_33] : memref<72x512xf32, #tpu.memory_space<vmem>>, vector<4x512xf32>
    tpu.vector_store %arg15[%c48, %c0_33], %64 {strides = array<i32>} : memref<72x512xf32, #tpu.memory_space<vmem>>, vector<4x512xf32>,
    %c504_i32 = arith.constant 504 : i32
    %66 = tpu.dynamic_rotate %33 by %c504_i32 dim 1 : vector<4x512xf32>, i32 -> vector<4x512xf32>
    %c7 = arith.constant 7 : index
    %c0_34 = arith.constant 0 : index
    %67 = vector.load %arg11[%c7, %c0_34] : memref<9x512xf32, #tpu.memory_space<vmem>>, vector<1x512xf32>
    %68 = vector.broadcast %67 : vector<1x512xf32> to vector<4x512xf32>
    %69 = arith.mulf %66, %68 : vector<4x512xf32>
    %c56 = arith.constant 56 : index
    %c0_35 = arith.constant 0 : index
    %70 = vector.load %arg15[%c56, %c0_35] : memref<72x512xf32, #tpu.memory_space<vmem>>, vector<4x512xf32>
    tpu.vector_store %arg15[%c56, %c0_35], %69 {strides = array<i32>} : memref<72x512xf32, #tpu.memory_space<vmem>>, vector<4x512xf32>,
    %c503_i32 = arith.constant 503 : i32
    %71 = tpu.dynamic_rotate %33 by %c503_i32 dim 1 : vector<4x512xf32>, i32 -> vector<4x512xf32>
    %c8_36 = arith.constant 8 : index
    %c0_37 = arith.constant 0 : index
    %72 = vector.load %arg11[%c8_36, %c0_37] : memref<9x512xf32, #tpu.memory_space<vmem>>, vector<1x512xf32>
    %73 = vector.broadcast %72 : vector<1x512xf32> to vector<4x512xf32>
    %74 = arith.mulf %71, %73 : vector<4x512xf32>
    %c64 = arith.constant 64 : index
    %c0_38 = arith.constant 0 : index
    %75 = vector.load %arg15[%c64, %c0_38] : memref<72x512xf32, #tpu.memory_space<vmem>>, vector<4x512xf32>
    tpu.vector_store %arg15[%c64, %c0_38], %74 {strides = array<i32>} : memref<72x512xf32, #tpu.memory_space<vmem>>, vector<4x512xf32>,
    %c0_39 = arith.constant 0 : index
    %c0_40 = arith.constant 0 : index
    %76 = vector.load %arg15[%c0_39, %c0_40] : memref<72x512xf32, #tpu.memory_space<vmem>>, vector<72x512xf32>
    %77 = arith.truncf %76 : vector<72x512xf32> to vector<72x512xbf16>
    %c0_41 = arith.constant 0 : index
    %c0_42 = arith.constant 0 : index
    %c0_43 = arith.constant 0 : index
    %78 = vector.load %arg4[%c0_41, %c0_42, %c0_43] : memref<3x4x72xbf16, #tpu.memory_space<vmem>>, vector<1x4x72xbf16>
    %79 = vector.shape_cast %78 : vector<1x4x72xbf16> to vector<4x72xbf16>
    %cst_44 = arith.constant dense<0.000000e+00> : vector<4x512xf32>
    %80 = tpu.matmul %79, %77, %cst_44 {dimension_numbers = #tpu.dot_dimension_numbers<[1], [0], [0], [1], [0, 0, 1, 1], [], []>} : vector<4x72xbf16>, vector<72x512xbf16>, vector<4x512xf32> -> vector<4x512xf32>
    %c1_45 = arith.constant 1 : index
    %c0_46 = arith.constant 0 : index
    %c0_47 = arith.constant 0 : index
    %81 = vector.load %arg4[%c1_45, %c0_46, %c0_47] : memref<3x4x72xbf16, #tpu.memory_space<vmem>>, vector<1x4x72xbf16>
    %82 = vector.shape_cast %81 : vector<1x4x72xbf16> to vector<4x72xbf16>
    %cst_48 = arith.constant dense<0.000000e+00> : vector<4x512xf32>
    %83 = tpu.matmul %82, %77, %cst_48 {dimension_numbers = #tpu.dot_dimension_numbers<[1], [0], [0], [1], [0, 0, 1, 1], [], []>} : vector<4x72xbf16>, vector<72x512xbf16>, vector<4x512xf32> -> vector<4x512xf32>
    %c2_49 = arith.constant 2 : index
    %c0_50 = arith.constant 0 : index
    %c0_51 = arith.constant 0 : index
    %84 = vector.load %arg4[%c2_49, %c0_50, %c0_51] : memref<3x4x72xbf16, #tpu.memory_space<vmem>>, vector<1x4x72xbf16>
    %85 = vector.shape_cast %84 : vector<1x4x72xbf16> to vector<4x72xbf16>
    %cst_52 = arith.constant dense<0.000000e+00> : vector<4x512xf32>
    %86 = tpu.matmul %85, %77, %cst_52 {dimension_numbers = #tpu.dot_dimension_numbers<[1], [0], [0], [1], [0, 0, 1, 1], [], []>} : vector<4x72xbf16>, vector<72x512xbf16>, vector<4x512xf32> -> vector<4x512xf32>
    %87 = vector.broadcast %34 : vector<4x1xf32> to vector<4x512xf32>
    %88 = arith.addf %83, %87 : vector<4x512xf32>
    %c64_i32 = arith.constant 64 : i32
    %89 = tpu.dynamic_rotate %80 by %c64_i32 dim 1 : vector<4x512xf32>, i32 -> vector<4x512xf32>
    %c0_53 = arith.constant 0 : index
    %c0_54 = arith.constant 0 : index
    %90 = vector.load %arg12[%c0_53, %c0_54] : memref<2x512xf32, #tpu.memory_space<vmem>>, vector<1x512xf32>
    %91 = vector.broadcast %90 : vector<1x512xf32> to vector<4x512xf32>
    %92 = arith.mulf %89, %91 : vector<4x512xf32>
    %93 = arith.addf %88, %92 : vector<4x512xf32>
    %c448_i32 = arith.constant 448 : i32
    %94 = tpu.dynamic_rotate %86 by %c448_i32 dim 1 : vector<4x512xf32>, i32 -> vector<4x512xf32>
    %c1_55 = arith.constant 1 : index
    %c0_56 = arith.constant 0 : index
    %95 = vector.load %arg12[%c1_55, %c0_56] : memref<2x512xf32, #tpu.memory_space<vmem>>, vector<1x512xf32>
    %96 = vector.broadcast %95 : vector<1x512xf32> to vector<4x512xf32>
    %97 = arith.mulf %94, %96 : vector<4x512xf32>
    %98 = arith.addf %93, %97 : vector<4x512xf32>
    %c0_57 = arith.constant 0 : index
    %c0_58 = arith.constant 0 : index
    %99 = vector.load %arg6[%c0_57, %c0_58] : memref<4x1xf32, #tpu.memory_space<vmem>>, vector<4x1xf32>
    %c0_59 = arith.constant 0 : index
    %c0_60 = arith.constant 0 : index
    %100 = vector.load %arg7[%c0_59, %c0_60] : memref<4x1xf32, #tpu.memory_space<vmem>>, vector<4x1xf32>
    %cst_61 = arith.constant dense<0.000000e+00> : vector<4xf32>
    %101 = vector.multi_reduction <add>, %98, %cst_61 [1] : vector<4x512xf32> to vector<4xf32>
    %102 = vector.shape_cast %101 : vector<4xf32> to vector<4x1xf32>
    %103 = arith.mulf %98, %98 : vector<4x512xf32>
    %cst_62 = arith.constant dense<0.000000e+00> : vector<4xf32>
    %104 = vector.multi_reduction <add>, %103, %cst_62 [1] : vector<4x512xf32> to vector<4xf32>
    %105 = vector.shape_cast %104 : vector<4xf32> to vector<4x1xf32>
    %cst_63 = arith.constant dense<0.000000e+00> : vector<4x1xf32>
    %106 = tpu.matmul %2, %102, %cst_63 {dimension_numbers = #tpu.dot_dimension_numbers<[1], [0], [0], [1], [0, 0, 1, 1], [], []>, precision = #tpu.contract_precision<fp32>} : vector<4x4xf32>, vector<4x1xf32>, vector<4x1xf32> -> vector<4x1xf32>
    %cst_64 = arith.constant dense<0.000000e+00> : vector<4x1xf32>
    %107 = tpu.matmul %2, %105, %cst_64 {dimension_numbers = #tpu.dot_dimension_numbers<[1], [0], [0], [1], [0, 0, 1, 1], [], []>, precision = #tpu.contract_precision<fp32>} : vector<4x4xf32>, vector<4x1xf32>, vector<4x1xf32> -> vector<4x1xf32>
    %108 = arith.mulf %106, %106 : vector<4x1xf32>
    %109 = arith.subf %107, %108 : vector<4x1xf32>
    %cst_65 = arith.constant 0.000000e+00 : f32
    %110 = vector.broadcast %cst_65 : f32 to vector<4x1xf32>
    %111 = arith.maximumf %109, %110 : vector<4x1xf32>
    %cst_66 = arith.constant 9.99999974E-6 : f32
    %112 = vector.broadcast %cst_66 : f32 to vector<4x1xf32>
    %113 = arith.addf %111, %112 : vector<4x1xf32>
    %114 = math.rsqrt %113 : vector<4x1xf32>
    %115 = arith.mulf %114, %99 : vector<4x1xf32>
    %116 = arith.mulf %106, %115 : vector<4x1xf32>
    %117 = arith.subf %100, %116 : vector<4x1xf32>
    %118 = vector.broadcast %115 : vector<4x1xf32> to vector<4x512xf32>
    %119 = arith.mulf %98, %118 : vector<4x512xf32>
    %120 = vector.broadcast %117 : vector<4x1xf32> to vector<4x512xf32>
    %121 = arith.addf %119, %120 : vector<4x512xf32>
    %122 = arith.negf %121 : vector<4x512xf32>
    %123 = math.exp %122 : vector<4x512xf32>
    %cst_67 = arith.constant 1.000000e+00 : f32
    %124 = vector.broadcast %cst_67 : f32 to vector<4x512xf32>
    %125 = arith.addf %124, %123 : vector<4x512xf32>
    %126 = arith.divf %124, %125 : vector<4x512xf32>
    %127 = arith.mulf %121, %126 : vector<4x512xf32>
    %c0_68 = arith.constant 0 : index
    %c0_69 = arith.constant 0 : index
    %128 = vector.load %arg9[%c0_68, %c0_69] : memref<4x1xf32, #tpu.memory_space<vmem>>, vector<4x1xf32>
    %c9_i32_70 = arith.constant 9 : i32
    %129 = tpu.dynamic_rotate %127 by %c9_i32_70 dim 1 : vector<4x512xf32>, i32 -> vector<4x512xf32>
    %c0_71 = arith.constant 0 : index
    %c0_72 = arith.constant 0 : index
    %130 = vector.load %arg11[%c0_71, %c0_72] : memref<9x512xf32, #tpu.memory_space<vmem>>, vector<1x512xf32>
    %131 = vector.broadcast %130 : vector<1x512xf32> to vector<4x512xf32>
    %132 = arith.mulf %129, %131 : vector<4x512xf32>
    %c0_73 = arith.constant 0 : index
    %c0_74 = arith.constant 0 : index
    %133 = vector.load %arg15[%c0_73, %c0_74] : memref<72x512xf32, #tpu.memory_space<vmem>>, vector<4x512xf32>
    tpu.vector_store %arg15[%c0_73, %c0_74], %132 {strides = array<i32>} : memref<72x512xf32, #tpu.memory_space<vmem>>, vector<4x512xf32>,
    %c8_i32_75 = arith.constant 8 : i32
    %134 = tpu.dynamic_rotate %127 by %c8_i32_75 dim 1 : vector<4x512xf32>, i32 -> vector<4x512xf32>
    %c1_76 = arith.constant 1 : index
    %c0_77 = arith.constant 0 : index
    %135 = vector.load %arg11[%c1_76, %c0_77] : memref<9x512xf32, #tpu.memory_space<vmem>>, vector<1x512xf32>
    %136 = vector.broadcast %135 : vector<1x512xf32> to vector<4x512xf32>
    %137 = arith.mulf %134, %136 : vector<4x512xf32>
    %c8_78 = arith.constant 8 : index
    %c0_79 = arith.constant 0 : index
    %138 = vector.load %arg15[%c8_78, %c0_79] : memref<72x512xf32, #tpu.memory_space<vmem>>, vector<4x512xf32>
    tpu.vector_store %arg15[%c8_78, %c0_79], %137 {strides = array<i32>} : memref<72x512xf32, #tpu.memory_space<vmem>>, vector<4x512xf32>,
    %c7_i32_80 = arith.constant 7 : i32
    %139 = tpu.dynamic_rotate %127 by %c7_i32_80 dim 1 : vector<4x512xf32>, i32 -> vector<4x512xf32>
    %c2_81 = arith.constant 2 : index
    %c0_82 = arith.constant 0 : index
    %140 = vector.load %arg11[%c2_81, %c0_82] : memref<9x512xf32, #tpu.memory_space<vmem>>, vector<1x512xf32>
    %141 = vector.broadcast %140 : vector<1x512xf32> to vector<4x512xf32>
    %142 = arith.mulf %139, %141 : vector<4x512xf32>
    %c16_83 = arith.constant 16 : index
    %c0_84 = arith.constant 0 : index
    %143 = vector.load %arg15[%c16_83, %c0_84] : memref<72x512xf32, #tpu.memory_space<vmem>>, vector<4x512xf32>
    tpu.vector_store %arg15[%c16_83, %c0_84], %142 {strides = array<i32>} : memref<72x512xf32, #tpu.memory_space<vmem>>, vector<4x512xf32>,
    %c1_i32_85 = arith.constant 1 : i32
    %144 = tpu.dynamic_rotate %127 by %c1_i32_85 dim 1 : vector<4x512xf32>, i32 -> vector<4x512xf32>
    %c3_86 = arith.constant 3 : index
    %c0_87 = arith.constant 0 : index
    %145 = vector.load %arg11[%c3_86, %c0_87] : memref<9x512xf32, #tpu.memory_space<vmem>>, vector<1x512xf32>
    %146 = vector.broadcast %145 : vector<1x512xf32> to vector<4x512xf32>
    %147 = arith.mulf %144, %146 : vector<4x512xf32>
    %c24_88 = arith.constant 24 : index
    %c0_89 = arith.constant 0 : index
    %148 = vector.load %arg15[%c24_88, %c0_89] : memref<72x512xf32, #tpu.memory_space<vmem>>, vector<4x512xf32>
    tpu.vector_store %arg15[%c24_88, %c0_89], %147 {strides = array<i32>} : memref<72x512xf32, #tpu.memory_space<vmem>>, vector<4x512xf32>,
    %c32_90 = arith.constant 32 : index
    %c0_91 = arith.constant 0 : index
    %149 = vector.load %arg15[%c32_90, %c0_91] : memref<72x512xf32, #tpu.memory_space<vmem>>, vector<4x512xf32>
    tpu.vector_store %arg15[%c32_90, %c0_91], %127 {strides = array<i32>} : memref<72x512xf32, #tpu.memory_space<vmem>>, vector<4x512xf32>,
    %c511_i32_92 = arith.constant 511 : i32
    %150 = tpu.dynamic_rotate %127 by %c511_i32_92 dim 1 : vector<4x512xf32>, i32 -> vector<4x512xf32>
    %c5_93 = arith.constant 5 : index
    %c0_94 = arith.constant 0 : index
    %151 = vector.load %arg11[%c5_93, %c0_94] : memref<9x512xf32, #tpu.memory_space<vmem>>, vector<1x512xf32>
    %152 = vector.broadcast %151 : vector<1x512xf32> to vector<4x512xf32>
    %153 = arith.mulf %150, %152 : vector<4x512xf32>
    %c40_95 = arith.constant 40 : index
    %c0_96 = arith.constant 0 : index
    %154 = vector.load %arg15[%c40_95, %c0_96] : memref<72x512xf32, #tpu.memory_space<vmem>>, vector<4x512xf32>
    tpu.vector_store %arg15[%c40_95, %c0_96], %153 {strides = array<i32>} : memref<72x512xf32, #tpu.memory_space<vmem>>, vector<4x512xf32>,
    %c505_i32_97 = arith.constant 505 : i32
    %155 = tpu.dynamic_rotate %127 by %c505_i32_97 dim 1 : vector<4x512xf32>, i32 -> vector<4x512xf32>
    %c6_98 = arith.constant 6 : index
    %c0_99 = arith.constant 0 : index
    %156 = vector.load %arg11[%c6_98, %c0_99] : memref<9x512xf32, #tpu.memory_space<vmem>>, vector<1x512xf32>
    %157 = vector.broadcast %156 : vector<1x512xf32> to vector<4x512xf32>
    %158 = arith.mulf %155, %157 : vector<4x512xf32>
    %c48_100 = arith.constant 48 : index
    %c0_101 = arith.constant 0 : index
    %159 = vector.load %arg15[%c48_100, %c0_101] : memref<72x512xf32, #tpu.memory_space<vmem>>, vector<4x512xf32>
    tpu.vector_store %arg15[%c48_100, %c0_101], %158 {strides = array<i32>} : memref<72x512xf32, #tpu.memory_space<vmem>>, vector<4x512xf32>,
    %c504_i32_102 = arith.constant 504 : i32
    %160 = tpu.dynamic_rotate %127 by %c504_i32_102 dim 1 : vector<4x512xf32>, i32 -> vector<4x512xf32>
    %c7_103 = arith.constant 7 : index
    %c0_104 = arith.constant 0 : index
    %161 = vector.load %arg11[%c7_103, %c0_104] : memref<9x512xf32, #tpu.memory_space<vmem>>, vector<1x512xf32>
    %162 = vector.broadcast %161 : vector<1x512xf32> to vector<4x512xf32>
    %163 = arith.mulf %160, %162 : vector<4x512xf32>
    %c56_105 = arith.constant 56 : index
    %c0_106 = arith.constant 0 : index
    %164 = vector.load %arg15[%c56_105, %c0_106] : memref<72x512xf32, #tpu.memory_space<vmem>>, vector<4x512xf32>
    tpu.vector_store %arg15[%c56_105, %c0_106], %163 {strides = array<i32>} : memref<72x512xf32, #tpu.memory_space<vmem>>, vector<4x512xf32>,
    %c503_i32_107 = arith.constant 503 : i32
    %165 = tpu.dynamic_rotate %127 by %c503_i32_107 dim 1 : vector<4x512xf32>, i32 -> vector<4x512xf32>
    %c8_108 = arith.constant 8 : index
    %c0_109 = arith.constant 0 : index
    %166 = vector.load %arg11[%c8_108, %c0_109] : memref<9x512xf32, #tpu.memory_space<vmem>>, vector<1x512xf32>
    %167 = vector.broadcast %166 : vector<1x512xf32> to vector<4x512xf32>
    %168 = arith.mulf %165, %167 : vector<4x512xf32>
    %c64_110 = arith.constant 64 : index
    %c0_111 = arith.constant 0 : index
    %169 = vector.load %arg15[%c64_110, %c0_111] : memref<72x512xf32, #tpu.memory_space<vmem>>, vector<4x512xf32>
    tpu.vector_store %arg15[%c64_110, %c0_111], %168 {strides = array<i32>} : memref<72x512xf32, #tpu.memory_space<vmem>>, vector<4x512xf32>,
    %c0_112 = arith.constant 0 : index
    %c0_113 = arith.constant 0 : index
    %170 = vector.load %arg15[%c0_112, %c0_113] : memref<72x512xf32, #tpu.memory_space<vmem>>, vector<72x512xf32>
    %171 = arith.truncf %170 : vector<72x512xf32> to vector<72x512xbf16>
    %c0_114 = arith.constant 0 : index
    %c0_115 = arith.constant 0 : index
    %c0_116 = arith.constant 0 : index
    %172 = vector.load %arg8[%c0_114, %c0_115, %c0_116] : memref<3x4x72xbf16, #tpu.memory_space<vmem>>, vector<1x4x72xbf16>
    %173 = vector.shape_cast %172 : vector<1x4x72xbf16> to vector<4x72xbf16>
    %cst_117 = arith.constant dense<0.000000e+00> : vector<4x512xf32>
    %174 = tpu.matmul %173, %171, %cst_117 {dimension_numbers = #tpu.dot_dimension_numbers<[1], [0], [0], [1], [0, 0, 1, 1], [], []>} : vector<4x72xbf16>, vector<72x512xbf16>, vector<4x512xf32> -> vector<4x512xf32>
    %c1_118 = arith.constant 1 : index
    %c0_119 = arith.constant 0 : index
    %c0_120 = arith.constant 0 : index
    %175 = vector.load %arg8[%c1_118, %c0_119, %c0_120] : memref<3x4x72xbf16, #tpu.memory_space<vmem>>, vector<1x4x72xbf16>
    %176 = vector.shape_cast %175 : vector<1x4x72xbf16> to vector<4x72xbf16>
    %cst_121 = arith.constant dense<0.000000e+00> : vector<4x512xf32>
    %177 = tpu.matmul %176, %171, %cst_121 {dimension_numbers = #tpu.dot_dimension_numbers<[1], [0], [0], [1], [0, 0, 1, 1], [], []>} : vector<4x72xbf16>, vector<72x512xbf16>, vector<4x512xf32> -> vector<4x512xf32>
    %c2_122 = arith.constant 2 : index
    %c0_123 = arith.constant 0 : index
    %c0_124 = arith.constant 0 : index
    %178 = vector.load %arg8[%c2_122, %c0_123, %c0_124] : memref<3x4x72xbf16, #tpu.memory_space<vmem>>, vector<1x4x72xbf16>
    %179 = vector.shape_cast %178 : vector<1x4x72xbf16> to vector<4x72xbf16>
    %cst_125 = arith.constant dense<0.000000e+00> : vector<4x512xf32>
    %180 = tpu.matmul %179, %171, %cst_125 {dimension_numbers = #tpu.dot_dimension_numbers<[1], [0], [0], [1], [0, 0, 1, 1], [], []>} : vector<4x72xbf16>, vector<72x512xbf16>, vector<4x512xf32> -> vector<4x512xf32>
    %181 = vector.broadcast %128 : vector<4x1xf32> to vector<4x512xf32>
    %182 = arith.addf %177, %181 : vector<4x512xf32>
    %c64_i32_126 = arith.constant 64 : i32
    %183 = tpu.dynamic_rotate %174 by %c64_i32_126 dim 1 : vector<4x512xf32>, i32 -> vector<4x512xf32>
    %c0_127 = arith.constant 0 : index
    %c0_128 = arith.constant 0 : index
    %184 = vector.load %arg12[%c0_127, %c0_128] : memref<2x512xf32, #tpu.memory_space<vmem>>, vector<1x512xf32>
    %185 = vector.broadcast %184 : vector<1x512xf32> to vector<4x512xf32>
    %186 = arith.mulf %183, %185 : vector<4x512xf32>
    %187 = arith.addf %182, %186 : vector<4x512xf32>
    %c448_i32_129 = arith.constant 448 : i32
    %188 = tpu.dynamic_rotate %180 by %c448_i32_129 dim 1 : vector<4x512xf32>, i32 -> vector<4x512xf32>
    %c1_130 = arith.constant 1 : index
    %c0_131 = arith.constant 0 : index
    %189 = vector.load %arg12[%c1_130, %c0_131] : memref<2x512xf32, #tpu.memory_space<vmem>>, vector<1x512xf32>
    %190 = vector.broadcast %189 : vector<1x512xf32> to vector<4x512xf32>
    %191 = arith.mulf %188, %190 : vector<4x512xf32>
    %192 = arith.addf %187, %191 : vector<4x512xf32>
    %193 = arith.addf %192, %1 : vector<4x512xf32>
    %c0_132 = arith.constant 0 : index
    %c0_133 = arith.constant 0 : index
    %c0_134 = arith.constant 0 : index
    %194 = vector.load %arg13[%c0_132, %c0_133, %c0_134] : memref<1x8x1xf32, #tpu.memory_space<vmem>>, vector<1x8x1xf32>
    %195 = vector.shape_cast %194 : vector<1x8x1xf32> to vector<8x1xf32>
    %196 = vector.extract_strided_slice %195 {offsets = [0, 0], sizes = [4, 1], strides = [1, 1]} : vector<8x1xf32> to vector<4x1xf32>
    %197 = vector.broadcast %196 : vector<4x1xf32> to vector<4x512xf32>
    %198 = arith.mulf %193, %197 : vector<4x512xf32>
    %199 = vector.extract_strided_slice %195 {offsets = [4, 0], sizes = [4, 1], strides = [1, 1]} : vector<8x1xf32> to vector<4x1xf32>
    %200 = vector.broadcast %199 : vector<4x1xf32> to vector<4x512xf32>
    %201 = arith.addf %198, %200 : vector<4x512xf32>
    %c0_135 = arith.constant 0 : index
    %c0_136 = arith.constant 0 : index
    %c0_137 = arith.constant 0 : index
    %202 = vector.load %arg14[%c0_135, %c0_136, %c0_137] : memref<1x4x512xf32, #tpu.memory_space<vmem>>, vector<1x4x512xf32>
    %203 = vector.shape_cast %202 : vector<1x4x512xf32> to vector<4x512xf32>
    %204 = vector.shape_cast %201 : vector<4x512xf32> to vector<1x4x512xf32>
    tpu.vector_store %arg14[%c0_135, %c0_136, %c0_137], %204 {strides = array<i32>} : memref<1x4x512xf32, #tpu.memory_space<vmem>>, vector<1x4x512xf32>,
    return
  }
  func.func @transform_0(%arg0: i32) -> (i32, i32, i32) {
    %c0_i32 = arith.constant 0 : i32
    %c0_i32_0 = arith.constant 0 : i32
    %c0_i32_1 = arith.constant 0 : i32
    return %arg0, %c0_i32, %c0_i32_0 : i32, i32, i32
  }
  func.func @transform_1(%arg0: i32) -> (i32, i32) {
    %c0_i32 = arith.constant 0 : i32
    %c0_i32_0 = arith.constant 0 : i32
    %c0_i32_1 = arith.constant 0 : i32
    return %c0_i32, %c0_i32_0 : i32, i32
  }
  func.func @transform_2(%arg0: i32) -> (i32, i32) {
    %c0_i32 = arith.constant 0 : i32
    %c0_i32_0 = arith.constant 0 : i32
    %c0_i32_1 = arith.constant 0 : i32
    return %c0_i32, %c0_i32_0 : i32, i32
  }
  func.func @transform_3(%arg0: i32) -> (i32, i32, i32) {
    %c0_i32 = arith.constant 0 : i32
    %c0_i32_0 = arith.constant 0 : i32
    %c0_i32_1 = arith.constant 0 : i32
    %c0_i32_2 = arith.constant 0 : i32
    return %c0_i32, %c0_i32_0, %c0_i32_1 : i32, i32, i32
  }
  func.func @transform_4(%arg0: i32) -> (i32, i32) {
    %c0_i32 = arith.constant 0 : i32
    %c0_i32_0 = arith.constant 0 : i32
    %c0_i32_1 = arith.constant 0 : i32
    return %c0_i32, %c0_i32_0 : i32, i32
  }
  func.func @transform_5(%arg0: i32) -> (i32, i32) {
    %c0_i32 = arith.constant 0 : i32
    %c0_i32_0 = arith.constant 0 : i32
    %c0_i32_1 = arith.constant 0 : i32
    return %c0_i32, %c0_i32_0 : i32, i32
  }
  func.func @transform_6(%arg0: i32) -> (i32, i32) {
    %c0_i32 = arith.constant 0 : i32
    %c0_i32_0 = arith.constant 0 : i32
    %c0_i32_1 = arith.constant 0 : i32
    return %c0_i32, %c0_i32_0 : i32, i32
  }
  func.func @transform_7(%arg0: i32) -> (i32, i32, i32) {
    %c0_i32 = arith.constant 0 : i32
    %c0_i32_0 = arith.constant 0 : i32
    %c0_i32_1 = arith.constant 0 : i32
    %c0_i32_2 = arith.constant 0 : i32
    return %c0_i32, %c0_i32_0, %c0_i32_1 : i32, i32, i32
  }
  func.func @transform_8(%arg0: i32) -> (i32, i32) {
    %c0_i32 = arith.constant 0 : i32
    %c0_i32_0 = arith.constant 0 : i32
    %c0_i32_1 = arith.constant 0 : i32
    return %c0_i32, %c0_i32_0 : i32, i32
  }
  func.func @transform_9(%arg0: i32) -> (i32, i32) {
    %c0_i32 = arith.constant 0 : i32
    %c0_i32_0 = arith.constant 0 : i32
    %c0_i32_1 = arith.constant 0 : i32
    return %c0_i32, %c0_i32_0 : i32, i32
  }
  func.func @transform_10(%arg0: i32) -> (i32, i32) {
    %c0_i32 = arith.constant 0 : i32
    %c0_i32_0 = arith.constant 0 : i32
    %c0_i32_1 = arith.constant 0 : i32
    return %c0_i32, %c0_i32_0 : i32, i32
  }
  func.func @transform_11(%arg0: i32) -> (i32, i32) {
    %c0_i32 = arith.constant 0 : i32
    %c0_i32_0 = arith.constant 0 : i32
    %c0_i32_1 = arith.constant 0 : i32
    return %c0_i32, %c0_i32_0 : i32, i32
  }
  func.func @transform_12(%arg0: i32) -> (i32, i32, i32) {
    %c0_i32 = arith.constant 0 : i32
    %c0_i32_0 = arith.constant 0 : i32
    %c0_i32_1 = arith.constant 0 : i32
    return %arg0, %c0_i32, %c0_i32_0 : i32, i32, i32
  }
  func.func @transform_13(%arg0: i32) -> (i32, i32, i32) {
    %c0_i32 = arith.constant 0 : i32
    %c0_i32_0 = arith.constant 0 : i32
    %c0_i32_1 = arith.constant 0 : i32
    return %arg0, %c0_i32, %c0_i32_0 : i32, i32, i32
  }
}

</mosaic_0001>

<llo_original>
// kernel: tpu_custom_call.1
$region0: #{tpu_custom_call.1}
  #allocation0 [shape = 'u32[]', space=smem, size = 0x4, offset = 0x4, fixed_abs, tag = 'smem constant byte address 0x4 - core index']
  #allocation1 [shape = 'u32[144,128]{1,0:T(1,128)}', space=vmem, size = 0x12000, scoped, tag = 'internal scratch']
  #allocation2 [shape = 'f32[72,512]{1,0:T(8,128)}', space=vmem, size = 0x24000, scoped, tag = 'scratch operand']
  %s0 = inlined_call_operand.hbm [shape: f32[2,4,512], index: 0, kind: input, shape index: {}]
  %s1 = inlined_call_operand.vmem [shape: f32[4,1], index: 1, kind: input, shape index: {}]
  %s2 = inlined_call_operand.vmem [shape: f32[4,1], index: 2, kind: input, shape index: {}]
  %s3 = inlined_call_operand.vmem [shape: bf16[3,4,72], index: 3, kind: input, shape index: {}]
  %s4 = inlined_call_operand.vmem [shape: f32[4,1], index: 4, kind: input, shape index: {}]
  %s5 = inlined_call_operand.vmem [shape: f32[4,1], index: 5, kind: input, shape index: {}]
  %s6 = inlined_call_operand.vmem [shape: f32[4,1], index: 6, kind: input, shape index: {}]
  %s7 = inlined_call_operand.vmem [shape: bf16[3,4,72], index: 7, kind: input, shape index: {}]
  %s8 = inlined_call_operand.vmem [shape: f32[4,1], index: 8, kind: input, shape index: {}]
  %s9 = inlined_call_operand.hbm [shape: f32[4,4], index: 9, kind: input, shape index: {}]
  %s10 = inlined_call_operand.vmem [shape: f32[9,512], index: 10, kind: input, shape index: {}]
  %s11 = inlined_call_operand.vmem [shape: f32[2,512], index: 11, kind: input, shape index: {}]
  %s12 = inlined_call_operand.vmem [shape: f32[2,8,1], index: 12, kind: input, shape index: {}]
  %s13 = inlined_call_operand.hbm [shape: f32[2,4,512], index: 13, kind: output, shape index: {}]
  %s14 = sld [smem:[#allocation0]]
  $region93: #{tpu_custom_call.1} parent=0
    _
  %s16 = ssub.s32 1, %s14
  %s17 = scalar_select 0, %s16, %s14
  $region1: #{tpu_custom_call.1} parent=0
    #allocation3 [shape = 'u8[16384]{0}', space=vmem, size = 0x4000, scoped, tag = 'input window, operand 0']
    #allocation4 [shape = 's32[2]{0}', space=sflag, size = 0x8, scoped, tag = 'scoped memory for tpu_custom_call.1']
    #allocation5 [shape = 's32[2]{0}', space=sflag, size = 0x8, scoped, tag = 'scoped memory for tpu_custom_call.1']
    #allocation6 [shape = 'u8[2048]{0}', space=vmem, size = 0x800, scoped, tag = 'input window, operand 9, single buffered']
    #allocation7 [shape = 's32[1]{0}', space=sflag, size = 0x4, scoped, tag = 'scoped memory for tpu_custom_call.1']
    #allocation8 [shape = 'u8[16384]{0}', space=vmem, size = 0x4000, scoped, tag = 'output window, operand 0']
    %18 = vsyncpa [#allocation4], 0
    %s19 = scalar_lea.sflag [#allocation4], 1
    %20 = vsyncpa %s19, 0
    %21 = vsyncpa [#allocation7], 0
    %22 = vsyncpa [#allocation5], 0
    %s23 = scalar_lea.sflag [#allocation5], 1
    %24 = vsyncpa %s23, 0
    loop: start=0, step=1, limit=4
    $region2: #{tpu_custom_call.1} parent=1 // loop_pre_header
      _
    $region3: #{tpu_custom_call.1} parent=1 // loop_header
      %s26 = sphi 0, %s30
      %p27 = scmp.ge.s32.totalorder %s26, 4
      %s36 = sphi 0, %s38
      %s39 = sphi 0, %s36
      %s40 = sphi 0, %s39
      %s56 = sphi 0, %s40
      %s60 = sphi 0, %s60
      %s62 = sphi 0, %s60
      %s63 = sphi 0, %s62
      %s77 = sphi 0, %s63
      %s81 = sphi 0, %s81
      %s83 = sphi 0, %s81
      %s84 = sphi 0, %s83
      %s98 = sphi 0, %s84
      %s102 = sphi 0, %s102
      %s104 = sphi 0, %s102
      %s105 = sphi 0, %s104
      %s119 = sphi 0, %s105
      %s123 = sphi 0, %s123
      %s125 = sphi 0, %s123
      %s126 = sphi 0, %s125
      %s140 = sphi 0, %s126
      %s144 = sphi 0, %s144
      %s146 = sphi 0, %s144
      %s147 = sphi 0, %s146
      %s161 = sphi 0, %s147
      %s165 = sphi 0, %s165
      %s167 = sphi 0, %s165
      %s168 = sphi 0, %s167
      %s182 = sphi 0, %s168
      %s186 = sphi 0, %s186
      %s188 = sphi 0, %s186
      %s189 = sphi 0, %s188
      %s203 = sphi 0, %s189
      %s207 = sphi 0, %s207
      %s209 = sphi 0, %s207
      %s210 = sphi 0, %s209
      %s224 = sphi 0, %s210
      %s228 = sphi 0, %s228
      %s230 = sphi 0, %s228
      %s231 = sphi 0, %s230
      %s245 = sphi 0, %s231
      %s249 = sphi 0, %s249
      %s251 = sphi 0, %s249
      %s252 = sphi 0, %s251
      %s266 = sphi 0, %s252
      %s270 = sphi 0, %s270
      %s272 = sphi 0, %s270
      %s273 = sphi 0, %s272
      %s287 = sphi 0, %s273
      %s293 = sphi 0, %s295
      %s296 = sphi 0, %s293
      %s297 = sphi 0, %s296
      %s313 = sphi 0, %s297
      %s319 = sphi 0, %s321
      %s322 = sphi 0, %s319
      %s323 = sphi 0, %s322
      %s339 = sphi 0, %s323
    $region4: #{tpu_custom_call.1} parent=1 // loop_header_branch
      %29 = sbr.rel (%p27) target = $region8
    $region5: #{tpu_custom_call.1} parent=1 // loop_body
      %s31 = ssub.s32 %s26, 1
      %s32 = ssub.s32 %s26, 2
      %s33 = sadd.s32 %s26, 1
      %s34 = ssub.s32 %s26, %s33
      %p35 = scmp.eq.s32.totalorder %s34, 0
      %s37 = sadd.s32 %s36, 1
      %s38 = scalar_select %p35, %s36, %s37
      %p41 = pneg %p35
      %p42 = scmp.eq.s32.totalorder %s26, 1
      %p43 = por %p41, %p42
      %p44 = scmp.ne.s32.totalorder %s36, %s39
      %p45 = scmp.eq.s32.totalorder %s26, 0
      %p46 = por %p44, %p45
      %p47 = scmp.ne.s32.totalorder %s36, %s39
      %p48 = scmp.eq.s32.totalorder %s31, 1
      %p49 = por %p47, %p48
      %p50 = scmp.ne.s32.totalorder %s39, %s40
      %p51 = scmp.eq.s32.totalorder %s31, 0
      %p52 = por %p50, %p51
      %p53 = scmp.ne.s32.totalorder %s39, %s40
      %p54 = scmp.eq.s32.totalorder %s32, 1
      %p55 = por %p53, %p54
      %p57 = scmp.ne.s32.totalorder %s40, %s56
      %p58 = scmp.eq.s32.totalorder %s32, 0
      %p59 = por %p57, %p58
      %s61 = sadd.s32 %s60, 1
      %p64 = scmp.eq.s32.totalorder %s26, 1
      %p65 = scmp.ne.s32.totalorder %s60, %s62
      %p66 = scmp.eq.s32.totalorder %s26, 0
      %p67 = por %p65, %p66
      %p68 = scmp.ne.s32.totalorder %s60, %s62
      %p69 = scmp.eq.s32.totalorder %s31, 1
      %p70 = por %p68, %p69
      %p71 = scmp.ne.s32.totalorder %s62, %s63
      %p72 = scmp.eq.s32.totalorder %s31, 0
      %p73 = por %p71, %p72
      %p74 = scmp.ne.s32.totalorder %s62, %s63
      %p75 = scmp.eq.s32.totalorder %s32, 1
      %p76 = por %p74, %p75
      %p78 = scmp.ne.s32.totalorder %s63, %s77
      %p79 = scmp.eq.s32.totalorder %s32, 0
      %p80 = por %p78, %p79
      %s82 = sadd.s32 %s81, 1
      %p85 = scmp.eq.s32.totalorder %s26, 1
      %p86 = scmp.ne.s32.totalorder %s81, %s83
      %p87 = scmp.eq.s32.totalorder %s26, 0
      %p88 = por %p86, %p87
      %p89 = scmp.ne.s32.totalorder %s81, %s83
      %p90 = scmp.eq.s32.totalorder %s31, 1
      %p91 = por %p89, %p90
      %p92 = scmp.ne.s32.totalorder %s83, %s84
      %p93 = scmp.eq.s32.totalorder %s31, 0
      %p94 = por %p92, %p93
      %p95 = scmp.ne.s32.totalorder %s83, %s84
      %p96 = scmp.eq.s32.totalorder %s32, 1
      %p97 = por %p95, %p96
      %p99 = scmp.ne.s32.totalorder %s84, %s98
      %p100 = scmp.eq.s32.totalorder %s32, 0
      %p101 = por %p99, %p100
      %s103 = sadd.s32 %s102, 1
      %p106 = scmp.eq.s32.totalorder %s26, 1
      %p107 = scmp.ne.s32.totalorder %s102, %s104
      %p108 = scmp.eq.s32.totalorder %s26, 0
      %p109 = por %p107, %p108
      %p110 = scmp.ne.s32.totalorder %s102, %s104
      %p111 = scmp.eq.s32.totalorder %s31, 1
      %p112 = por %p110, %p111
      %p113 = scmp.ne.s32.totalorder %s104, %s105
      %p114 = scmp.eq.s32.totalorder %s31, 0
      %p115 = por %p113, %p114
      %p116 = scmp.ne.s32.totalorder %s104, %s105
      %p117 = scmp.eq.s32.totalorder %s32, 1
      %p118 = por %p116, %p117
      %p120 = scmp.ne.s32.totalorder %s105, %s119
      %p121 = scmp.eq.s32.totalorder %s32, 0
      %p122 = por %p120, %p121
      %s124 = sadd.s32 %s123, 1
      %p127 = scmp.eq.s32.totalorder %s26, 1
      %p128 = scmp.ne.s32.totalorder %s123, %s125
      %p129 = scmp.eq.s32.totalorder %s26, 0
      %p130 = por %p128, %p129
      %p131 = scmp.ne.s32.totalorder %s123, %s125
      %p132 = scmp.eq.s32.totalorder %s31, 1
      %p133 = por %p131, %p132
      %p134 = scmp.ne.s32.totalorder %s125, %s126
      %p135 = scmp.eq.s32.totalorder %s31, 0
      %p136 = por %p134, %p135
      %p137 = scmp.ne.s32.totalorder %s125, %s126
      %p138 = scmp.eq.s32.totalorder %s32, 1
      %p139 = por %p137, %p138
      %p141 = scmp.ne.s32.totalorder %s126, %s140
      %p142 = scmp.eq.s32.totalorder %s32, 0
      %p143 = por %p141, %p142
      %s145 = sadd.s32 %s144, 1
      %p148 = scmp.eq.s32.totalorder %s26, 1
      %p149 = scmp.ne.s32.totalorder %s144, %s146
      %p150 = scmp.eq.s32.totalorder %s26, 0
      %p151 = por %p149, %p150
      %p152 = scmp.ne.s32.totalorder %s144, %s146
      %p153 = scmp.eq.s32.totalorder %s31, 1
      %p154 = por %p152, %p153
      %p155 = scmp.ne.s32.totalorder %s146, %s147
      %p156 = scmp.eq.s32.totalorder %s31, 0
      %p157 = por %p155, %p156
      %p158 = scmp.ne.s32.totalorder %s146, %s147
      %p159 = scmp.eq.s32.totalorder %s32, 1
      %p160 = por %p158, %p159
      %p162 = scmp.ne.s32.totalorder %s147, %s161
      %p163 = scmp.eq.s32.totalorder %s32, 0
      %p164 = por %p162, %p163
      %s166 = sadd.s32 %s165, 1
      %p169 = scmp.eq.s32.totalorder %s26, 1
      %p170 = scmp.ne.s32.totalorder %s165, %s167
      %p171 = scmp.eq.s32.totalorder %s26, 0
      %p172 = por %p170, %p171
      %p173 = scmp.ne.s32.totalorder %s165, %s167
      %p174 = scmp.eq.s32.totalorder %s31, 1
      %p175 = por %p173, %p174
      %p176 = scmp.ne.s32.totalorder %s167, %s168
      %p177 = scmp.eq.s32.totalorder %s31, 0
      %p178 = por %p176, %p177
      %p179 = scmp.ne.s32.totalorder %s167, %s168
      %p180 = scmp.eq.s32.totalorder %s32, 1
      %p181 = por %p179, %p180
      %p183 = scmp.ne.s32.totalorder %s168, %s182
      %p184 = scmp.eq.s32.totalorder %s32, 0
      %p185 = por %p183, %p184
      %s187 = sadd.s32 %s186, 1
      %p190 = scmp.eq.s32.totalorder %s26, 1
      %p191 = scmp.ne.s32.totalorder %s186, %s188
      %p192 = scmp.eq.s32.totalorder %s26, 0
      %p193 = por %p191, %p192
      %p194 = scmp.ne.s32.totalorder %s186, %s188
      %p195 = scmp.eq.s32.totalorder %s31, 1
      %p196 = por %p194, %p195
      %p197 = scmp.ne.s32.totalorder %s188, %s189
      %p198 = scmp.eq.s32.totalorder %s31, 0
      %p199 = por %p197, %p198
      %p200 = scmp.ne.s32.totalorder %s188, %s189
      %p201 = scmp.eq.s32.totalorder %s32, 1
      %p202 = por %p200, %p201
      %p204 = scmp.ne.s32.totalorder %s189, %s203
      %p205 = scmp.eq.s32.totalorder %s32, 0
      %p206 = por %p204, %p205
      %s208 = sadd.s32 %s207, 1
      %p211 = scmp.eq.s32.totalorder %s26, 1
      %p212 = scmp.ne.s32.totalorder %s207, %s209
      %p213 = scmp.eq.s32.totalorder %s26, 0
      %p214 = por %p212, %p213
      %p215 = scmp.ne.s32.totalorder %s207, %s209
      %p216 = scmp.eq.s32.totalorder %s31, 1
      %p217 = por %p215, %p216
      %p218 = scmp.ne.s32.totalorder %s209, %s210
      %p219 = scmp.eq.s32.totalorder %s31, 0
      %p220 = por %p218, %p219
      %p221 = scmp.ne.s32.totalorder %s209, %s210
      %p222 = scmp.eq.s32.totalorder %s32, 1
      %p223 = por %p221, %p222
      %p225 = scmp.ne.s32.totalorder %s210, %s224
      %p226 = scmp.eq.s32.totalorder %s32, 0
      %p227 = por %p225, %p226
      %s229 = sadd.s32 %s228, 1
      %p232 = scmp.eq.s32.totalorder %s26, 1
      %p233 = scmp.ne.s32.totalorder %s228, %s230
      %p234 = scmp.eq.s32.totalorder %s26, 0
      %p235 = por %p233, %p234
      %p236 = scmp.ne.s32.totalorder %s228, %s230
      %p237 = scmp.eq.s32.totalorder %s31, 1
      %p238 = por %p236, %p237
      %p239 = scmp.ne.s32.totalorder %s230, %s231
      %p240 = scmp.eq.s32.totalorder %s31, 0
      %p241 = por %p239, %p240
      %p242 = scmp.ne.s32.totalorder %s230, %s231
      %p243 = scmp.eq.s32.totalorder %s32, 1
      %p244 = por %p242, %p243
      %p246 = scmp.ne.s32.totalorder %s231, %s245
      %p247 = scmp.eq.s32.totalorder %s32, 0
      %p248 = por %p246, %p247
      %s250 = sadd.s32 %s249, 1
      %p253 = scmp.eq.s32.totalorder %s26, 1
      %p254 = scmp.ne.s32.totalorder %s249, %s251
      %p255 = scmp.eq.s32.totalorder %s26, 0
      %p256 = por %p254, %p255
      %p257 = scmp.ne.s32.totalorder %s249, %s251
      %p258 = scmp.eq.s32.totalorder %s31, 1
      %p259 = por %p257, %p258
      %p260 = scmp.ne.s32.totalorder %s251, %s252
      %p261 = scmp.eq.s32.totalorder %s31, 0
      %p262 = por %p260, %p261
      %p263 = scmp.ne.s32.totalorder %s251, %s252
      %p264 = scmp.eq.s32.totalorder %s32, 1
      %p265 = por %p263, %p264
      %p267 = scmp.ne.s32.totalorder %s252, %s266
      %p268 = scmp.eq.s32.totalorder %s32, 0
      %p269 = por %p267, %p268
      %s271 = sadd.s32 %s270, 1
      %p274 = scmp.eq.s32.totalorder %s26, 1
      %p275 = scmp.ne.s32.totalorder %s270, %s272
      %p276 = scmp.eq.s32.totalorder %s26, 0
      %p277 = por %p275, %p276
      %p278 = scmp.ne.s32.totalorder %s270, %s272
      %p279 = scmp.eq.s32.totalorder %s31, 1
      %p280 = por %p278, %p279
      %p281 = scmp.ne.s32.totalorder %s272, %s273
      %p282 = scmp.eq.s32.totalorder %s31, 0
      %p283 = por %p281, %p282
      %p284 = scmp.ne.s32.totalorder %s272, %s273
      %p285 = scmp.eq.s32.totalorder %s32, 1
      %p286 = por %p284, %p285
      %p288 = scmp.ne.s32.totalorder %s273, %s287
      %p289 = scmp.eq.s32.totalorder %s32, 0
      %p290 = por %p288, %p289
      %s291 = ssub.s32 %s26, %s33
      %p292 = scmp.eq.s32.totalorder %s291, 0
      %s294 = sadd.s32 %s293, 1
      %s295 = scalar_select %p292, %s293, %s294
      %p298 = pneg %p292
      %p299 = scmp.eq.s32.totalorder %s26, 1
      %p300 = por %p298, %p299
      %p301 = scmp.ne.s32.totalorder %s293, %s296
      %p302 = scmp.eq.s32.totalorder %s26, 0
      %p303 = por %p301, %p302
      %p304 = scmp.ne.s32.totalorder %s293, %s296
      %p305 = scmp.eq.s32.totalorder %s31, 1
      %p306 = por %p304, %p305
      %p307 = scmp.ne.s32.totalorder %s296, %s297
      %p308 = scmp.eq.s32.totalorder %s31, 0
      %p309 = por %p307, %p308
      %p310 = scmp.ne.s32.totalorder %s296, %s297
      %p311 = scmp.eq.s32.totalorder %s32, 1
      %p312 = por %p310, %p311
      %p314 = scmp.ne.s32.totalorder %s297, %s313
      %p315 = scmp.eq.s32.totalorder %s32, 0
      %p316 = por %p314, %p315
      %s317 = ssub.s32 %s26, %s33
      %p318 = scmp.eq.s32.totalorder %s317, 0
      %s320 = sadd.s32 %s319, 1
      %s321 = scalar_select %p318, %s319, %s320
      %p324 = pneg %p318
      %p325 = scmp.eq.s32.totalorder %s26, 1
      %p326 = por %p324, %p325
      %p327 = scmp.ne.s32.totalorder %s319, %s322
      %p328 = scmp.eq.s32.totalorder %s26, 0
      %p329 = por %p327, %p328
      %p330 = scmp.ne.s32.totalorder %s319, %s322
      %p331 = scmp.eq.s32.totalorder %s31, 1
      %p332 = por %p330, %p331
      %p333 = scmp.ne.s32.totalorder %s322, %s323
      %p334 = scmp.eq.s32.totalorder %s31, 0
      %p335 = por %p333, %p334
      %p336 = scmp.ne.s32.totalorder %s322, %s323
      %p337 = scmp.eq.s32.totalorder %s32, 1
      %p338 = por %p336, %p337
      %p340 = scmp.ne.s32.totalorder %s323, %s339
      %p341 = scmp.eq.s32.totalorder %s32, 0
      %p342 = por %p340, %p341
      %p343 = scmp.le.s32.totalorder 1, %s26
      %p344 = scmp.lt.s32.totalorder %s26, 3
      %p345 = pnand %p343, %p344
      %p346 = pneg %p345
      // Predicated region
      $region9: #{tpu_custom_call.1} parent=5 // pred_check
        _
      $region10: #{tpu_custom_call.1} parent=5 // pred_check_branch
        %348 = sbr.rel (%p345) target = $region12
      $region11: #{tpu_custom_call.1} parent=5 // pred_region
        %s349 = ssub.s32 %s26, 1
        // Predicated region
        $region13: #{tpu_custom_call.1} parent=11 // pred_check
          %p350 = pneg %p73
        $region14: #{tpu_custom_call.1} parent=11 // pred_check_branch
          %352 = sbr.rel (%p350) target = $region16
        $region15: #{tpu_custom_call.1} parent=11 // pred_region
          _
        $region16: #{tpu_custom_call.1} parent=11 // pred_fallthru
          _
        // Predicated region
        $region17: #{tpu_custom_call.1} parent=11 // pred_check
          %p353 = pneg %p94
        $region18: #{tpu_custom_call.1} parent=11 // pred_check_branch
          %355 = sbr.rel (%p353) target = $region20
        $region19: #{tpu_custom_call.1} parent=11 // pred_region
          _
        $region20: #{tpu_custom_call.1} parent=11 // pred_fallthru
          _
        // Predicated region
        $region21: #{tpu_custom_call.1} parent=11 // pred_check
          %p356 = pneg %p115
        $region22: #{tpu_custom_call.1} parent=11 // pred_check_branch
          %358 = sbr.rel (%p356) target = $region24
        $region23: #{tpu_custom_call.1} parent=11 // pred_region
          _
        $region24: #{tpu_custom_call.1} parent=11 // pred_fallthru
          _
        // Predicated region
        $region25: #{tpu_custom_call.1} parent=11 // pred_check
          %p359 = pneg %p136
        $region26: #{tpu_custom_call.1} parent=11 // pred_check_branch
          %361 = sbr.rel (%p359) target = $region28
        $region27: #{tpu_custom_call.1} parent=11 // pred_region
          _
        $region28: #{tpu_custom_call.1} parent=11 // pred_fallthru
          _
        // Predicated region
        $region29: #{tpu_custom_call.1} parent=11 // pred_check
          %p362 = pneg %p157
        $region30: #{tpu_custom_call.1} parent=11 // pred_check_branch
          %364 = sbr.rel (%p362) target = $region32
        $region31: #{tpu_custom_call.1} parent=11 // pred_region
          _
        $region32: #{tpu_custom_call.1} parent=11 // pred_fallthru
          _
        // Predicated region
        $region33: #{tpu_custom_call.1} parent=11 // pred_check
          %p365 = pneg %p178
        $region34: #{tpu_custom_call.1} parent=11 // pred_check_branch
          %367 = sbr.rel (%p365) target = $region36
        $region35: #{tpu_custom_call.1} parent=11 // pred_region
          _
        $region36: #{tpu_custom_call.1} parent=11 // pred_fallthru
          _
        // Predicated region
        $region37: #{tpu_custom_call.1} parent=11 // pred_check
          %p368 = pneg %p199
        $region38: #{tpu_custom_call.1} parent=11 // pred_check_branch
          %370 = sbr.rel (%p368) target = $region40
        $region39: #{tpu_custom_call.1} parent=11 // pred_region
          _
        $region40: #{tpu_custom_call.1} parent=11 // pred_fallthru
          _
        // Predicated region
        $region41: #{tpu_custom_call.1} parent=11 // pred_check
          %p371 = pneg %p220
        $region42: #{tpu_custom_call.1} parent=11 // pred_check_branch
          %373 = sbr.rel (%p371) target = $region44
        $region43: #{tpu_custom_call.1} parent=11 // pred_region
          _
        $region44: #{tpu_custom_call.1} parent=11 // pred_fallthru
          _
        // Predicated region
        $region45: #{tpu_custom_call.1} parent=11 // pred_check
          %p374 = pneg %p241
        $region46: #{tpu_custom_call.1} parent=11 // pred_check_branch
          %376 = sbr.rel (%p374) target = $region48
        $region47: #{tpu_custom_call.1} parent=11 // pred_region
          %s378 = ssub.s32 64, 64
          %379 = vsyncadd [#allocation7], %s378
          %s381 = sshll.u32 [#allocation6], 4
          %s382 = int_to_ptr.vmem [resolvable:$true] %s381
          %384 = dma.hbm_to_vmem [thread:$0]  %s9, 64, %s382, [#allocation7]
        $region48: #{tpu_custom_call.1} parent=11 // pred_fallthru
          _
        // Predicated region
        $region49: #{tpu_custom_call.1} parent=11 // pred_check
          %p385 = pneg %p262
        $region50: #{tpu_custom_call.1} parent=11 // pred_check_branch
          %387 = sbr.rel (%p385) target = $region52
        $region51: #{tpu_custom_call.1} parent=11 // pred_region
          _
        $region52: #{tpu_custom_call.1} parent=11 // pred_fallthru
          _
        // Predicated region
        $region53: #{tpu_custom_call.1} parent=11 // pred_check
          %p388 = pneg %p283
        $region54: #{tpu_custom_call.1} parent=11 // pred_check_branch
          %390 = sbr.rel (%p388) target = $region56
        $region55: #{tpu_custom_call.1} parent=11 // pred_region
          _
        $region56: #{tpu_custom_call.1} parent=11 // pred_fallthru
          _
      $region12: #{tpu_custom_call.1} parent=5 // pred_fallthru
        _
      %p391 = scmp.lt.s32.totalorder %s26, 2
      // Predicated region
      $region57: #{tpu_custom_call.1} parent=5 // pred_check
        %p392 = pneg %p391
      $region58: #{tpu_custom_call.1} parent=5 // pred_check_branch
        %394 = sbr.rel (%p392) target = $region60
      $region59: #{tpu_custom_call.1} parent=5 // pred_region
        // Predicated region
        $region61: #{tpu_custom_call.1} parent=59 // pred_check
          %p395 = pneg %p46
        $region62: #{tpu_custom_call.1} parent=59 // pred_check_branch
          %397 = sbr.rel (%p395) target = $region64
        $region63: #{tpu_custom_call.1} parent=59 // pred_region
          %s398 = sand.u32 %s36, 1
          %s399 = scalar_lea.sflag [#allocation4], %s398
          %s400 = sand.u32 %s36, 1
          %s401 = smul.addr %s400, 16
          %s402 = scalar_lea.vmem [#allocation3], %s401
          %s404 = ssub.s32 256, 256
          %405 = vsyncadd %s399, %s404
          %s406 = smul.addr %s26, 4
          %s407 = smul.addr %s406, 64
          %s408 = scalar_lea.hbm %s0, %s407
          %s410 = sshll.u32 %s402, 4
          %s411 = int_to_ptr.vmem [resolvable:$true] %s410
          %413 = dma.hbm_to_vmem [thread:$0]  %s408, 256, %s411, %s399
        $region64: #{tpu_custom_call.1} parent=59 // pred_fallthru
          _
        // Predicated region
        $region65: #{tpu_custom_call.1} parent=59 // pred_check
          %p414 = pneg %p303
        $region66: #{tpu_custom_call.1} parent=59 // pred_check_branch
          %416 = sbr.rel (%p414) target = $region68
        $region67: #{tpu_custom_call.1} parent=59 // pred_region
          %p417 = scmp.lt.s32.totalorder %s26, 1
          %s418 = scalar_select %p417, %s26, 1
          %s419 = smul.addr %s418, 8
          %s420 = scalar_lea.vmem %s12, %s419
        $region68: #{tpu_custom_call.1} parent=59 // pred_fallthru
          _
      $region60: #{tpu_custom_call.1} parent=5 // pred_fallthru
        _
      %p421 = scmp.le.s32.totalorder 1, %s26
      %p422 = scmp.lt.s32.totalorder %s26, 3
      %p423 = pnand %p421, %p422
      %p424 = pneg %p423
      // Predicated region
      $region69: #{tpu_custom_call.1} parent=5 // pred_check
        _
      $region70: #{tpu_custom_call.1} parent=5 // pred_check_branch
        %426 = sbr.rel (%p423) target = $region72
      $region71: #{tpu_custom_call.1} parent=5 // pred_region
        %s427 = ssub.s32 %s26, 1
        %s428 = sand.u32 %s39, 1
        %s429 = scalar_lea.sflag [#allocation4], %s428
        %s430 = sand.u32 %s39, 1
        %s431 = smul.addr %s430, 16
        %s432 = scalar_lea.vmem [#allocation3], %s431
        // Predicated region
        $region73: #{tpu_custom_call.1} parent=71 // pred_check
          %p433 = pneg %p52
        $region74: #{tpu_custom_call.1} parent=71 // pred_check_branch
          %435 = sbr.rel (%p433) target = $region76
        $region75: #{tpu_custom_call.1} parent=71 // pred_region
          %436 = dma.done %s429, 256
        $region76: #{tpu_custom_call.1} parent=71 // pred_fallthru
          _
        // Predicated region
        $region77: #{tpu_custom_call.1} parent=71 // pred_check
          %p437 = pneg %p241
        $region78: #{tpu_custom_call.1} parent=71 // pred_check_branch
          %439 = sbr.rel (%p437) target = $region80
        $region79: #{tpu_custom_call.1} parent=71 // pred_region
          %440 = dma.done [#allocation7], 64
        $region80: #{tpu_custom_call.1} parent=71 // pred_fallthru
          _
        %s441 = sand.u32 %s39, 1
        %s442 = scalar_lea.sflag [#allocation4], %s441
        %s443 = sand.u32 %s39, 1
        %s444 = smul.addr %s443, 16
        %s445 = scalar_lea.vmem [#allocation3], %s444
        %p446 = pneg %p52
        %p447 = pneg %p49
        %p448 = pneg %p73
        %p449 = pneg %p70
        %p450 = pneg %p94
        %p451 = pneg %p91
        %p452 = pneg %p115
        %p453 = pneg %p112
        %p454 = pneg %p136
        %p455 = pneg %p133
        %p456 = pneg %p157
        %p457 = pneg %p154
        %p458 = pneg %p178
        %p459 = pneg %p175
        %p460 = pneg %p199
        %p461 = pneg %p196
        %p462 = pneg %p220
        %p463 = pneg %p217
        %p464 = pneg %p241
        %p465 = pneg %p238
        %p466 = pneg %p262
        %p467 = pneg %p259
        %p468 = pneg %p283
        %p469 = pneg %p280
        %p470 = scmp.lt.s32.totalorder %s31, 1
        %s471 = scalar_select %p470, %s31, 1
        %s472 = smul.addr %s471, 8
        %s473 = scalar_lea.vmem %s12, %s472
        %p474 = pneg %p309
        %p475 = pneg %p306
        %p476 = pneg %p335
        %p477 = pneg %p332
        %s478 = sand.u32 %s322, 1
        %s479 = scalar_lea.sflag [#allocation5], %s478
        %s480 = sand.u32 %s322, 1
        %s481 = smul.addr %s480, 16
        %s482 = scalar_lea.vmem [#allocation8], %s481
        %p483 = scmp.lt.s32.totalorder %s31, 1
        %s484 = scalar_select %p483, %s31, 1
        %s485 = smul.addr %s484, 8
        %s486 = scalar_lea.vmem %s12, %s485
        %v488 = vld [vmem:[%s432] sm:$0xff]
        %v489 = vld [vmem:[%s432 + $0x8] sm:$0xff]
        %v490 = vld [vmem:[#allocation6] sm:$0xf]
        %491 = vst [vmem:[#allocation2] sm:$0xff] 0.0
        %492 = vst [vmem:[#allocation2 + $0x8] sm:$0xff] 0.0
        %493 = vst [vmem:[#allocation2 + $0x10] sm:$0xff] 0.0
        %494 = vst [vmem:[#allocation2 + $0x18] sm:$0xff] 0.0
        %495 = vst [vmem:[#allocation2 + $0x20] sm:$0xff] 0.0
        %496 = vst [vmem:[#allocation2 + $0x28] sm:$0xff] 0.0
        %497 = vst [vmem:[#allocation2 + $0x30] sm:$0xff] 0.0
        %498 = vst [vmem:[#allocation2 + $0x38] sm:$0xff] 0.0
        %499 = vst [vmem:[#allocation2 + $0x40] sm:$0xff] 0.0
        %500 = vst [vmem:[#allocation2 + $0x48] sm:$0xff] 0.0
        %501 = vst [vmem:[#allocation2 + $0x50] sm:$0xff] 0.0
        %502 = vst [vmem:[#allocation2 + $0x58] sm:$0xff] 0.0
        %503 = vst [vmem:[#allocation2 + $0x60] sm:$0xff] 0.0
        %504 = vst [vmem:[#allocation2 + $0x68] sm:$0xff] 0.0
        %505 = vst [vmem:[#allocation2 + $0x70] sm:$0xff] 0.0
        %506 = vst [vmem:[#allocation2 + $0x78] sm:$0xff] 0.0
        %507 = vst [vmem:[#allocation2 + $0x80] sm:$0xff] 0.0
        %508 = vst [vmem:[#allocation2 + $0x88] sm:$0xff] 0.0
        %509 = vst [vmem:[#allocation2 + $0x90] sm:$0xff] 0.0
        %510 = vst [vmem:[#allocation2 + $0x98] sm:$0xff] 0.0
        %511 = vst [vmem:[#allocation2 + $0xa0] sm:$0xff] 0.0
        %512 = vst [vmem:[#allocation2 + $0xa8] sm:$0xff] 0.0
        %513 = vst [vmem:[#allocation2 + $0xb0] sm:$0xff] 0.0
        %514 = vst [vmem:[#allocation2 + $0xb8] sm:$0xff] 0.0
        %515 = vst [vmem:[#allocation2 + $0xc0] sm:$0xff] 0.0
        %516 = vst [vmem:[#allocation2 + $0xc8] sm:$0xff] 0.0
        %517 = vst [vmem:[#allocation2 + $0xd0] sm:$0xff] 0.0
        %518 = vst [vmem:[#allocation2 + $0xd8] sm:$0xff] 0.0
        %519 = vst [vmem:[#allocation2 + $0xe0] sm:$0xff] 0.0
        %520 = vst [vmem:[#allocation2 + $0xe8] sm:$0xff] 0.0
        %521 = vst [vmem:[#allocation2 + $0xf0] sm:$0xff] 0.0
        %522 = vst [vmem:[#allocation2 + $0xf8] sm:$0xff] 0.0
        %523 = vst [vmem:[#allocation2 + $0x100] sm:$0xff] 0.0
        %524 = vst [vmem:[#allocation2 + $0x108] sm:$0xff] 0.0
        %525 = vst [vmem:[#allocation2 + $0x110] sm:$0xff] 0.0
        %526 = vst [vmem:[#allocation2 + $0x118] sm:$0xff] 0.0
        %v527 = vld [vmem:[%s1] sm:$0xf]
        %v528 = vld [vmem:[%s2] sm:$0xf]
        %v531 = vcombine.high %v488, %v488
        %v532 = vcombine.high %v489, %v489
        %vm535 = vcmask 1043456
        %v536 = vsel %vm535, %v488, 0.0
        %v537 = vsel %vm535, %v531, 0.0
        %v538 = vadd.f32 %v536, %v537
        %v539 = vsel %vm535, %v489, 0.0
        %v540 = vadd.f32 %v538, %v539
        %v541 = vsel %vm535, %v532, 0.0
        %v542 = vadd.f32 %v540, %v541
        %543 = vadd.xlane.f32.xlu0 %v542
        %v544 = vpop.xlane.xlu0 %543
        %v545 = vmul.f32 %v488, %v488
        %v546 = vmul.f32 %v489, %v489
        %v549 = vcombine.high %v545, %v545
        %v550 = vcombine.high %v546, %v546
        %v553 = vsel %vm535, %v545, 0.0
        %v554 = vsel %vm535, %v549, 0.0
        %v555 = vadd.f32 %v553, %v554
        %v556 = vsel %vm535, %v546, 0.0
        %v557 = vadd.f32 %v555, %v556
        %v558 = vsel %vm535, %v550, 0.0
        %v559 = vadd.f32 %v557, %v558
        %560 = vadd.xlane.f32.xlu0 %v559
        %v561 = vpop.xlane.xlu0 %560
        %vm562 = vcmask 31744
        %v564 = vsel %vm562, %v490, 0
        %v567 = vsel %vm535, %v544, 0
        %569 = vmatprep.subr.mxu0 0.0
        %v570 = vand.u32 %v567, 4294901760
        %571 = vmatpush1.msra.mxu0 %v570
        %572 = vmatprep.subr.mxu0 0.0
        %573 = vmatpush1.msra.mxu0 0.0
        %574 = vmatprep.subr.mxu0 0.0
        %575 = vmatpush1.msra.mxu0 0.0
        %576 = vmatprep.subr.mxu0 0.0
        %577 = vmatpush1.msra.mxu0 0.0
        %578 = vmatprep.subr.mxu0 0.0
        %579 = vmatpush1.msra.mxu0 0.0
        %580 = vmatprep.subr.mxu0 0.0
        %581 = vmatpush1.msra.mxu0 0.0
        %582 = vmatprep.subr.mxu0 0.0
        %583 = vmatpush1.msra.mxu0 0.0
        %584 = vmatprep.subr.mxu0 0.0
        %585 = vmatpush1.msra.mxu0 0.0
        %586 = vmatprep.subr.mxu0 0.0
        %587 = vmatpush1.msra.mxu0 0.0
        %588 = vmatprep.subr.mxu0 0.0
        %589 = vmatpush1.msra.mxu0 0.0
        %590 = vmatprep.subr.mxu0 0.0
        %591 = vmatpush1.msra.mxu0 0.0
        %592 = vmatprep.subr.mxu0 0.0
        %593 = vmatpush1.msra.mxu0 0.0
        %594 = vmatprep.subr.mxu0 0.0
        %595 = vmatpush1.msra.mxu0 0.0
        %596 = vmatprep.subr.mxu0 0.0
        %597 = vmatpush1.msra.mxu0 0.0
        %598 = vmatprep.subr.mxu0 0.0
        %599 = vmatpush1.msra.mxu0 0.0
        %600 = vmatprep.subr.mxu0 0.0
        %601 = vmatpush1.msra.mxu0 0.0
        %602 = vmatprep.subr.mxu0 0.0
        %603 = vmatpush1.msra.mxu0 0.0
        %604 = vmatprep.subr.mxu0 0.0
        %605 = vmatpush1.msra.mxu0 0.0
        %606 = vmatprep.subr.mxu0 0.0
        %607 = vmatpush1.msra.mxu0 0.0
        %608 = vmatprep.subr.mxu0 0.0
        %609 = vmatpush1.msra.mxu0 0.0
        %610 = vmatprep.subr.mxu0 0.0
        %611 = vmatpush1.msra.mxu0 0.0
        %612 = vmatprep.subr.mxu0 0.0
        %613 = vmatpush1.msra.mxu0 0.0
        %614 = vmatprep.subr.mxu0 0.0
        %615 = vmatpush1.msra.mxu0 0.0
        %616 = vmatprep.subr.mxu0 0.0
        %617 = vmatpush1.msra.mxu0 0.0
        %618 = vmatprep.subr.mxu0 0.0
        %619 = vmatpush1.msra.mxu0 0.0
        %620 = vmatprep.subr.mxu0 0.0
        %621 = vmatpush1.msra.mxu0 0.0
        %622 = vmatprep.subr.mxu0 0.0
        %623 = vmatpush1.msra.mxu0 0.0
        %624 = vmatprep.subr.mxu0 0.0
        %625 = vmatpush1.msra.mxu0 0.0
        %626 = vmatprep.subr.mxu0 0.0
        %627 = vmatpush1.msra.mxu0 0.0
        %628 = vmatprep.subr.mxu0 0.0
        %629 = vmatpush1.msra.mxu0 0.0
        %630 = vmatprep.subr.mxu0 0.0
        %631 = vmatpush1.msra.mxu0 0.0
        %632 = vmatprep.subr.mxu0 0.0
        %633 = vmatpush1.msra.mxu0 0.0
        %634 = vmatprep.mubr.f32.mxu0 0.0
        %v635 = vand.u32 %v564, 4294901760
        %v636 = vsub.f32 %v564, %v635
        %v637 = vand.u32 %v636, 4294901760
        %v638 = vsub.f32 %v636, %v637
        %v639 = vand.u32 %v638, 4294901760
        %640 = vmatmul.mubr.f32.gmra.mrb[0].mxu0 %v639
        %v641 = vpop.f32.mrb[0].mxu0
        %v642 = vadd.f32 0.0, %v641
        %v643 = vpop.f32.mrb[0].mxu0
        %644 = vdwg.mxu0
        %645 = vmatprep.subr.mxu0 0.0
        %v646 = vand.u32 %v567, 4294901760
        %v647 = vsub.f32 %v567, %v646
        %v648 = vand.u32 %v647, 4294901760
        %v649 = vsub.f32 %v647, %v648
        %v650 = vand.u32 %v649, 4294901760
        %651 = vmatpush1.msra.mxu0 %v650
        %652 = vmatprep.subr.mxu0 0.0
        %653 = vmatpush1.msra.mxu0 0.0
        %654 = vmatprep.subr.mxu0 0.0
        %655 = vmatpush1.msra.mxu0 0.0
        %656 = vmatprep.subr.mxu0 0.0
        %657 = vmatpush1.msra.mxu0 0.0
        %658 = vmatprep.subr.mxu0 0.0
        %659 = vmatpush1.msra.mxu0 0.0
        %660 = vmatprep.subr.mxu0 0.0
        %661 = vmatpush1.msra.mxu0 0.0
        %662 = vmatprep.subr.mxu0 0.0
        %663 = vmatpush1.msra.mxu0 0.0
        %664 = vmatprep.subr.mxu0 0.0
        %665 = vmatpush1.msra.mxu0 0.0
        %666 = vmatprep.subr.mxu0 0.0
        %667 = vmatpush1.msra.mxu0 0.0
        %668 = vmatprep.subr.mxu0 0.0
        %669 = vmatpush1.msra.mxu0 0.0
        %670 = vmatprep.subr.mxu0 0.0
        %671 = vmatpush1.msra.mxu0 0.0
        %672 = vmatprep.subr.mxu0 0.0
        %673 = vmatpush1.msra.mxu0 0.0
        %674 = vmatprep.subr.mxu0 0.0
        %675 = vmatpush1.msra.mxu0 0.0
        %676 = vmatprep.subr.mxu0 0.0
        %677 = vmatpush1.msra.mxu0 0.0
        %678 = vmatprep.subr.mxu0 0.0
        %679 = vmatpush1.msra.mxu0 0.0
        %680 = vmatprep.subr.mxu0 0.0
        %681 = vmatpush1.msra.mxu0 0.0
        %682 = vmatprep.subr.mxu0 0.0
        %683 = vmatpush1.msra.mxu0 0.0
        %684 = vmatprep.subr.mxu0 0.0
        %685 = vmatpush1.msra.mxu0 0.0
        %686 = vmatprep.subr.mxu0 0.0
        %687 = vmatpush1.msra.mxu0 0.0
        %688 = vmatprep.subr.mxu0 0.0
        %689 = vmatpush1.msra.mxu0 0.0
        %690 = vmatprep.subr.mxu0 0.0
        %691 = vmatpush1.msra.mxu0 0.0
        %692 = vmatprep.subr.mxu0 0.0
        %693 = vmatpush1.msra.mxu0 0.0
        %694 = vmatprep.subr.mxu0 0.0
        %695 = vmatpush1.msra.mxu0 0.0
        %696 = vmatprep.subr.mxu0 0.0
        %697 = vmatpush1.msra.mxu0 0.0
        %698 = vmatprep.subr.mxu0 0.0
        %699 = vmatpush1.msra.mxu0 0.0
        %700 = vmatprep.subr.mxu0 0.0
        %701 = vmatpush1.msra.mxu0 0.0
        %702 = vmatprep.subr.mxu0 0.0
        %703 = vmatpush1.msra.mxu0 0.0
        %704 = vmatprep.subr.mxu0 0.0
        %705 = vmatpush1.msra.mxu0 0.0
        %706 = vmatprep.subr.mxu0 0.0
        %707 = vmatpush1.msra.mxu0 0.0
        %708 = vmatprep.subr.mxu0 0.0
        %709 = vmatpush1.msra.mxu0 0.0
        %710 = vmatprep.subr.mxu0 0.0
        %711 = vmatpush1.msra.mxu0 0.0
        %712 = vmatprep.subr.mxu0 0.0
        %713 = vmatpush1.msra.mxu0 0.0
        %714 = vmatprep.mubr.f32.mxu0 0.0
        %v715 = vand.u32 %v564, 4294901760
        %716 = vmatmul.mubr.f32.gmra.mrb[0].mxu0 %v715
        %v717 = vpop.f32.mrb[0].mxu0
        %v718 = vadd.f32 %v642, %v717
        %v719 = vpop.f32.mrb[0].mxu0
        %720 = vdwg.mxu0
        %721 = vmatprep.subr.mxu0 0.0
        %v722 = vand.u32 %v567, 4294901760
        %v723 = vsub.f32 %v567, %v722
        %724 = vmatpush1.msra.mxu0 %v723
        %725 = vmatprep.subr.mxu0 0.0
        %726 = vmatpush1.msra.mxu0 0.0
        %727 = vmatprep.subr.mxu0 0.0
        %728 = vmatpush1.msra.mxu0 0.0
        %729 = vmatprep.subr.mxu0 0.0
        %730 = vmatpush1.msra.mxu0 0.0
        %731 = vmatprep.subr.mxu0 0.0
        %732 = vmatpush1.msra.mxu0 0.0
        %733 = vmatprep.subr.mxu0 0.0
        %734 = vmatpush1.msra.mxu0 0.0
        %735 = vmatprep.subr.mxu0 0.0
        %736 = vmatpush1.msra.mxu0 0.0
        %737 = vmatprep.subr.mxu0 0.0
        %738 = vmatpush1.msra.mxu0 0.0
        %739 = vmatprep.subr.mxu0 0.0
        %740 = vmatpush1.msra.mxu0 0.0
        %741 = vmatprep.subr.mxu0 0.0
        %742 = vmatpush1.msra.mxu0 0.0
        %743 = vmatprep.subr.mxu0 0.0
        %744 = vmatpush1.msra.mxu0 0.0
        %745 = vmatprep.subr.mxu0 0.0
        %746 = vmatpush1.msra.mxu0 0.0
        %747 = vmatprep.subr.mxu0 0.0
        %748 = vmatpush1.msra.mxu0 0.0
        %749 = vmatprep.subr.mxu0 0.0
        %750 = vmatpush1.msra.mxu0 0.0
        %751 = vmatprep.subr.mxu0 0.0
        %752 = vmatpush1.msra.mxu0 0.0
        %753 = vmatprep.subr.mxu0 0.0
        %754 = vmatpush1.msra.mxu0 0.0
        %755 = vmatprep.subr.mxu0 0.0
        %756 = vmatpush1.msra.mxu0 0.0
        %757 = vmatprep.subr.mxu0 0.0
        %758 = vmatpush1.msra.mxu0 0.0
        %759 = vmatprep.subr.mxu0 0.0
        %760 = vmatpush1.msra.mxu0 0.0
        %761 = vmatprep.subr.mxu0 0.0
        %762 = vmatpush1.msra.mxu0 0.0
        %763 = vmatprep.subr.mxu0 0.0
        %764 = vmatpush1.msra.mxu0 0.0
        %765 = vmatprep.subr.mxu0 0.0
        %766 = vmatpush1.msra.mxu0 0.0
        %767 = vmatprep.subr.mxu0 0.0
        %768 = vmatpush1.msra.mxu0 0.0
        %769 = vmatprep.subr.mxu0 0.0
        %770 = vmatpush1.msra.mxu0 0.0
        %771 = vmatprep.subr.mxu0 0.0
        %772 = vmatpush1.msra.mxu0 0.0
        %773 = vmatprep.subr.mxu0 0.0
        %774 = vmatpush1.msra.mxu0 0.0
        %775 = vmatprep.subr.mxu0 0.0
        %776 = vmatpush1.msra.mxu0 0.0
        %777 = vmatprep.subr.mxu0 0.0
        %778 = vmatpush1.msra.mxu0 0.0
        %779 = vmatprep.subr.mxu0 0.0
        %780 = vmatpush1.msra.mxu0 0.0
        %781 = vmatprep.subr.mxu0 0.0
        %782 = vmatpush1.msra.mxu0 0.0
        %783 = vmatprep.subr.mxu0 0.0
        %784 = vmatpush1.msra.mxu0 0.0
        %785 = vmatprep.subr.mxu0 0.0
        %786 = vmatpush1.msra.mxu0 0.0
        %787 = vmatprep.mubr.f32.mxu0 0.0
        %v788 = vand.u32 %v564, 4294901760
        %v789 = vsub.f32 %v564, %v788
        %790 = vmatmul.mubr.f32.gmra.mrb[0].mxu0 %v789
        %v791 = vpop.f32.mrb[0].mxu0
        %v792 = vadd.f32 %v718, %v791
        %v793 = vpop.f32.mrb[0].mxu0
        %794 = vdwg.mxu0
        %795 = vmatprep.subr.mxu0 0.0
        %v796 = vand.u32 %v567, 4294901760
        %797 = vmatpush1.msra.mxu0 %v796
        %798 = vmatprep.subr.mxu0 0.0
        %799 = vmatpush1.msra.mxu0 0.0
        %800 = vmatprep.subr.mxu0 0.0
        %801 = vmatpush1.msra.mxu0 0.0
        %802 = vmatprep.subr.mxu0 0.0
        %803 = vmatpush1.msra.mxu0 0.0
        %804 = vmatprep.subr.mxu0 0.0
        %805 = vmatpush1.msra.mxu0 0.0
        %806 = vmatprep.subr.mxu0 0.0
        %807 = vmatpush1.msra.mxu0 0.0
        %808 = vmatprep.subr.mxu0 0.0
        %809 = vmatpush1.msra.mxu0 0.0
        %810 = vmatprep.subr.mxu0 0.0
        %811 = vmatpush1.msra.mxu0 0.0
        %812 = vmatprep.subr.mxu0 0.0
        %813 = vmatpush1.msra.mxu0 0.0
        %814 = vmatprep.subr.mxu0 0.0
        %815 = vmatpush1.msra.mxu0 0.0
        %816 = vmatprep.subr.mxu0 0.0
        %817 = vmatpush1.msra.mxu0 0.0
        %818 = vmatprep.subr.mxu0 0.0
        %819 = vmatpush1.msra.mxu0 0.0
        %820 = vmatprep.subr.mxu0 0.0
        %821 = vmatpush1.msra.mxu0 0.0
        %822 = vmatprep.subr.mxu0 0.0
        %823 = vmatpush1.msra.mxu0 0.0
        %824 = vmatprep.subr.mxu0 0.0
        %825 = vmatpush1.msra.mxu0 0.0
        %826 = vmatprep.subr.mxu0 0.0
        %827 = vmatpush1.msra.mxu0 0.0
        %828 = vmatprep.subr.mxu0 0.0
        %829 = vmatpush1.msra.mxu0 0.0
        %830 = vmatprep.subr.mxu0 0.0
        %831 = vmatpush1.msra.mxu0 0.0
        %832 = vmatprep.subr.mxu0 0.0
        %833 = vmatpush1.msra.mxu0 0.0
        %834 = vmatprep.subr.mxu0 0.0
        %835 = vmatpush1.msra.mxu0 0.0
        %836 = vmatprep.subr.mxu0 0.0
        %837 = vmatpush1.msra.mxu0 0.0
        %838 = vmatprep.subr.mxu0 0.0
        %839 = vmatpush1.msra.mxu0 0.0
        %840 = vmatprep.subr.mxu0 0.0
        %841 = vmatpush1.msra.mxu0 0.0
        %842 = vmatprep.subr.mxu0 0.0
        %843 = vmatpush1.msra.mxu0 0.0
        %844 = vmatprep.subr.mxu0 0.0
        %845 = vmatpush1.msra.mxu0 0.0
        %846 = vmatprep.subr.mxu0 0.0
        %847 = vmatpush1.msra.mxu0 0.0
        %848 = vmatprep.subr.mxu0 0.0
        %849 = vmatpush1.msra.mxu0 0.0
        %850 = vmatprep.subr.mxu0 0.0
        %851 = vmatpush1.msra.mxu0 0.0
        %852 = vmatprep.subr.mxu0 0.0
        %853 = vmatpush1.msra.mxu0 0.0
        %854 = vmatprep.subr.mxu0 0.0
        %855 = vmatpush1.msra.mxu0 0.0
        %856 = vmatprep.subr.mxu0 0.0
        %857 = vmatpush1.msra.mxu0 0.0
        %858 = vmatprep.subr.mxu0 0.0
        %859 = vmatpush1.msra.mxu0 0.0
        %860 = vmatprep.mubr.f32.mxu0 0.0
        %v861 = vand.u32 %v564, 4294901760
        %v862 = vsub.f32 %v564, %v861
        %v863 = vand.u32 %v862, 4294901760
        %864 = vmatmul.mubr.f32.gmra.mrb[0].mxu0 %v863
        %v865 = vpop.f32.mrb[0].mxu0
        %v866 = vadd.f32 %v792, %v865
        %v867 = vpop.f32.mrb[0].mxu0
        %868 = vdwg.mxu0
        %869 = vmatprep.subr.mxu0 0.0
        %v870 = vand.u32 %v567, 4294901760
        %v871 = vsub.f32 %v567, %v870
        %v872 = vand.u32 %v871, 4294901760
        %873 = vmatpush1.msra.mxu0 %v872
        %874 = vmatprep.subr.mxu0 0.0
        %875 = vmatpush1.msra.mxu0 0.0
        %876 = vmatprep.subr.mxu0 0.0
        %877 = vmatpush1.msra.mxu0 0.0
        %878 = vmatprep.subr.mxu0 0.0
        %879 = vmatpush1.msra.mxu0 0.0
        %880 = vmatprep.subr.mxu0 0.0
        %881 = vmatpush1.msra.mxu0 0.0
        %882 = vmatprep.subr.mxu0 0.0
        %883 = vmatpush1.msra.mxu0 0.0
        %884 = vmatprep.subr.mxu0 0.0
        %885 = vmatpush1.msra.mxu0 0.0
        %886 = vmatprep.subr.mxu0 0.0
        %887 = vmatpush1.msra.mxu0 0.0
        %888 = vmatprep.subr.mxu0 0.0
        %889 = vmatpush1.msra.mxu0 0.0
        %890 = vmatprep.subr.mxu0 0.0
        %891 = vmatpush1.msra.mxu0 0.0
        %892 = vmatprep.subr.mxu0 0.0
        %893 = vmatpush1.msra.mxu0 0.0
        %894 = vmatprep.subr.mxu0 0.0
        %895 = vmatpush1.msra.mxu0 0.0
        %896 = vmatprep.subr.mxu0 0.0
        %897 = vmatpush1.msra.mxu0 0.0
        %898 = vmatprep.subr.mxu0 0.0
        %899 = vmatpush1.msra.mxu0 0.0
        %900 = vmatprep.subr.mxu0 0.0
        %901 = vmatpush1.msra.mxu0 0.0
        %902 = vmatprep.subr.mxu0 0.0
        %903 = vmatpush1.msra.mxu0 0.0
        %904 = vmatprep.subr.mxu0 0.0
        %905 = vmatpush1.msra.mxu0 0.0
        %906 = vmatprep.subr.mxu0 0.0
        %907 = vmatpush1.msra.mxu0 0.0
        %908 = vmatprep.subr.mxu0 0.0
        %909 = vmatpush1.msra.mxu0 0.0
        %910 = vmatprep.subr.mxu0 0.0
        %911 = vmatpush1.msra.mxu0 0.0
        %912 = vmatprep.subr.mxu0 0.0
        %913 = vmatpush1.msra.mxu0 0.0
        %914 = vmatprep.subr.mxu0 0.0
        %915 = vmatpush1.msra.mxu0 0.0
        %916 = vmatprep.subr.mxu0 0.0
        %917 = vmatpush1.msra.mxu0 0.0
        %918 = vmatprep.subr.mxu0 0.0
        %919 = vmatpush1.msra.mxu0 0.0
        %920 = vmatprep.subr.mxu0 0.0
        %921 = vmatpush1.msra.mxu0 0.0
        %922 = vmatprep.subr.mxu0 0.0
        %923 = vmatpush1.msra.mxu0 0.0
        %924 = vmatprep.subr.mxu0 0.0
        %925 = vmatpush1.msra.mxu0 0.0
        %926 = vmatprep.subr.mxu0 0.0
        %927 = vmatpush1.msra.mxu0 0.0
        %928 = vmatprep.subr.mxu0 0.0
        %929 = vmatpush1.msra.mxu0 0.0
        %930 = vmatprep.subr.mxu0 0.0
        %931 = vmatpush1.msra.mxu0 0.0
        %932 = vmatprep.subr.mxu0 0.0
        %933 = vmatpush1.msra.mxu0 0.0
        %934 = vmatprep.subr.mxu0 0.0
        %935 = vmatpush1.msra.mxu0 0.0
        %936 = vmatprep.mubr.f32.mxu0 0.0
        %v937 = vand.u32 %v564, 4294901760
        %938 = vmatmul.mubr.f32.gmra.mrb[0].mxu0 %v937
        %v939 = vpop.f32.mrb[0].mxu0
        %v940 = vadd.f32 %v866, %v939
        %v941 = vpop.f32.mrb[0].mxu0
        %942 = vdwg.mxu0
        %943 = vmatprep.subr.mxu0 0.0
        %v944 = vand.u32 %v567, 4294901760
        %945 = vmatpush1.msra.mxu0 %v944
        %946 = vmatprep.subr.mxu0 0.0
        %947 = vmatpush1.msra.mxu0 0.0
        %948 = vmatprep.subr.mxu0 0.0
        %949 = vmatpush1.msra.mxu0 0.0
        %950 = vmatprep.subr.mxu0 0.0
        %951 = vmatpush1.msra.mxu0 0.0
        %952 = vmatprep.subr.mxu0 0.0
        %953 = vmatpush1.msra.mxu0 0.0
        %954 = vmatprep.subr.mxu0 0.0
        %955 = vmatpush1.msra.mxu0 0.0
        %956 = vmatprep.subr.mxu0 0.0
        %957 = vmatpush1.msra.mxu0 0.0
        %958 = vmatprep.subr.mxu0 0.0
        %959 = vmatpush1.msra.mxu0 0.0
        %960 = vmatprep.subr.mxu0 0.0
        %961 = vmatpush1.msra.mxu0 0.0
        %962 = vmatprep.subr.mxu0 0.0
        %963 = vmatpush1.msra.mxu0 0.0
        %964 = vmatprep.subr.mxu0 0.0
        %965 = vmatpush1.msra.mxu0 0.0
        %966 = vmatprep.subr.mxu0 0.0
        %967 = vmatpush1.msra.mxu0 0.0
        %968 = vmatprep.subr.mxu0 0.0
        %969 = vmatpush1.msra.mxu0 0.0
        %970 = vmatprep.subr.mxu0 0.0
        %971 = vmatpush1.msra.mxu0 0.0
        %972 = vmatprep.subr.mxu0 0.0
        %973 = vmatpush1.msra.mxu0 0.0
        %974 = vmatprep.subr.mxu0 0.0
        %975 = vmatpush1.msra.mxu0 0.0
        %976 = vmatprep.subr.mxu0 0.0
        %977 = vmatpush1.msra.mxu0 0.0
        %978 = vmatprep.subr.mxu0 0.0
        %979 = vmatpush1.msra.mxu0 0.0
        %980 = vmatprep.subr.mxu0 0.0
        %981 = vmatpush1.msra.mxu0 0.0
        %982 = vmatprep.subr.mxu0 0.0
        %983 = vmatpush1.msra.mxu0 0.0
        %984 = vmatprep.subr.mxu0 0.0
        %985 = vmatpush1.msra.mxu0 0.0
        %986 = vmatprep.subr.mxu0 0.0
        %987 = vmatpush1.msra.mxu0 0.0
        %988 = vmatprep.subr.mxu0 0.0
        %989 = vmatpush1.msra.mxu0 0.0
        %990 = vmatprep.subr.mxu0 0.0
        %991 = vmatpush1.msra.mxu0 0.0
        %992 = vmatprep.subr.mxu0 0.0
        %993 = vmatpush1.msra.mxu0 0.0
        %994 = vmatprep.subr.mxu0 0.0
        %995 = vmatpush1.msra.mxu0 0.0
        %996 = vmatprep.subr.mxu0 0.0
        %997 = vmatpush1.msra.mxu0 0.0
        %998 = vmatprep.subr.mxu0 0.0
        %999 = vmatpush1.msra.mxu0 0.0
        %1000 = vmatprep.subr.mxu0 0.0
        %1001 = vmatpush1.msra.mxu0 0.0
        %1002 = vmatprep.subr.mxu0 0.0
        %1003 = vmatpush1.msra.mxu0 0.0
        %1004 = vmatprep.subr.mxu0 0.0
        %1005 = vmatpush1.msra.mxu0 0.0
        %1006 = vmatprep.subr.mxu0 0.0
        %1007 = vmatpush1.msra.mxu0 0.0
        %1008 = vmatprep.mubr.f32.mxu0 0.0
        %v1009 = vand.u32 %v564, 4294901760
        %1010 = vmatmul.mubr.f32.gmra.mrb[0].mxu0 %v1009
        %v1011 = vpop.f32.mrb[0].mxu0
        %v1012 = vadd.f32 %v940, %v1011
        %v1013 = vpop.f32.mrb[0].mxu0
        %1014 = vdwg.mxu0
        %v1016 = vsel %vm535, %v561, 0
        %1018 = vmatprep.subr.mxu0 0.0
        %v1019 = vand.u32 %v1016, 4294901760
        %1020 = vmatpush1.msra.mxu0 %v1019
        %1021 = vmatprep.subr.mxu0 0.0
        %1022 = vmatpush1.msra.mxu0 0.0
        %1023 = vmatprep.subr.mxu0 0.0
        %1024 = vmatpush1.msra.mxu0 0.0
        %1025 = vmatprep.subr.mxu0 0.0
        %1026 = vmatpush1.msra.mxu0 0.0
        %1027 = vmatprep.subr.mxu0 0.0
        %1028 = vmatpush1.msra.mxu0 0.0
        %1029 = vmatprep.subr.mxu0 0.0
        %1030 = vmatpush1.msra.mxu0 0.0
        %1031 = vmatprep.subr.mxu0 0.0
        %1032 = vmatpush1.msra.mxu0 0.0
        %1033 = vmatprep.subr.mxu0 0.0
        %1034 = vmatpush1.msra.mxu0 0.0
        %1035 = vmatprep.subr.mxu0 0.0
        %1036 = vmatpush1.msra.mxu0 0.0
        %1037 = vmatprep.subr.mxu0 0.0
        %1038 = vmatpush1.msra.mxu0 0.0
        %1039 = vmatprep.subr.mxu0 0.0
        %1040 = vmatpush1.msra.mxu0 0.0
        %1041 = vmatprep.subr.mxu0 0.0
        %1042 = vmatpush1.msra.mxu0 0.0
        %1043 = vmatprep.subr.mxu0 0.0
        %1044 = vmatpush1.msra.mxu0 0.0
        %1045 = vmatprep.subr.mxu0 0.0
        %1046 = vmatpush1.msra.mxu0 0.0
        %1047 = vmatprep.subr.mxu0 0.0
        %1048 = vmatpush1.msra.mxu0 0.0
        %1049 = vmatprep.subr.mxu0 0.0
        %1050 = vmatpush1.msra.mxu0 0.0
        %1051 = vmatprep.subr.mxu0 0.0
        %1052 = vmatpush1.msra.mxu0 0.0
        %1053 = vmatprep.subr.mxu0 0.0
        %1054 = vmatpush1.msra.mxu0 0.0
        %1055 = vmatprep.subr.mxu0 0.0
        %1056 = vmatpush1.msra.mxu0 0.0
        %1057 = vmatprep.subr.mxu0 0.0
        %1058 = vmatpush1.msra.mxu0 0.0
        %1059 = vmatprep.subr.mxu0 0.0
        %1060 = vmatpush1.msra.mxu0 0.0
        %1061 = vmatprep.subr.mxu0 0.0
        %1062 = vmatpush1.msra.mxu0 0.0
        %1063 = vmatprep.subr.mxu0 0.0
        %1064 = vmatpush1.msra.mxu0 0.0
        %1065 = vmatprep.subr.mxu0 0.0
        %1066 = vmatpush1.msra.mxu0 0.0
        %1067 = vmatprep.subr.mxu0 0.0
        %1068 = vmatpush1.msra.mxu0 0.0
        %1069 = vmatprep.subr.mxu0 0.0
        %1070 = vmatpush1.msra.mxu0 0.0
        %1071 = vmatprep.subr.mxu0 0.0
        %1072 = vmatpush1.msra.mxu0 0.0
        %1073 = vmatprep.subr.mxu0 0.0
        %1074 = vmatpush1.msra.mxu0 0.0
        %1075 = vmatprep.subr.mxu0 0.0
        %1076 = vmatpush1.msra.mxu0 0.0
        %1077 = vmatprep.subr.mxu0 0.0
        %1078 = vmatpush1.msra.mxu0 0.0
        %1079 = vmatprep.subr.mxu0 0.0
        %1080 = vmatpush1.msra.mxu0 0.0
        %1081 = vmatprep.subr.mxu0 0.0
        %1082 = vmatpush1.msra.mxu0 0.0
        %1083 = vmatprep.mubr.f32.mxu0 0.0
        %v1084 = vand.u32 %v564, 4294901760
        %v1085 = vsub.f32 %v564, %v1084
        %v1086 = vand.u32 %v1085, 4294901760
        %v1087 = vsub.f32 %v1085, %v1086
        %v1088 = vand.u32 %v1087, 4294901760
        %1089 = vmatmul.mubr.f32.gmra.mrb[0].mxu0 %v1088
        %v1090 = vpop.f32.mrb[0].mxu0
        %v1091 = vadd.f32 0.0, %v1090
        %v1092 = vpop.f32.mrb[0].mxu0
        %1093 = vdwg.mxu0
        %1094 = vmatprep.subr.mxu0 0.0
        %v1095 = vand.u32 %v1016, 4294901760
        %v1096 = vsub.f32 %v1016, %v1095
        %v1097 = vand.u32 %v1096, 4294901760
        %v1098 = vsub.f32 %v1096, %v1097
        %v1099 = vand.u32 %v1098, 4294901760
        %1100 = vmatpush1.msra.mxu0 %v1099
        %1101 = vmatprep.subr.mxu0 0.0
        %1102 = vmatpush1.msra.mxu0 0.0
        %1103 = vmatprep.subr.mxu0 0.0
        %1104 = vmatpush1.msra.mxu0 0.0
        %1105 = vmatprep.subr.mxu0 0.0
        %1106 = vmatpush1.msra.mxu0 0.0
        %1107 = vmatprep.subr.mxu0 0.0
        %1108 = vmatpush1.msra.mxu0 0.0
        %1109 = vmatprep.subr.mxu0 0.0
        %1110 = vmatpush1.msra.mxu0 0.0
        %1111 = vmatprep.subr.mxu0 0.0
        %1112 = vmatpush1.msra.mxu0 0.0
        %1113 = vmatprep.subr.mxu0 0.0
        %1114 = vmatpush1.msra.mxu0 0.0
        %1115 = vmatprep.subr.mxu0 0.0
        %1116 = vmatpush1.msra.mxu0 0.0
        %1117 = vmatprep.subr.mxu0 0.0
        %1118 = vmatpush1.msra.mxu0 0.0
        %1119 = vmatprep.subr.mxu0 0.0
        %1120 = vmatpush1.msra.mxu0 0.0
        %1121 = vmatprep.subr.mxu0 0.0
        %1122 = vmatpush1.msra.mxu0 0.0
        %1123 = vmatprep.subr.mxu0 0.0
        %1124 = vmatpush1.msra.mxu0 0.0
        %1125 = vmatprep.subr.mxu0 0.0
        %1126 = vmatpush1.msra.mxu0 0.0
        %1127 = vmatprep.subr.mxu0 0.0
        %1128 = vmatpush1.msra.mxu0 0.0
        %1129 = vmatprep.subr.mxu0 0.0
        %1130 = vmatpush1.msra.mxu0 0.0
        %1131 = vmatprep.subr.mxu0 0.0
        %1132 = vmatpush1.msra.mxu0 0.0
        %1133 = vmatprep.subr.mxu0 0.0
        %1134 = vmatpush1.msra.mxu0 0.0
        %1135 = vmatprep.subr.mxu0 0.0
        %1136 = vmatpush1.msra.mxu0 0.0
        %1137 = vmatprep.subr.mxu0 0.0
        %1138 = vmatpush1.msra.mxu0 0.0
        %1139 = vmatprep.subr.mxu0 0.0
        %1140 = vmatpush1.msra.mxu0 0.0
        %1141 = vmatprep.subr.mxu0 0.0
        %1142 = vmatpush1.msra.mxu0 0.0
        %1143 = vmatprep.subr.mxu0 0.0
        %1144 = vmatpush1.msra.mxu0 0.0
        %1145 = vmatprep.subr.mxu0 0.0
        %1146 = vmatpush1.msra.mxu0 0.0
        %1147 = vmatprep.subr.mxu0 0.0
        %1148 = vmatpush1.msra.mxu0 0.0
        %1149 = vmatprep.subr.mxu0 0.0
        %1150 = vmatpush1.msra.mxu0 0.0
        %1151 = vmatprep.subr.mxu0 0.0
        %1152 = vmatpush1.msra.mxu0 0.0
        %1153 = vmatprep.subr.mxu0 0.0
        %1154 = vmatpush1.msra.mxu0 0.0
        %1155 = vmatprep.subr.mxu0 0.0
        %1156 = vmatpush1.msra.mxu0 0.0
        %1157 = vmatprep.subr.mxu0 0.0
        %1158 = vmatpush1.msra.mxu0 0.0
        %1159 = vmatprep.subr.mxu0 0.0
        %1160 = vmatpush1.msra.mxu0 0.0
        %1161 = vmatprep.subr.mxu0 0.0
        %1162 = vmatpush1.msra.mxu0 0.0
        %1163 = vmatprep.mubr.f32.mxu0 0.0
        %v1164 = vand.u32 %v564, 4294901760
        %1165 = vmatmul.mubr.f32.gmra.mrb[0].mxu0 %v1164
        %v1166 = vpop.f32.mrb[0].mxu0
        %v1167 = vadd.f32 %v1091, %v1166
        %v1168 = vpop.f32.mrb[0].mxu0
        %1169 = vdwg.mxu0
        %1170 = vmatprep.subr.mxu0 0.0
        %v1171 = vand.u32 %v1016, 4294901760
        %v1172 = vsub.f32 %v1016, %v1171
        %1173 = vmatpush1.msra.mxu0 %v1172
        %1174 = vmatprep.subr.mxu0 0.0
        %1175 = vmatpush1.msra.mxu0 0.0
        %1176 = vmatprep.subr.mxu0 0.0
        %1177 = vmatpush1.msra.mxu0 0.0
        %1178 = vmatprep.subr.mxu0 0.0
        %1179 = vmatpush1.msra.mxu0 0.0
        %1180 = vmatprep.subr.mxu0 0.0
        %1181 = vmatpush1.msra.mxu0 0.0
        %1182 = vmatprep.subr.mxu0 0.0
        %1183 = vmatpush1.msra.mxu0 0.0
        %1184 = vmatprep.subr.mxu0 0.0
        %1185 = vmatpush1.msra.mxu0 0.0
        %1186 = vmatprep.subr.mxu0 0.0
        %1187 = vmatpush1.msra.mxu0 0.0
        %1188 = vmatprep.subr.mxu0 0.0
        %1189 = vmatpush1.msra.mxu0 0.0
        %1190 = vmatprep.subr.mxu0 0.0
        %1191 = vmatpush1.msra.mxu0 0.0
        %1192 = vmatprep.subr.mxu0 0.0
        %1193 = vmatpush1.msra.mxu0 0.0
        %1194 = vmatprep.subr.mxu0 0.0
        %1195 = vmatpush1.msra.mxu0 0.0
        %1196 = vmatprep.subr.mxu0 0.0
        %1197 = vmatpush1.msra.mxu0 0.0
        %1198 = vmatprep.subr.mxu0 0.0
        %1199 = vmatpush1.msra.mxu0 0.0
        %1200 = vmatprep.subr.mxu0 0.0
        %1201 = vmatpush1.msra.mxu0 0.0
        %1202 = vmatprep.subr.mxu0 0.0
        %1203 = vmatpush1.msra.mxu0 0.0
        %1204 = vmatprep.subr.mxu0 0.0
        %1205 = vmatpush1.msra.mxu0 0.0
        %1206 = vmatprep.subr.mxu0 0.0
        %1207 = vmatpush1.msra.mxu0 0.0
        %1208 = vmatprep.subr.mxu0 0.0
        %1209 = vmatpush1.msra.mxu0 0.0
        %1210 = vmatprep.subr.mxu0 0.0
        %1211 = vmatpush1.msra.mxu0 0.0
        %1212 = vmatprep.subr.mxu0 0.0
        %1213 = vmatpush1.msra.mxu0 0.0
        %1214 = vmatprep.subr.mxu0 0.0
        %1215 = vmatpush1.msra.mxu0 0.0
        %1216 = vmatprep.subr.mxu0 0.0
        %1217 = vmatpush1.msra.mxu0 0.0
        %1218 = vmatprep.subr.mxu0 0.0
        %1219 = vmatpush1.msra.mxu0 0.0
        %1220 = vmatprep.subr.mxu0 0.0
        %1221 = vmatpush1.msra.mxu0 0.0
        %1222 = vmatprep.subr.mxu0 0.0
        %1223 = vmatpush1.msra.mxu0 0.0
        %1224 = vmatprep.subr.mxu0 0.0
        %1225 = vmatpush1.msra.mxu0 0.0
        %1226 = vmatprep.subr.mxu0 0.0
        %1227 = vmatpush1.msra.mxu0 0.0
        %1228 = vmatprep.subr.mxu0 0.0
        %1229 = vmatpush1.msra.mxu0 0.0
        %1230 = vmatprep.subr.mxu0 0.0
        %1231 = vmatpush1.msra.mxu0 0.0
        %1232 = vmatprep.subr.mxu0 0.0
        %1233 = vmatpush1.msra.mxu0 0.0
        %1234 = vmatprep.subr.mxu0 0.0
        %1235 = vmatpush1.msra.mxu0 0.0
        %1236 = vmatprep.mubr.f32.mxu0 0.0
        %v1237 = vand.u32 %v564, 4294901760
        %v1238 = vsub.f32 %v564, %v1237
        %1239 = vmatmul.mubr.f32.gmra.mrb[0].mxu0 %v1238
        %v1240 = vpop.f32.mrb[0].mxu0
        %v1241 = vadd.f32 %v1167, %v1240
        %v1242 = vpop.f32.mrb[0].mxu0
        %1243 = vdwg.mxu0
        %1244 = vmatprep.subr.mxu0 0.0
        %v1245 = vand.u32 %v1016, 4294901760
        %1246 = vmatpush1.msra.mxu0 %v1245
        %1247 = vmatprep.subr.mxu0 0.0
        %1248 = vmatpush1.msra.mxu0 0.0
        %1249 = vmatprep.subr.mxu0 0.0
        %1250 = vmatpush1.msra.mxu0 0.0
        %1251 = vmatprep.subr.mxu0 0.0
        %1252 = vmatpush1.msra.mxu0 0.0
        %1253 = vmatprep.subr.mxu0 0.0
        %1254 = vmatpush1.msra.mxu0 0.0
        %1255 = vmatprep.subr.mxu0 0.0
        %1256 = vmatpush1.msra.mxu0 0.0
        %1257 = vmatprep.subr.mxu0 0.0
        %1258 = vmatpush1.msra.mxu0 0.0
        %1259 = vmatprep.subr.mxu0 0.0
        %1260 = vmatpush1.msra.mxu0 0.0
        %1261 = vmatprep.subr.mxu0 0.0
        %1262 = vmatpush1.msra.mxu0 0.0
        %1263 = vmatprep.subr.mxu0 0.0
        %1264 = vmatpush1.msra.mxu0 0.0
        %1265 = vmatprep.subr.mxu0 0.0
        %1266 = vmatpush1.msra.mxu0 0.0
        %1267 = vmatprep.subr.mxu0 0.0
        %1268 = vmatpush1.msra.mxu0 0.0
        %1269 = vmatprep.subr.mxu0 0.0
        %1270 = vmatpush1.msra.mxu0 0.0
        %1271 = vmatprep.subr.mxu0 0.0
        %1272 = vmatpush1.msra.mxu0 0.0
        %1273 = vmatprep.subr.mxu0 0.0
        %1274 = vmatpush1.msra.mxu0 0.0
        %1275 = vmatprep.subr.mxu0 0.0
        %1276 = vmatpush1.msra.mxu0 0.0
        %1277 = vmatprep.subr.mxu0 0.0
        %1278 = vmatpush1.msra.mxu0 0.0
        %1279 = vmatprep.subr.mxu0 0.0
        %1280 = vmatpush1.msra.mxu0 0.0
        %1281 = vmatprep.subr.mxu0 0.0
        %1282 = vmatpush1.msra.mxu0 0.0
        %1283 = vmatprep.subr.mxu0 0.0
        %1284 = vmatpush1.msra.mxu0 0.0
        %1285 = vmatprep.subr.mxu0 0.0
        %1286 = vmatpush1.msra.mxu0 0.0
        %1287 = vmatprep.subr.mxu0 0.0
        %1288 = vmatpush1.msra.mxu0 0.0
        %1289 = vmatprep.subr.mxu0 0.0
        %1290 = vmatpush1.msra.mxu0 0.0
        %1291 = vmatprep.subr.mxu0 0.0
        %1292 = vmatpush1.msra.mxu0 0.0
        %1293 = vmatprep.subr.mxu0 0.0
        %1294 = vmatpush1.msra.mxu0 0.0
        %1295 = vmatprep.subr.mxu0 0.0
        %1296 = vmatpush1.msra.mxu0 0.0
        %1297 = vmatprep.subr.mxu0 0.0
        %1298 = vmatpush1.msra.mxu0 0.0
        %1299 = vmatprep.subr.mxu0 0.0
        %1300 = vmatpush1.msra.mxu0 0.0
        %1301 = vmatprep.subr.mxu0 0.0
        %1302 = vmatpush1.msra.mxu0 0.0
        %1303 = vmatprep.subr.mxu0 0.0
        %1304 = vmatpush1.msra.mxu0 0.0
        %1305 = vmatprep.subr.mxu0 0.0
        %1306 = vmatpush1.msra.mxu0 0.0
        %1307 = vmatprep.subr.mxu0 0.0
        %1308 = vmatpush1.msra.mxu0 0.0
        %1309 = vmatprep.mubr.f32.mxu0 0.0
        %v1310 = vand.u32 %v564, 4294901760
        %v1311 = vsub.f32 %v564, %v1310
        %v1312 = vand.u32 %v1311, 4294901760
        %1313 = vmatmul.mubr.f32.gmra.mrb[0].mxu0 %v1312
        %v1314 = vpop.f32.mrb[0].mxu0
        %v1315 = vadd.f32 %v1241, %v1314
        %v1316 = vpop.f32.mrb[0].mxu0
        %1317 = vdwg.mxu0
        %1318 = vmatprep.subr.mxu0 0.0
        %v1319 = vand.u32 %v1016, 4294901760
        %v1320 = vsub.f32 %v1016, %v1319
        %v1321 = vand.u32 %v1320, 4294901760
        %1322 = vmatpush1.msra.mxu0 %v1321
        %1323 = vmatprep.subr.mxu0 0.0
        %1324 = vmatpush1.msra.mxu0 0.0
        %1325 = vmatprep.subr.mxu0 0.0
        %1326 = vmatpush1.msra.mxu0 0.0
        %1327 = vmatprep.subr.mxu0 0.0
        %1328 = vmatpush1.msra.mxu0 0.0
        %1329 = vmatprep.subr.mxu0 0.0
        %1330 = vmatpush1.msra.mxu0 0.0
        %1331 = vmatprep.subr.mxu0 0.0
        %1332 = vmatpush1.msra.mxu0 0.0
        %1333 = vmatprep.subr.mxu0 0.0
        %1334 = vmatpush1.msra.mxu0 0.0
        %1335 = vmatprep.subr.mxu0 0.0
        %1336 = vmatpush1.msra.mxu0 0.0
        %1337 = vmatprep.subr.mxu0 0.0
        %1338 = vmatpush1.msra.mxu0 0.0
        %1339 = vmatprep.subr.mxu0 0.0
        %1340 = vmatpush1.msra.mxu0 0.0
        %1341 = vmatprep.subr.mxu0 0.0
        %1342 = vmatpush1.msra.mxu0 0.0
        %1343 = vmatprep.subr.mxu0 0.0
        %1344 = vmatpush1.msra.mxu0 0.0
        %1345 = vmatprep.subr.mxu0 0.0
        %1346 = vmatpush1.msra.mxu0 0.0
        %1347 = vmatprep.subr.mxu0 0.0
        %1348 = vmatpush1.msra.mxu0 0.0
        %1349 = vmatprep.subr.mxu0 0.0
        %1350 = vmatpush1.msra.mxu0 0.0
        %1351 = vmatprep.subr.mxu0 0.0
        %1352 = vmatpush1.msra.mxu0 0.0
        %1353 = vmatprep.subr.mxu0 0.0
        %1354 = vmatpush1.msra.mxu0 0.0
        %1355 = vmatprep.subr.mxu0 0.0
        %1356 = vmatpush1.msra.mxu0 0.0
        %1357 = vmatprep.subr.mxu0 0.0
        %1358 = vmatpush1.msra.mxu0 0.0
        %1359 = vmatprep.subr.mxu0 0.0
        %1360 = vmatpush1.msra.mxu0 0.0
        %1361 = vmatprep.subr.mxu0 0.0
        %1362 = vmatpush1.msra.mxu0 0.0
        %1363 = vmatprep.subr.mxu0 0.0
        %1364 = vmatpush1.msra.mxu0 0.0
        %1365 = vmatprep.subr.mxu0 0.0
        %1366 = vmatpush1.msra.mxu0 0.0
        %1367 = vmatprep.subr.mxu0 0.0
        %1368 = vmatpush1.msra.mxu0 0.0
        %1369 = vmatprep.subr.mxu0 0.0
        %1370 = vmatpush1.msra.mxu0 0.0
        %1371 = vmatprep.subr.mxu0 0.0
        %1372 = vmatpush1.msra.mxu0 0.0
        %1373 = vmatprep.subr.mxu0 0.0
        %1374 = vmatpush1.msra.mxu0 0.0
        %1375 = vmatprep.subr.mxu0 0.0
        %1376 = vmatpush1.msra.mxu0 0.0
        %1377 = vmatprep.subr.mxu0 0.0
        %1378 = vmatpush1.msra.mxu0 0.0
        %1379 = vmatprep.subr.mxu0 0.0
        %1380 = vmatpush1.msra.mxu0 0.0
        %1381 = vmatprep.subr.mxu0 0.0
        %1382 = vmatpush1.msra.mxu0 0.0
        %1383 = vmatprep.subr.mxu0 0.0
        %1384 = vmatpush1.msra.mxu0 0.0
        %1385 = vmatprep.mubr.f32.mxu0 0.0
        %v1386 = vand.u32 %v564, 4294901760
        %1387 = vmatmul.mubr.f32.gmra.mrb[0].mxu0 %v1386
        %v1388 = vpop.f32.mrb[0].mxu0
        %v1389 = vadd.f32 %v1315, %v1388
        %v1390 = vpop.f32.mrb[0].mxu0
        %1391 = vdwg.mxu0
        %1392 = vmatprep.subr.mxu0 0.0
        %v1393 = vand.u32 %v1016, 4294901760
        %1394 = vmatpush1.msra.mxu0 %v1393
        %1395 = vmatprep.subr.mxu0 0.0
        %1396 = vmatpush1.msra.mxu0 0.0
        %1397 = vmatprep.subr.mxu0 0.0
        %1398 = vmatpush1.msra.mxu0 0.0
        %1399 = vmatprep.subr.mxu0 0.0
        %1400 = vmatpush1.msra.mxu0 0.0
        %1401 = vmatprep.subr.mxu0 0.0
        %1402 = vmatpush1.msra.mxu0 0.0
        %1403 = vmatprep.subr.mxu0 0.0
        %1404 = vmatpush1.msra.mxu0 0.0
        %1405 = vmatprep.subr.mxu0 0.0
        %1406 = vmatpush1.msra.mxu0 0.0
        %1407 = vmatprep.subr.mxu0 0.0
        %1408 = vmatpush1.msra.mxu0 0.0
        %1409 = vmatprep.subr.mxu0 0.0
        %1410 = vmatpush1.msra.mxu0 0.0
        %1411 = vmatprep.subr.mxu0 0.0
        %1412 = vmatpush1.msra.mxu0 0.0
        %1413 = vmatprep.subr.mxu0 0.0
        %1414 = vmatpush1.msra.mxu0 0.0
        %1415 = vmatprep.subr.mxu0 0.0
        %1416 = vmatpush1.msra.mxu0 0.0
        %1417 = vmatprep.subr.mxu0 0.0
        %1418 = vmatpush1.msra.mxu0 0.0
        %1419 = vmatprep.subr.mxu0 0.0
        %1420 = vmatpush1.msra.mxu0 0.0
        %1421 = vmatprep.subr.mxu0 0.0
        %1422 = vmatpush1.msra.mxu0 0.0
        %1423 = vmatprep.subr.mxu0 0.0
        %1424 = vmatpush1.msra.mxu0 0.0
        %1425 = vmatprep.subr.mxu0 0.0
        %1426 = vmatpush1.msra.mxu0 0.0
        %1427 = vmatprep.subr.mxu0 0.0
        %1428 = vmatpush1.msra.mxu0 0.0
        %1429 = vmatprep.subr.mxu0 0.0
        %1430 = vmatpush1.msra.mxu0 0.0
        %1431 = vmatprep.subr.mxu0 0.0
        %1432 = vmatpush1.msra.mxu0 0.0
        %1433 = vmatprep.subr.mxu0 0.0
        %1434 = vmatpush1.msra.mxu0 0.0
        %1435 = vmatprep.subr.mxu0 0.0
        %1436 = vmatpush1.msra.mxu0 0.0
        %1437 = vmatprep.subr.mxu0 0.0
        %1438 = vmatpush1.msra.mxu0 0.0
        %1439 = vmatprep.subr.mxu0 0.0
        %1440 = vmatpush1.msra.mxu0 0.0
        %1441 = vmatprep.subr.mxu0 0.0
        %1442 = vmatpush1.msra.mxu0 0.0
        %1443 = vmatprep.subr.mxu0 0.0
        %1444 = vmatpush1.msra.mxu0 0.0
        %1445 = vmatprep.subr.mxu0 0.0
        %1446 = vmatpush1.msra.mxu0 0.0
        %1447 = vmatprep.subr.mxu0 0.0
        %1448 = vmatpush1.msra.mxu0 0.0
        %1449 = vmatprep.subr.mxu0 0.0
        %1450 = vmatpush1.msra.mxu0 0.0
        %1451 = vmatprep.subr.mxu0 0.0
        %1452 = vmatpush1.msra.mxu0 0.0
        %1453 = vmatprep.subr.mxu0 0.0
        %1454 = vmatpush1.msra.mxu0 0.0
        %1455 = vmatprep.subr.mxu0 0.0
        %1456 = vmatpush1.msra.mxu0 0.0
        %1457 = vmatprep.mubr.f32.mxu0 0.0
        %v1458 = vand.u32 %v564, 4294901760
        %1459 = vmatmul.mubr.f32.gmra.mrb[0].mxu0 %v1458
        %v1460 = vpop.f32.mrb[0].mxu0
        %v1461 = vadd.f32 %v1389, %v1460
        %v1462 = vpop.f32.mrb[0].mxu0
        %1463 = vdwg.mxu0
        %v1464 = vmul.f32 %v1012, %v1012
        %v1465 = vsub.f32 %v1461, %v1464
        %v1466 = vmax.f32 %v1465, 0.0
        %v1467 = vadd.f32 %v1466, 1e-05
        %v1468 = vrsqrt.pop %v1467
        %v1469 = vmul.f32 %v1468, %v527
        %v1470 = vmul.f32 %v1012, %v1469
        %v1471 = vsub.f32 %v528, %v1470
        %1473 = vset.pattern.permute.xlu0 0
        %1474 = vperm.xlu0 %1473, %v1469
        %v1475 = vpop.permute.xlu0 %1474
        %v1477 = vunpack.c.l.s4 839922192
        %v1478 = vunpack.c.0.s8 %v1477
        %v1479 = vlaneseq
        %v1480 = vshrl.u32 %v1479, 7
        %v1481 = vsub.s32 %v1478, %v1480
        %v1482 = vrot.slane %v1475, %v1481
        %v1484 = vmul.f32 %v488, %v1482
        %v1485 = vmul.f32 %v489, %v1482
        %1487 = vset.pattern.permute.xlu0 0
        %1488 = vperm.xlu0 %1487, %v1471
        %v1489 = vpop.permute.xlu0 %1488
        %v1491 = vunpack.c.l.s4 839922192
        %v1492 = vunpack.c.0.s8 %v1491
        %v1493 = vlaneseq
        %v1494 = vshrl.u32 %v1493, 7
        %v1495 = vsub.s32 %v1492, %v1494
        %v1496 = vrot.slane %v1489, %v1495
        %v1498 = vadd.f32 %v1484, %v1496
        %v1499 = vadd.f32 %v1485, %v1496
        %v1500 = vxor.u32 %v1498, 2147483648
        %v1501 = vxor.u32 %v1499, 2147483648
        %v1502 = vmul.f32 %v1500, 1.442695
        %v1503 = vpow.pop %v1502
        %v1504 = vmul.f32 %v1501, 1.442695
        %v1505 = vpow.pop %v1504
        %v1506 = vadd.f32 %v1503, 1.0
        %v1507 = vadd.f32 %v1505, 1.0
        %v1508 = vrcp.pop %v1506
        %v1509 = vmul.f32 1.0, %v1508
        %v1510 = vrcp.pop %v1507
        %v1511 = vmul.f32 1.0, %v1510
        %v1512 = vmul.f32 %v1498, %v1509
        %v1513 = vmul.f32 %v1499, %v1511
        %v1514 = vld [vmem:[%s4] sm:$0xf]
        %v1517 = vcombine.high %v1512, %v1512
        %v1518 = vcombine.high %v1513, %v1513
        %1521 = vrot.lane.b32.xlu0 %v1512, 9
        %v1522 = vpop.permute.xlu0 %1521
        %1523 = vrot.lane.b32.xlu0 %v1517, 9
        %v1524 = vpop.permute.xlu0 %1523
        %1525 = vrot.lane.b32.xlu0 %v1513, 9
        %v1526 = vpop.permute.xlu0 %1525
        %1527 = vrot.lane.b32.xlu0 %v1518, 9
        %v1528 = vpop.permute.xlu0 %1527
        %v1529 = vlaneseq
        %v1530 = vand.u32 %v1529, 127
        %vm1531 = vcmp.lt.s32.totalorder %v1530, 9
        %v1532 = vsel %vm1531, %v1526, %v1528
        %v1533 = vsel %vm1531, %v1524, %v1526
        %v1534 = vsel %vm1531, %v1522, %v1524
        %v1535 = vsel %vm1531, %v1528, %v1522
        %v1536 = vld [vmem:[%s10] ss:$8 sm:$0xf]
        %v1538 = vlaneseq
        %v1539 = vshrl.u32 %v1538, 7
        %v1540 = vsub.s32 0, %v1539
        %v1541 = vrot.slane %v1536, %v1540
        %v1542 = vlaneseq
        %v1543 = vshrl.u32 %v1542, 7
        %v1544 = vsub.s32 1, %v1543
        %v1545 = vrot.slane %v1536, %v1544
        %v1546 = vlaneseq
        %v1547 = vshrl.u32 %v1546, 7
        %v1548 = vsub.s32 2, %v1547
        %v1549 = vrot.slane %v1536, %v1548
        %v1550 = vlaneseq
        %v1551 = vshrl.u32 %v1550, 7
        %v1552 = vsub.s32 3, %v1551
        %v1553 = vrot.slane %v1536, %v1552
        %v1558 = vmul.f32 %v1535, %v1541
        %v1559 = vmul.f32 %v1534, %v1545
        %v1560 = vmul.f32 %v1533, %v1549
        %v1561 = vmul.f32 %v1532, %v1553
        %1562 = vst [vmem:[#allocation2] sm:$0xf] %v1558
        %1563 = vst [vmem:[#allocation2 + $0x8] sm:$0xf] %v1559
        %1564 = vst [vmem:[#allocation2 + $0x10] sm:$0xf] %v1560
        %1565 = vst [vmem:[#allocation2 + $0x18] sm:$0xf] %v1561
        %1566 = vrot.lane.b32.xlu0 %v1512, 8
        %v1567 = vpop.permute.xlu0 %1566
        %1568 = vrot.lane.b32.xlu0 %v1517, 8
        %v1569 = vpop.permute.xlu0 %1568
        %1570 = vrot.lane.b32.xlu0 %v1513, 8
        %v1571 = vpop.permute.xlu0 %1570
        %1572 = vrot.lane.b32.xlu0 %v1518, 8
        %v1573 = vpop.permute.xlu0 %1572
        %vm1574 = vcmp.lt.s32.totalorder %v1530, 8
        %v1575 = vsel %vm1574, %v1571, %v1573
        %v1576 = vsel %vm1574, %v1569, %v1571
        %v1577 = vsel %vm1574, %v1567, %v1569
        %v1578 = vsel %vm1574, %v1573, %v1567
        %s1579 = scalar_lea.vmem %s10, 1
        %v1580 = vld [vmem:[%s1579] ss:$8 sm:$0xf]
        %v1582 = vlaneseq
        %v1583 = vshrl.u32 %v1582, 7
        %v1584 = vsub.s32 0, %v1583
        %v1585 = vrot.slane %v1580, %v1584
        %v1586 = vlaneseq
        %v1587 = vshrl.u32 %v1586, 7
        %v1588 = vsub.s32 1, %v1587
        %v1589 = vrot.slane %v1580, %v1588
        %v1590 = vlaneseq
        %v1591 = vshrl.u32 %v1590, 7
        %v1592 = vsub.s32 2, %v1591
        %v1593 = vrot.slane %v1580, %v1592
        %v1594 = vlaneseq
        %v1595 = vshrl.u32 %v1594, 7
        %v1596 = vsub.s32 3, %v1595
        %v1597 = vrot.slane %v1580, %v1596
        %v1602 = vmul.f32 %v1578, %v1585
        %v1603 = vmul.f32 %v1577, %v1589
        %v1604 = vmul.f32 %v1576, %v1593
        %v1605 = vmul.f32 %v1575, %v1597
        %1606 = vst [vmem:[#allocation2 + $0x20] sm:$0xf] %v1602
        %1607 = vst [vmem:[#allocation2 + $0x28] sm:$0xf] %v1603
        %1608 = vst [vmem:[#allocation2 + $0x30] sm:$0xf] %v1604
        %1609 = vst [vmem:[#allocation2 + $0x38] sm:$0xf] %v1605
        %1610 = vrot.lane.b32.xlu0 %v1512, 7
        %v1611 = vpop.permute.xlu0 %1610
        %1612 = vrot.lane.b32.xlu0 %v1517, 7
        %v1613 = vpop.permute.xlu0 %1612
        %1614 = vrot.lane.b32.xlu0 %v1513, 7
        %v1615 = vpop.permute.xlu0 %1614
        %1616 = vrot.lane.b32.xlu0 %v1518, 7
        %v1617 = vpop.permute.xlu0 %1616
        %vm1618 = vcmp.lt.s32.totalorder %v1530, 7
        %v1619 = vsel %vm1618, %v1615, %v1617
        %v1620 = vsel %vm1618, %v1613, %v1615
        %v1621 = vsel %vm1618, %v1611, %v1613
        %v1622 = vsel %vm1618, %v1617, %v1611
        %s1623 = scalar_lea.vmem %s10, 2
        %v1624 = vld [vmem:[%s1623] ss:$8 sm:$0xf]
        %v1626 = vlaneseq
        %v1627 = vshrl.u32 %v1626, 7
        %v1628 = vsub.s32 0, %v1627
        %v1629 = vrot.slane %v1624, %v1628
        %v1630 = vlaneseq
        %v1631 = vshrl.u32 %v1630, 7
        %v1632 = vsub.s32 1, %v1631
        %v1633 = vrot.slane %v1624, %v1632
        %v1634 = vlaneseq
        %v1635 = vshrl.u32 %v1634, 7
        %v1636 = vsub.s32 2, %v1635
        %v1637 = vrot.slane %v1624, %v1636
        %v1638 = vlaneseq
        %v1639 = vshrl.u32 %v1638, 7
        %v1640 = vsub.s32 3, %v1639
        %v1641 = vrot.slane %v1624, %v1640
        %v1646 = vmul.f32 %v1622, %v1629
        %v1647 = vmul.f32 %v1621, %v1633
        %v1648 = vmul.f32 %v1620, %v1637
        %v1649 = vmul.f32 %v1619, %v1641
        %1650 = vst [vmem:[#allocation2 + $0x40] sm:$0xf] %v1646
        %1651 = vst [vmem:[#allocation2 + $0x48] sm:$0xf] %v1647
        %1652 = vst [vmem:[#allocation2 + $0x50] sm:$0xf] %v1648
        %1653 = vst [vmem:[#allocation2 + $0x58] sm:$0xf] %v1649
        %1654 = vrot.lane.b32.xlu0 %v1512, 1
        %v1655 = vpop.permute.xlu0 %1654
        %1656 = vrot.lane.b32.xlu0 %v1517, 1
        %v1657 = vpop.permute.xlu0 %1656
        %1658 = vrot.lane.b32.xlu0 %v1513, 1
        %v1659 = vpop.permute.xlu0 %1658
        %1660 = vrot.lane.b32.xlu0 %v1518, 1
        %v1661 = vpop.permute.xlu0 %1660
        %vm1662 = vcmp.lt.s32.totalorder %v1530, 1
        %v1663 = vsel %vm1662, %v1659, %v1661
        %v1664 = vsel %vm1662, %v1657, %v1659
        %v1665 = vsel %vm1662, %v1655, %v1657
        %v1666 = vsel %vm1662, %v1661, %v1655
        %s1667 = scalar_lea.vmem %s10, 3
        %v1668 = vld [vmem:[%s1667] ss:$8 sm:$0xf]
        %v1670 = vlaneseq
        %v1671 = vshrl.u32 %v1670, 7
        %v1672 = vsub.s32 0, %v1671
        %v1673 = vrot.slane %v1668, %v1672
        %v1674 = vlaneseq
        %v1675 = vshrl.u32 %v1674, 7
        %v1676 = vsub.s32 1, %v1675
        %v1677 = vrot.slane %v1668, %v1676
        %v1678 = vlaneseq
        %v1679 = vshrl.u32 %v1678, 7
        %v1680 = vsub.s32 2, %v1679
        %v1681 = vrot.slane %v1668, %v1680
        %v1682 = vlaneseq
        %v1683 = vshrl.u32 %v1682, 7
        %v1684 = vsub.s32 3, %v1683
        %v1685 = vrot.slane %v1668, %v1684
        %v1690 = vmul.f32 %v1666, %v1673
        %v1691 = vmul.f32 %v1665, %v1677
        %v1692 = vmul.f32 %v1664, %v1681
        %v1693 = vmul.f32 %v1663, %v1685
        %1694 = vst [vmem:[#allocation2 + $0x60] sm:$0xf] %v1690
        %1695 = vst [vmem:[#allocation2 + $0x68] sm:$0xf] %v1691
        %1696 = vst [vmem:[#allocation2 + $0x70] sm:$0xf] %v1692
        %1697 = vst [vmem:[#allocation2 + $0x78] sm:$0xf] %v1693
        %1698 = vst [vmem:[#allocation2 + $0x80] sm:$0xf] %v1512
        %1699 = vst [vmem:[#allocation2 + $0x88] sm:$0xf] %v1517
        %1700 = vst [vmem:[#allocation2 + $0x90] sm:$0xf] %v1513
        %1701 = vst [vmem:[#allocation2 + $0x98] sm:$0xf] %v1518
        %1702 = vrot.lane.b32.xlu0 %v1512, 127
        %v1703 = vpop.permute.xlu0 %1702
        %1704 = vrot.lane.b32.xlu0 %v1517, 127
        %v1705 = vpop.permute.xlu0 %1704
        %1706 = vrot.lane.b32.xlu0 %v1513, 127
        %v1707 = vpop.permute.xlu0 %1706
        %1708 = vrot.lane.b32.xlu0 %v1518, 127
        %v1709 = vpop.permute.xlu0 %1708
        %vm1710 = vcmp.lt.s32.totalorder %v1530, 127
        %v1711 = vsel %vm1710, %v1707, %v1709
        %v1712 = vsel %vm1710, %v1705, %v1707
        %v1713 = vsel %vm1710, %v1703, %v1705
        %v1714 = vsel %vm1710, %v1709, %v1703
        %s1715 = scalar_lea.vmem %s10, 5
        %v1716 = vld [vmem:[%s1715] ss:$8 sm:$0xf]
        %v1718 = vlaneseq
        %v1719 = vshrl.u32 %v1718, 7
        %v1720 = vsub.s32 0, %v1719
        %v1721 = vrot.slane %v1716, %v1720
        %v1722 = vlaneseq
        %v1723 = vshrl.u32 %v1722, 7
        %v1724 = vsub.s32 1, %v1723
        %v1725 = vrot.slane %v1716, %v1724
        %v1726 = vlaneseq
        %v1727 = vshrl.u32 %v1726, 7
        %v1728 = vsub.s32 2, %v1727
        %v1729 = vrot.slane %v1716, %v1728
        %v1730 = vlaneseq
        %v1731 = vshrl.u32 %v1730, 7
        %v1732 = vsub.s32 3, %v1731
        %v1733 = vrot.slane %v1716, %v1732
        %v1738 = vmul.f32 %v1713, %v1721
        %v1739 = vmul.f32 %v1712, %v1725
        %v1740 = vmul.f32 %v1711, %v1729
        %v1741 = vmul.f32 %v1714, %v1733
        %1742 = vst [vmem:[#allocation2 + $0xa0] sm:$0xf] %v1738
        %1743 = vst [vmem:[#allocation2 + $0xa8] sm:$0xf] %v1739
        %1744 = vst [vmem:[#allocation2 + $0xb0] sm:$0xf] %v1740
        %1745 = vst [vmem:[#allocation2 + $0xb8] sm:$0xf] %v1741
        %1746 = vrot.lane.b32.xlu0 %v1512, 121
        %v1747 = vpop.permute.xlu0 %1746
        %1748 = vrot.lane.b32.xlu0 %v1517, 121
        %v1749 = vpop.permute.xlu0 %1748
        %1750 = vrot.lane.b32.xlu0 %v1513, 121
        %v1751 = vpop.permute.xlu0 %1750
        %1752 = vrot.lane.b32.xlu0 %v1518, 121
        %v1753 = vpop.permute.xlu0 %1752
        %vm1754 = vcmp.lt.s32.totalorder %v1530, 121
        %v1755 = vsel %vm1754, %v1751, %v1753
        %v1756 = vsel %vm1754, %v1749, %v1751
        %v1757 = vsel %vm1754, %v1747, %v1749
        %v1758 = vsel %vm1754, %v1753, %v1747
        %s1759 = scalar_lea.vmem %s10, 6
        %v1760 = vld [vmem:[%s1759] ss:$8 sm:$0xf]
        %v1762 = vlaneseq
        %v1763 = vshrl.u32 %v1762, 7
        %v1764 = vsub.s32 0, %v1763
        %v1765 = vrot.slane %v1760, %v1764
        %v1766 = vlaneseq
        %v1767 = vshrl.u32 %v1766, 7
        %v1768 = vsub.s32 1, %v1767
        %v1769 = vrot.slane %v1760, %v1768
        %v1770 = vlaneseq
        %v1771 = vshrl.u32 %v1770, 7
        %v1772 = vsub.s32 2, %v1771
        %v1773 = vrot.slane %v1760, %v1772
        %v1774 = vlaneseq
        %v1775 = vshrl.u32 %v1774, 7
        %v1776 = vsub.s32 3, %v1775
        %v1777 = vrot.slane %v1760, %v1776
        %v1782 = vmul.f32 %v1757, %v1765
        %v1783 = vmul.f32 %v1756, %v1769
        %v1784 = vmul.f32 %v1755, %v1773
        %v1785 = vmul.f32 %v1758, %v1777
        %1786 = vst [vmem:[#allocation2 + $0xc0] sm:$0xf] %v1782
        %1787 = vst [vmem:[#allocation2 + $0xc8] sm:$0xf] %v1783
        %1788 = vst [vmem:[#allocation2 + $0xd0] sm:$0xf] %v1784
        %1789 = vst [vmem:[#allocation2 + $0xd8] sm:$0xf] %v1785
        %1790 = vrot.lane.b32.xlu0 %v1512, 120
        %v1791 = vpop.permute.xlu0 %1790
        %1792 = vrot.lane.b32.xlu0 %v1517, 120
        %v1793 = vpop.permute.xlu0 %1792
        %1794 = vrot.lane.b32.xlu0 %v1513, 120
        %v1795 = vpop.permute.xlu0 %1794
        %1796 = vrot.lane.b32.xlu0 %v1518, 120
        %v1797 = vpop.permute.xlu0 %1796
        %vm1798 = vcmp.lt.s32.totalorder %v1530, 120
        %v1799 = vsel %vm1798, %v1795, %v1797
        %v1800 = vsel %vm1798, %v1793, %v1795
        %v1801 = vsel %vm1798, %v1791, %v1793
        %v1802 = vsel %vm1798, %v1797, %v1791
        %s1803 = scalar_lea.vmem %s10, 7
        %v1804 = vld [vmem:[%s1803] ss:$8 sm:$0xf]
        %v1806 = vlaneseq
        %v1807 = vshrl.u32 %v1806, 7
        %v1808 = vsub.s32 0, %v1807
        %v1809 = vrot.slane %v1804, %v1808
        %v1810 = vlaneseq
        %v1811 = vshrl.u32 %v1810, 7
        %v1812 = vsub.s32 1, %v1811
        %v1813 = vrot.slane %v1804, %v1812
        %v1814 = vlaneseq
        %v1815 = vshrl.u32 %v1814, 7
        %v1816 = vsub.s32 2, %v1815
        %v1817 = vrot.slane %v1804, %v1816
        %v1818 = vlaneseq
        %v1819 = vshrl.u32 %v1818, 7
        %v1820 = vsub.s32 3, %v1819
        %v1821 = vrot.slane %v1804, %v1820
        %v1826 = vmul.f32 %v1801, %v1809
        %v1827 = vmul.f32 %v1800, %v1813
        %v1828 = vmul.f32 %v1799, %v1817
        %v1829 = vmul.f32 %v1802, %v1821
        %1830 = vst [vmem:[#allocation2 + $0xe0] sm:$0xf] %v1826
        %1831 = vst [vmem:[#allocation2 + $0xe8] sm:$0xf] %v1827
        %1832 = vst [vmem:[#allocation2 + $0xf0] sm:$0xf] %v1828
        %1833 = vst [vmem:[#allocation2 + $0xf8] sm:$0xf] %v1829
        %1834 = vrot.lane.b32.xlu0 %v1512, 119
        %v1835 = vpop.permute.xlu0 %1834
        %1836 = vrot.lane.b32.xlu0 %v1517, 119
        %v1837 = vpop.permute.xlu0 %1836
        %1838 = vrot.lane.b32.xlu0 %v1513, 119
        %v1839 = vpop.permute.xlu0 %1838
        %1840 = vrot.lane.b32.xlu0 %v1518, 119
        %v1841 = vpop.permute.xlu0 %1840
        %vm1842 = vcmp.lt.s32.totalorder %v1530, 119
        %v1843 = vsel %vm1842, %v1839, %v1841
        %v1844 = vsel %vm1842, %v1837, %v1839
        %v1845 = vsel %vm1842, %v1835, %v1837
        %v1846 = vsel %vm1842, %v1841, %v1835
        %s1847 = scalar_lea.vmem %s10, 32
        %v1848 = vld [vmem:[%s1847] ss:$8 sm:$0xf]
        %v1850 = vlaneseq
        %v1851 = vshrl.u32 %v1850, 7
        %v1852 = vsub.s32 0, %v1851
        %v1853 = vrot.slane %v1848, %v1852
        %v1854 = vlaneseq
        %v1855 = vshrl.u32 %v1854, 7
        %v1856 = vsub.s32 1, %v1855
        %v1857 = vrot.slane %v1848, %v1856
        %v1858 = vlaneseq
        %v1859 = vshrl.u32 %v1858, 7
        %v1860 = vsub.s32 2, %v1859
        %v1861 = vrot.slane %v1848, %v1860
        %v1862 = vlaneseq
        %v1863 = vshrl.u32 %v1862, 7
        %v1864 = vsub.s32 3, %v1863
        %v1865 = vrot.slane %v1848, %v1864
        %v1870 = vmul.f32 %v1845, %v1853
        %v1871 = vmul.f32 %v1844, %v1857
        %v1872 = vmul.f32 %v1843, %v1861
        %v1873 = vmul.f32 %v1846, %v1865
        %1874 = vst [vmem:[#allocation2 + $0x100] sm:$0xf] %v1870
        %1875 = vst [vmem:[#allocation2 + $0x108] sm:$0xf] %v1871
        %1876 = vst [vmem:[#allocation2 + $0x110] sm:$0xf] %v1872
        %1877 = vst [vmem:[#allocation2 + $0x118] sm:$0xf] %v1873
        %v1878 = vld [vmem:[#allocation2] sm:$0xff]
        %v1879 = vld [vmem:[#allocation2 + $0x8] sm:$0xff]
        %v1880 = vld [vmem:[#allocation2 + $0x10] sm:$0xff]
        %v1881 = vld [vmem:[#allocation2 + $0x18] sm:$0xff]
        %v1882 = vld [vmem:[#allocation2 + $0x20] sm:$0xff]
        %v1883 = vld [vmem:[#allocation2 + $0x28] sm:$0xff]
        %v1884 = vld [vmem:[#allocation2 + $0x30] sm:$0xff]
        %v1885 = vld [vmem:[#allocation2 + $0x38] sm:$0xff]
        %v1886 = vld [vmem:[#allocation2 + $0x40] sm:$0xff]
        %v1887 = vld [vmem:[#allocation2 + $0x48] sm:$0xff]
        %v1888 = vld [vmem:[#allocation2 + $0x50] sm:$0xff]
        %v1889 = vld [vmem:[#allocation2 + $0x58] sm:$0xff]
        %v1890 = vld [vmem:[#allocation2 + $0x60] sm:$0xff]
        %v1891 = vld [vmem:[#allocation2 + $0x68] sm:$0xff]
        %v1892 = vld [vmem:[#allocation2 + $0x70] sm:$0xff]
        %v1893 = vld [vmem:[#allocation2 + $0x78] sm:$0xff]
        %v1894 = vld [vmem:[#allocation2 + $0x80] sm:$0xff]
        %v1895 = vld [vmem:[#allocation2 + $0x88] sm:$0xff]
        %v1896 = vld [vmem:[#allocation2 + $0x90] sm:$0xff]
        %v1897 = vld [vmem:[#allocation2 + $0x98] sm:$0xff]
        %v1898 = vld [vmem:[#allocation2 + $0xa0] sm:$0xff]
        %v1899 = vld [vmem:[#allocation2 + $0xa8] sm:$0xff]
        %v1900 = vld [vmem:[#allocation2 + $0xb0] sm:$0xff]
        %v1901 = vld [vmem:[#allocation2 + $0xb8] sm:$0xff]
        %v1902 = vld [vmem:[#allocation2 + $0xc0] sm:$0xff]
        %v1903 = vld [vmem:[#allocation2 + $0xc8] sm:$0xff]
        %v1904 = vld [vmem:[#allocation2 + $0xd0] sm:$0xff]
        %v1905 = vld [vmem:[#allocation2 + $0xd8] sm:$0xff]
        %v1906 = vld [vmem:[#allocation2 + $0xe0] sm:$0xff]
        %v1907 = vld [vmem:[#allocation2 + $0xe8] sm:$0xff]
        %v1908 = vld [vmem:[#allocation2 + $0xf0] sm:$0xff]
        %v1909 = vld [vmem:[#allocation2 + $0xf8] sm:$0xff]
        %v1910 = vld [vmem:[#allocation2 + $0x100] sm:$0xff]
        %v1911 = vld [vmem:[#allocation2 + $0x108] sm:$0xff]
        %v1912 = vld [vmem:[#allocation2 + $0x110] sm:$0xff]
        %v1913 = vld [vmem:[#allocation2 + $0x118] sm:$0xff]
        %v1914 = vpack.c.bf16 %v1882, %v1878
        %v1915 = vpack.c.bf16 %v1883, %v1879
        %v1916 = vpack.c.bf16 %v1884, %v1880
        %v1917 = vpack.c.bf16 %v1885, %v1881
        %v1918 = vpack.c.bf16 %v1890, %v1886
        %v1919 = vpack.c.bf16 %v1891, %v1887
        %v1920 = vpack.c.bf16 %v1892, %v1888
        %v1921 = vpack.c.bf16 %v1893, %v1889
        %v1922 = vpack.c.bf16 %v1898, %v1894
        %v1923 = vpack.c.bf16 %v1899, %v1895
        %v1924 = vpack.c.bf16 %v1900, %v1896
        %v1925 = vpack.c.bf16 %v1901, %v1897
        %v1926 = vpack.c.bf16 %v1906, %v1902
        %v1927 = vpack.c.bf16 %v1907, %v1903
        %v1928 = vpack.c.bf16 %v1908, %v1904
        %v1929 = vpack.c.bf16 %v1909, %v1905
        %v1930 = vpack.c.bf16 %v1910, %v1910
        %v1931 = vpack.c.bf16 %v1911, %v1911
        %v1932 = vpack.c.bf16 %v1912, %v1912
        %v1933 = vpack.c.bf16 %v1913, %v1913
        %v1934 = vld [vmem:[%s3] sm:$0x3]
        %vm1935 = vcmask 588800
        %v1937 = vsel %vm1935, %v1934, 0
        %v1940 = vsel %vm535, %v1930, 0
        %v1943 = vsel %vm535, %v1931, 0
        %v1946 = vsel %vm535, %v1932, 0
        %v1949 = vsel %vm535, %v1933, 0
        %1951 = vmatprep.subr.bf16.mxu0 %v1915
        %1952 = vmatpush1.bf16.msra.mxu0 %v1914
        %1953 = vmatprep.subr.bf16.mxu0 %v1919
        %1954 = vmatpush1.bf16.msra.mxu0 %v1918
        %1955 = vmatprep.subr.bf16.mxu0 %v1923
        %1956 = vmatpush1.bf16.msra.mxu0 %v1922
        %1957 = vmatprep.subr.bf16.mxu0 %v1927
        %1958 = vmatpush1.bf16.msra.mxu0 %v1926
        %1959 = vmatprep.subr.bf16.mxu0 %v1943
        %1960 = vmatpush1.bf16.msra.mxu0 %v1940
        %1961 = vmatprep.subr.bf16.mxu0 0
        %1962 = vmatpush1.bf16.msra.mxu0 0
        %1963 = vmatprep.subr.bf16.mxu0 0
        %1964 = vmatpush1.bf16.msra.mxu0 0
        %1965 = vmatprep.subr.bf16.mxu0 0
        %1966 = vmatpush1.bf16.msra.mxu0 0
        %1967 = vmatprep.subr.bf16.mxu0 0
        %1968 = vmatpush1.bf16.msra.mxu0 0
        %1969 = vmatprep.subr.bf16.mxu0 0
        %1970 = vmatpush1.bf16.msra.mxu0 0
        %1971 = vmatprep.subr.bf16.mxu0 0
        %1972 = vmatpush1.bf16.msra.mxu0 0
        %1973 = vmatprep.subr.bf16.mxu0 0
        %1974 = vmatpush1.bf16.msra.mxu0 0
        %1975 = vmatprep.subr.bf16.mxu0 0
        %1976 = vmatpush1.bf16.msra.mxu0 0
        %1977 = vmatprep.subr.bf16.mxu0 0
        %1978 = vmatpush1.bf16.msra.mxu0 0
        %1979 = vmatprep.subr.bf16.mxu0 0
        %1980 = vmatpush1.bf16.msra.mxu0 0
        %1981 = vmatprep.subr.bf16.mxu0 0
        %1982 = vmatpush1.bf16.msra.mxu0 0
        %1983 = vmatprep.mubr.bf16.mxu0 0
        %1984 = vmatmul.mubr.bf16.gmra.mrb[0].mxu0 %v1937
        %v1985 = vpop.f32.mrb[0].mxu0
        %v1986 = vadd.f32 0.0, %v1985
        %v1987 = vpop.f32.mrb[0].mxu0
        %v1988 = vadd.f32 0.0, %v1987
        %v1989 = vpop.f32.mrb[0].mxu0
        %v1990 = vpop.f32.mrb[0].mxu0
        %1991 = vdwg.mxu0
        %1992 = vmatprep.subr.bf16.mxu0 %v1917
        %1993 = vmatpush1.bf16.msra.mxu0 %v1916
        %1994 = vmatprep.subr.bf16.mxu0 %v1921
        %1995 = vmatpush1.bf16.msra.mxu0 %v1920
        %1996 = vmatprep.subr.bf16.mxu0 %v1925
        %1997 = vmatpush1.bf16.msra.mxu0 %v1924
        %1998 = vmatprep.subr.bf16.mxu0 %v1929
        %1999 = vmatpush1.bf16.msra.mxu0 %v1928
        %2000 = vmatprep.subr.bf16.mxu0 %v1949
        %2001 = vmatpush1.bf16.msra.mxu0 %v1946
        %2002 = vmatprep.subr.bf16.mxu0 0
        %2003 = vmatpush1.bf16.msra.mxu0 0
        %2004 = vmatprep.subr.bf16.mxu0 0
        %2005 = vmatpush1.bf16.msra.mxu0 0
        %2006 = vmatprep.subr.bf16.mxu0 0
        %2007 = vmatpush1.bf16.msra.mxu0 0
        %2008 = vmatprep.subr.bf16.mxu0 0
        %2009 = vmatpush1.bf16.msra.mxu0 0
        %2010 = vmatprep.subr.bf16.mxu0 0
        %2011 = vmatpush1.bf16.msra.mxu0 0
        %2012 = vmatprep.subr.bf16.mxu0 0
        %2013 = vmatpush1.bf16.msra.mxu0 0
        %2014 = vmatprep.subr.bf16.mxu0 0
        %2015 = vmatpush1.bf16.msra.mxu0 0
        %2016 = vmatprep.subr.bf16.mxu0 0
        %2017 = vmatpush1.bf16.msra.mxu0 0
        %2018 = vmatprep.subr.bf16.mxu0 0
        %2019 = vmatpush1.bf16.msra.mxu0 0
        %2020 = vmatprep.subr.bf16.mxu0 0
        %2021 = vmatpush1.bf16.msra.mxu0 0
        %2022 = vmatprep.subr.bf16.mxu0 0
        %2023 = vmatpush1.bf16.msra.mxu0 0
        %2024 = vmatprep.mubr.bf16.mxu0 0
        %2025 = vmatmul.mubr.bf16.gmra.mrb[0].mxu0 %v1937
        %v2026 = vpop.f32.mrb[0].mxu0
        %v2027 = vadd.f32 0.0, %v2026
        %v2028 = vpop.f32.mrb[0].mxu0
        %v2029 = vadd.f32 0.0, %v2028
        %v2030 = vpop.f32.mrb[0].mxu0
        %v2031 = vpop.f32.mrb[0].mxu0
        %2032 = vdwg.mxu0
        %s2033 = scalar_lea.vmem %s3, 2
        %v2034 = vld [vmem:[%s2033] sm:$0x3]
        %s2035 = scalar_lea.vmem %s3, 4
        %v2036 = vld [vmem:[%s2035] sm:$0x3]
        %v2038 = vsel %vm1935, %v2036, 0
        %2040 = vmatprep.subr.bf16.mxu0 %v1915
        %2041 = vmatpush1.bf16.msra.mxu0 %v1914
        %2042 = vmatprep.subr.bf16.mxu0 %v1919
        %2043 = vmatpush1.bf16.msra.mxu0 %v1918
        %2044 = vmatprep.subr.bf16.mxu0 %v1923
        %2045 = vmatpush1.bf16.msra.mxu0 %v1922
        %2046 = vmatprep.subr.bf16.mxu0 %v1927
        %2047 = vmatpush1.bf16.msra.mxu0 %v1926
        %2048 = vmatprep.subr.bf16.mxu0 %v1943
        %2049 = vmatpush1.bf16.msra.mxu0 %v1940
        %2050 = vmatprep.subr.bf16.mxu0 0
        %2051 = vmatpush1.bf16.msra.mxu0 0
        %2052 = vmatprep.subr.bf16.mxu0 0
        %2053 = vmatpush1.bf16.msra.mxu0 0
        %2054 = vmatprep.subr.bf16.mxu0 0
        %2055 = vmatpush1.bf16.msra.mxu0 0
        %2056 = vmatprep.subr.bf16.mxu0 0
        %2057 = vmatpush1.bf16.msra.mxu0 0
        %2058 = vmatprep.subr.bf16.mxu0 0
        %2059 = vmatpush1.bf16.msra.mxu0 0
        %2060 = vmatprep.subr.bf16.mxu0 0
        %2061 = vmatpush1.bf16.msra.mxu0 0
        %2062 = vmatprep.subr.bf16.mxu0 0
        %2063 = vmatpush1.bf16.msra.mxu0 0
        %2064 = vmatprep.subr.bf16.mxu0 0
        %2065 = vmatpush1.bf16.msra.mxu0 0
        %2066 = vmatprep.subr.bf16.mxu0 0
        %2067 = vmatpush1.bf16.msra.mxu0 0
        %2068 = vmatprep.subr.bf16.mxu0 0
        %2069 = vmatpush1.bf16.msra.mxu0 0
        %2070 = vmatprep.subr.bf16.mxu0 0
        %2071 = vmatpush1.bf16.msra.mxu0 0
        %2072 = vmatprep.mubr.bf16.mxu0 0
        %2073 = vmatmul.mubr.bf16.gmra.mrb[0].mxu0 %v2038
        %v2074 = vpop.f32.mrb[0].mxu0
        %v2075 = vadd.f32 0.0, %v2074
        %v2076 = vpop.f32.mrb[0].mxu0
        %v2077 = vadd.f32 0.0, %v2076
        %v2078 = vpop.f32.mrb[0].mxu0
        %v2079 = vpop.f32.mrb[0].mxu0
        %2080 = vdwg.mxu0
        %2081 = vmatprep.subr.bf16.mxu0 %v1917
        %2082 = vmatpush1.bf16.msra.mxu0 %v1916
        %2083 = vmatprep.subr.bf16.mxu0 %v1921
        %2084 = vmatpush1.bf16.msra.mxu0 %v1920
        %2085 = vmatprep.subr.bf16.mxu0 %v1925
        %2086 = vmatpush1.bf16.msra.mxu0 %v1924
        %2087 = vmatprep.subr.bf16.mxu0 %v1929
        %2088 = vmatpush1.bf16.msra.mxu0 %v1928
        %2089 = vmatprep.subr.bf16.mxu0 %v1949
        %2090 = vmatpush1.bf16.msra.mxu0 %v1946
        %2091 = vmatprep.subr.bf16.mxu0 0
        %2092 = vmatpush1.bf16.msra.mxu0 0
        %2093 = vmatprep.subr.bf16.mxu0 0
        %2094 = vmatpush1.bf16.msra.mxu0 0
        %2095 = vmatprep.subr.bf16.mxu0 0
        %2096 = vmatpush1.bf16.msra.mxu0 0
        %2097 = vmatprep.subr.bf16.mxu0 0
        %2098 = vmatpush1.bf16.msra.mxu0 0
        %2099 = vmatprep.subr.bf16.mxu0 0
        %2100 = vmatpush1.bf16.msra.mxu0 0
        %2101 = vmatprep.subr.bf16.mxu0 0
        %2102 = vmatpush1.bf16.msra.mxu0 0
        %2103 = vmatprep.subr.bf16.mxu0 0
        %2104 = vmatpush1.bf16.msra.mxu0 0
        %2105 = vmatprep.subr.bf16.mxu0 0
        %2106 = vmatpush1.bf16.msra.mxu0 0
        %2107 = vmatprep.subr.bf16.mxu0 0
        %2108 = vmatpush1.bf16.msra.mxu0 0
        %2109 = vmatprep.subr.bf16.mxu0 0
        %2110 = vmatpush1.bf16.msra.mxu0 0
        %2111 = vmatprep.subr.bf16.mxu0 0
        %2112 = vmatpush1.bf16.msra.mxu0 0
        %2113 = vmatprep.mubr.bf16.mxu0 0
        %2114 = vmatmul.mubr.bf16.gmra.mrb[0].mxu0 %v2038
        %v2115 = vpop.f32.mrb[0].mxu0
        %v2116 = vadd.f32 0.0, %v2115
        %v2117 = vpop.f32.mrb[0].mxu0
        %v2118 = vadd.f32 0.0, %v2117
        %v2119 = vpop.f32.mrb[0].mxu0
        %v2120 = vpop.f32.mrb[0].mxu0
        %2121 = vdwg.mxu0
        %2123 = vset.pattern.permute.xlu0 0
        %2124 = vperm.xlu0 %2123, %v1514
        %v2125 = vpop.permute.xlu0 %2124
        %v2128 = vsel %vm1935, %v2034, 0
        %2130 = vmatprep.subr.bf16.mxu0 %v1915
        %2131 = vmatpush1.bf16.msra.mxu0 %v1914
        %2132 = vmatprep.subr.bf16.mxu0 %v1919
        %2133 = vmatpush1.bf16.msra.mxu0 %v1918
        %2134 = vmatprep.subr.bf16.mxu0 %v1923
        %2135 = vmatpush1.bf16.msra.mxu0 %v1922
        %2136 = vmatprep.subr.bf16.mxu0 %v1927
        %2137 = vmatpush1.bf16.msra.mxu0 %v1926
        %2138 = vmatprep.subr.bf16.mxu0 %v1943
        %2139 = vmatpush1.bf16.msra.mxu0 %v1940
        %2140 = vmatprep.subr.bf16.mxu0 0
        %2141 = vmatpush1.bf16.msra.mxu0 0
        %2142 = vmatprep.subr.bf16.mxu0 0
        %2143 = vmatpush1.bf16.msra.mxu0 0
        %2144 = vmatprep.subr.bf16.mxu0 0
        %2145 = vmatpush1.bf16.msra.mxu0 0
        %2146 = vmatprep.subr.bf16.mxu0 0
        %2147 = vmatpush1.bf16.msra.mxu0 0
        %2148 = vmatprep.subr.bf16.mxu0 0
        %2149 = vmatpush1.bf16.msra.mxu0 0
        %2150 = vmatprep.subr.bf16.mxu0 0
        %2151 = vmatpush1.bf16.msra.mxu0 0
        %2152 = vmatprep.subr.bf16.mxu0 0
        %2153 = vmatpush1.bf16.msra.mxu0 0
        %2154 = vmatprep.subr.bf16.mxu0 0
        %2155 = vmatpush1.bf16.msra.mxu0 0
        %2156 = vmatprep.subr.bf16.mxu0 0
        %2157 = vmatpush1.bf16.msra.mxu0 0
        %2158 = vmatprep.subr.bf16.mxu0 0
        %2159 = vmatpush1.bf16.msra.mxu0 0
        %2160 = vmatprep.subr.bf16.mxu0 0
        %2161 = vmatpush1.bf16.msra.mxu0 0
        %2162 = vmatprep.mubr.bf16.mxu0 0
        %2163 = vmatmul.mubr.bf16.gmra.mrb[0].mxu0 %v2128
        %v2164 = vpop.f32.mrb[0].mxu0
        %v2165 = vadd.f32 %v2125, %v2164
        %v2166 = vpop.f32.mrb[0].mxu0
        %v2167 = vadd.f32 %v2125, %v2166
        %v2168 = vpop.f32.mrb[0].mxu0
        %v2169 = vpop.f32.mrb[0].mxu0
        %2170 = vdwg.mxu0
        %2171 = vmatprep.subr.bf16.mxu0 %v1917
        %2172 = vmatpush1.bf16.msra.mxu0 %v1916
        %2173 = vmatprep.subr.bf16.mxu0 %v1921
        %2174 = vmatpush1.bf16.msra.mxu0 %v1920
        %2175 = vmatprep.subr.bf16.mxu0 %v1925
        %2176 = vmatpush1.bf16.msra.mxu0 %v1924
        %2177 = vmatprep.subr.bf16.mxu0 %v1929
        %2178 = vmatpush1.bf16.msra.mxu0 %v1928
        %2179 = vmatprep.subr.bf16.mxu0 %v1949
        %2180 = vmatpush1.bf16.msra.mxu0 %v1946
        %2181 = vmatprep.subr.bf16.mxu0 0
        %2182 = vmatpush1.bf16.msra.mxu0 0
        %2183 = vmatprep.subr.bf16.mxu0 0
        %2184 = vmatpush1.bf16.msra.mxu0 0
        %2185 = vmatprep.subr.bf16.mxu0 0
        %2186 = vmatpush1.bf16.msra.mxu0 0
        %2187 = vmatprep.subr.bf16.mxu0 0
        %2188 = vmatpush1.bf16.msra.mxu0 0
        %2189 = vmatprep.subr.bf16.mxu0 0
        %2190 = vmatpush1.bf16.msra.mxu0 0
        %2191 = vmatprep.subr.bf16.mxu0 0
        %2192 = vmatpush1.bf16.msra.mxu0 0
        %2193 = vmatprep.subr.bf16.mxu0 0
        %2194 = vmatpush1.bf16.msra.mxu0 0
        %2195 = vmatprep.subr.bf16.mxu0 0
        %2196 = vmatpush1.bf16.msra.mxu0 0
        %2197 = vmatprep.subr.bf16.mxu0 0
        %2198 = vmatpush1.bf16.msra.mxu0 0
        %2199 = vmatprep.subr.bf16.mxu0 0
        %2200 = vmatpush1.bf16.msra.mxu0 0
        %2201 = vmatprep.subr.bf16.mxu0 0
        %2202 = vmatpush1.bf16.msra.mxu0 0
        %2203 = vmatprep.mubr.bf16.mxu0 0
        %2204 = vmatmul.mubr.bf16.gmra.mrb[0].mxu0 %v2128
        %v2205 = vpop.f32.mrb[0].mxu0
        %v2206 = vadd.f32 %v2125, %v2205
        %v2207 = vpop.f32.mrb[0].mxu0
        %v2208 = vadd.f32 %v2125, %v2207
        %v2209 = vpop.f32.mrb[0].mxu0
        %v2210 = vpop.f32.mrb[0].mxu0
        %2211 = vdwg.mxu0
        %2212 = vrot.lane.b32.xlu0 %v1986, 64
        %v2213 = vpop.permute.xlu0 %2212
        %2214 = vrot.lane.b32.xlu0 %v1988, 64
        %v2215 = vpop.permute.xlu0 %2214
        %2216 = vrot.lane.b32.xlu0 %v2027, 64
        %v2217 = vpop.permute.xlu0 %2216
        %2218 = vrot.lane.b32.xlu0 %v2029, 64
        %v2219 = vpop.permute.xlu0 %2218
        %vm2220 = vcmp.lt.s32.totalorder %v1530, 64
        %v2221 = vsel %vm2220, %v2217, %v2219
        %v2222 = vsel %vm2220, %v2215, %v2217
        %v2223 = vsel %vm2220, %v2213, %v2215
        %v2224 = vsel %vm2220, %v2219, %v2213
        %v2225 = vld [vmem:[%s11] ss:$2 sm:$0xf]
        %v2227 = vlaneseq
        %v2228 = vshrl.u32 %v2227, 7
        %v2229 = vsub.s32 0, %v2228
        %v2230 = vrot.slane %v2225, %v2229
        %v2231 = vlaneseq
        %v2232 = vshrl.u32 %v2231, 7
        %v2233 = vsub.s32 1, %v2232
        %v2234 = vrot.slane %v2225, %v2233
        %v2235 = vlaneseq
        %v2236 = vshrl.u32 %v2235, 7
        %v2237 = vsub.s32 2, %v2236
        %v2238 = vrot.slane %v2225, %v2237
        %v2239 = vlaneseq
        %v2240 = vshrl.u32 %v2239, 7
        %v2241 = vsub.s32 3, %v2240
        %v2242 = vrot.slane %v2225, %v2241
        %v2247 = vmul.f32 %v2224, %v2230
        %v2248 = vmul.f32 %v2223, %v2234
        %v2249 = vmul.f32 %v2222, %v2238
        %v2250 = vmul.f32 %v2221, %v2242
        %v2251 = vadd.f32 %v2165, %v2247
        %v2252 = vadd.f32 %v2167, %v2248
        %v2253 = vadd.f32 %v2206, %v2249
        %v2254 = vadd.f32 %v2208, %v2250
        %2255 = vrot.lane.b32.xlu0 %v2075, 64
        %v2256 = vpop.permute.xlu0 %2255
        %2257 = vrot.lane.b32.xlu0 %v2077, 64
        %v2258 = vpop.permute.xlu0 %2257
        %2259 = vrot.lane.b32.xlu0 %v2116, 64
        %v2260 = vpop.permute.xlu0 %2259
        %2261 = vrot.lane.b32.xlu0 %v2118, 64
        %v2262 = vpop.permute.xlu0 %2261
        %v2263 = vsel %vm2220, %v2260, %v2262
        %v2264 = vsel %vm2220, %v2258, %v2260
        %v2265 = vsel %vm2220, %v2256, %v2258
        %v2266 = vsel %vm2220, %v2262, %v2256
        %s2267 = scalar_lea.vmem %s11, 1
        %v2268 = vld [vmem:[%s2267] ss:$2 sm:$0xf]
        %v2270 = vlaneseq
        %v2271 = vshrl.u32 %v2270, 7
        %v2272 = vsub.s32 0, %v2271
        %v2273 = vrot.slane %v2268, %v2272
        %v2274 = vlaneseq
        %v2275 = vshrl.u32 %v2274, 7
        %v2276 = vsub.s32 1, %v2275
        %v2277 = vrot.slane %v2268, %v2276
        %v2278 = vlaneseq
        %v2279 = vshrl.u32 %v2278, 7
        %v2280 = vsub.s32 2, %v2279
        %v2281 = vrot.slane %v2268, %v2280
        %v2282 = vlaneseq
        %v2283 = vshrl.u32 %v2282, 7
        %v2284 = vsub.s32 3, %v2283
        %v2285 = vrot.slane %v2268, %v2284
        %v2290 = vmul.f32 %v2265, %v2273
        %v2291 = vmul.f32 %v2264, %v2277
        %v2292 = vmul.f32 %v2263, %v2281
        %v2293 = vmul.f32 %v2266, %v2285
        %v2294 = vadd.f32 %v2251, %v2290
        %v2295 = vadd.f32 %v2252, %v2291
        %v2296 = vadd.f32 %v2253, %v2292
        %v2297 = vadd.f32 %v2254, %v2293
        %v2298 = vld [vmem:[%s5] sm:$0xf]
        %v2299 = vld [vmem:[%s6] sm:$0xf]
        %v2300 = vsel %vm535, %v2294, 0.0
        %v2301 = vsel %vm535, %v2295, 0.0
        %v2302 = vadd.f32 %v2300, %v2301
        %v2303 = vsel %vm535, %v2296, 0.0
        %v2304 = vadd.f32 %v2302, %v2303
        %v2305 = vsel %vm535, %v2297, 0.0
        %v2306 = vadd.f32 %v2304, %v2305
        %2307 = vadd.xlane.f32.xlu0 %v2306
        %v2308 = vpop.xlane.xlu0 %2307
        %v2309 = vmul.f32 %v2294, %v2294
        %v2310 = vmul.f32 %v2295, %v2295
        %v2311 = vmul.f32 %v2296, %v2296
        %v2312 = vmul.f32 %v2297, %v2297
        %v2313 = vsel %vm535, %v2309, 0.0
        %v2314 = vsel %vm535, %v2310, 0.0
        %v2315 = vadd.f32 %v2313, %v2314
        %v2316 = vsel %vm535, %v2311, 0.0
        %v2317 = vadd.f32 %v2315, %v2316
        %v2318 = vsel %vm535, %v2312, 0.0
        %v2319 = vadd.f32 %v2317, %v2318
        %2320 = vadd.xlane.f32.xlu0 %v2319
        %v2321 = vpop.xlane.xlu0 %2320
        %v2323 = vsel %vm535, %v2308, 0
        %2325 = vmatprep.subr.mxu0 0.0
        %v2326 = vand.u32 %v2323, 4294901760
        %2327 = vmatpush1.msra.mxu0 %v2326
        %2328 = vmatprep.subr.mxu0 0.0
        %2329 = vmatpush1.msra.mxu0 0.0
        %2330 = vmatprep.subr.mxu0 0.0
        %2331 = vmatpush1.msra.mxu0 0.0
        %2332 = vmatprep.subr.mxu0 0.0
        %2333 = vmatpush1.msra.mxu0 0.0
        %2334 = vmatprep.subr.mxu0 0.0
        %2335 = vmatpush1.msra.mxu0 0.0
        %2336 = vmatprep.subr.mxu0 0.0
        %2337 = vmatpush1.msra.mxu0 0.0
        %2338 = vmatprep.subr.mxu0 0.0
        %2339 = vmatpush1.msra.mxu0 0.0
        %2340 = vmatprep.subr.mxu0 0.0
        %2341 = vmatpush1.msra.mxu0 0.0
        %2342 = vmatprep.subr.mxu0 0.0
        %2343 = vmatpush1.msra.mxu0 0.0
        %2344 = vmatprep.subr.mxu0 0.0
        %2345 = vmatpush1.msra.mxu0 0.0
        %2346 = vmatprep.subr.mxu0 0.0
        %2347 = vmatpush1.msra.mxu0 0.0
        %2348 = vmatprep.subr.mxu0 0.0
        %2349 = vmatpush1.msra.mxu0 0.0
        %2350 = vmatprep.subr.mxu0 0.0
        %2351 = vmatpush1.msra.mxu0 0.0
        %2352 = vmatprep.subr.mxu0 0.0
        %2353 = vmatpush1.msra.mxu0 0.0
        %2354 = vmatprep.subr.mxu0 0.0
        %2355 = vmatpush1.msra.mxu0 0.0
        %2356 = vmatprep.subr.mxu0 0.0
        %2357 = vmatpush1.msra.mxu0 0.0
        %2358 = vmatprep.subr.mxu0 0.0
        %2359 = vmatpush1.msra.mxu0 0.0
        %2360 = vmatprep.subr.mxu0 0.0
        %2361 = vmatpush1.msra.mxu0 0.0
        %2362 = vmatprep.subr.mxu0 0.0
        %2363 = vmatpush1.msra.mxu0 0.0
        %2364 = vmatprep.subr.mxu0 0.0
        %2365 = vmatpush1.msra.mxu0 0.0
        %2366 = vmatprep.subr.mxu0 0.0
        %2367 = vmatpush1.msra.mxu0 0.0
        %2368 = vmatprep.subr.mxu0 0.0
        %2369 = vmatpush1.msra.mxu0 0.0
        %2370 = vmatprep.subr.mxu0 0.0
        %2371 = vmatpush1.msra.mxu0 0.0
        %2372 = vmatprep.subr.mxu0 0.0
        %2373 = vmatpush1.msra.mxu0 0.0
        %2374 = vmatprep.subr.mxu0 0.0
        %2375 = vmatpush1.msra.mxu0 0.0
        %2376 = vmatprep.subr.mxu0 0.0
        %2377 = vmatpush1.msra.mxu0 0.0
        %2378 = vmatprep.subr.mxu0 0.0
        %2379 = vmatpush1.msra.mxu0 0.0
        %2380 = vmatprep.subr.mxu0 0.0
        %2381 = vmatpush1.msra.mxu0 0.0
        %2382 = vmatprep.subr.mxu0 0.0
        %2383 = vmatpush1.msra.mxu0 0.0
        %2384 = vmatprep.subr.mxu0 0.0
        %2385 = vmatpush1.msra.mxu0 0.0
        %2386 = vmatprep.subr.mxu0 0.0
        %2387 = vmatpush1.msra.mxu0 0.0
        %2388 = vmatprep.subr.mxu0 0.0
        %2389 = vmatpush1.msra.mxu0 0.0
        %2390 = vmatprep.mubr.f32.mxu0 0.0
        %v2391 = vand.u32 %v564, 4294901760
        %v2392 = vsub.f32 %v564, %v2391
        %v2393 = vand.u32 %v2392, 4294901760
        %v2394 = vsub.f32 %v2392, %v2393
        %v2395 = vand.u32 %v2394, 4294901760
        %2396 = vmatmul.mubr.f32.gmra.mrb[0].mxu0 %v2395
        %v2397 = vpop.f32.mrb[0].mxu0
        %v2398 = vadd.f32 0.0, %v2397
        %v2399 = vpop.f32.mrb[0].mxu0
        %2400 = vdwg.mxu0
        %2401 = vmatprep.subr.mxu0 0.0
        %v2402 = vand.u32 %v2323, 4294901760
        %v2403 = vsub.f32 %v2323, %v2402
        %v2404 = vand.u32 %v2403, 4294901760
        %v2405 = vsub.f32 %v2403, %v2404
        %v2406 = vand.u32 %v2405, 4294901760
        %2407 = vmatpush1.msra.mxu0 %v2406
        %2408 = vmatprep.subr.mxu0 0.0
        %2409 = vmatpush1.msra.mxu0 0.0
        %2410 = vmatprep.subr.mxu0 0.0
        %2411 = vmatpush1.msra.mxu0 0.0
        %2412 = vmatprep.subr.mxu0 0.0
        %2413 = vmatpush1.msra.mxu0 0.0
        %2414 = vmatprep.subr.mxu0 0.0
        %2415 = vmatpush1.msra.mxu0 0.0
        %2416 = vmatprep.subr.mxu0 0.0
        %2417 = vmatpush1.msra.mxu0 0.0
        %2418 = vmatprep.subr.mxu0 0.0
        %2419 = vmatpush1.msra.mxu0 0.0
        %2420 = vmatprep.subr.mxu0 0.0
        %2421 = vmatpush1.msra.mxu0 0.0
        %2422 = vmatprep.subr.mxu0 0.0
        %2423 = vmatpush1.msra.mxu0 0.0
        %2424 = vmatprep.subr.mxu0 0.0
        %2425 = vmatpush1.msra.mxu0 0.0
        %2426 = vmatprep.subr.mxu0 0.0
        %2427 = vmatpush1.msra.mxu0 0.0
        %2428 = vmatprep.subr.mxu0 0.0
        %2429 = vmatpush1.msra.mxu0 0.0
        %2430 = vmatprep.subr.mxu0 0.0
        %2431 = vmatpush1.msra.mxu0 0.0
        %2432 = vmatprep.subr.mxu0 0.0
        %2433 = vmatpush1.msra.mxu0 0.0
        %2434 = vmatprep.subr.mxu0 0.0
        %2435 = vmatpush1.msra.mxu0 0.0
        %2436 = vmatprep.subr.mxu0 0.0
        %2437 = vmatpush1.msra.mxu0 0.0
        %2438 = vmatprep.subr.mxu0 0.0
        %2439 = vmatpush1.msra.mxu0 0.0
        %2440 = vmatprep.subr.mxu0 0.0
        %2441 = vmatpush1.msra.mxu0 0.0
        %2442 = vmatprep.subr.mxu0 0.0
        %2443 = vmatpush1.msra.mxu0 0.0
        %2444 = vmatprep.subr.mxu0 0.0
        %2445 = vmatpush1.msra.mxu0 0.0
        %2446 = vmatprep.subr.mxu0 0.0
        %2447 = vmatpush1.msra.mxu0 0.0
        %2448 = vmatprep.subr.mxu0 0.0
        %2449 = vmatpush1.msra.mxu0 0.0
        %2450 = vmatprep.subr.mxu0 0.0
        %2451 = vmatpush1.msra.mxu0 0.0
        %2452 = vmatprep.subr.mxu0 0.0
        %2453 = vmatpush1.msra.mxu0 0.0
        %2454 = vmatprep.subr.mxu0 0.0
        %2455 = vmatpush1.msra.mxu0 0.0
        %2456 = vmatprep.subr.mxu0 0.0
        %2457 = vmatpush1.msra.mxu0 0.0
        %2458 = vmatprep.subr.mxu0 0.0
        %2459 = vmatpush1.msra.mxu0 0.0
        %2460 = vmatprep.subr.mxu0 0.0
        %2461 = vmatpush1.msra.mxu0 0.0
        %2462 = vmatprep.subr.mxu0 0.0
        %2463 = vmatpush1.msra.mxu0 0.0
        %2464 = vmatprep.subr.mxu0 0.0
        %2465 = vmatpush1.msra.mxu0 0.0
        %2466 = vmatprep.subr.mxu0 0.0
        %2467 = vmatpush1.msra.mxu0 0.0
        %2468 = vmatprep.subr.mxu0 0.0
        %2469 = vmatpush1.msra.mxu0 0.0
        %2470 = vmatprep.mubr.f32.mxu0 0.0
        %v2471 = vand.u32 %v564, 4294901760
        %2472 = vmatmul.mubr.f32.gmra.mrb[0].mxu0 %v2471
        %v2473 = vpop.f32.mrb[0].mxu0
        %v2474 = vadd.f32 %v2398, %v2473
        %v2475 = vpop.f32.mrb[0].mxu0
        %2476 = vdwg.mxu0
        %2477 = vmatprep.subr.mxu0 0.0
        %v2478 = vand.u32 %v2323, 4294901760
        %v2479 = vsub.f32 %v2323, %v2478
        %2480 = vmatpush1.msra.mxu0 %v2479
        %2481 = vmatprep.subr.mxu0 0.0
        %2482 = vmatpush1.msra.mxu0 0.0
        %2483 = vmatprep.subr.mxu0 0.0
        %2484 = vmatpush1.msra.mxu0 0.0
        %2485 = vmatprep.subr.mxu0 0.0
        %2486 = vmatpush1.msra.mxu0 0.0
        %2487 = vmatprep.subr.mxu0 0.0
        %2488 = vmatpush1.msra.mxu0 0.0
        %2489 = vmatprep.subr.mxu0 0.0
        %2490 = vmatpush1.msra.mxu0 0.0
        %2491 = vmatprep.subr.mxu0 0.0
        %2492 = vmatpush1.msra.mxu0 0.0
        %2493 = vmatprep.subr.mxu0 0.0
        %2494 = vmatpush1.msra.mxu0 0.0
        %2495 = vmatprep.subr.mxu0 0.0
        %2496 = vmatpush1.msra.mxu0 0.0
        %2497 = vmatprep.subr.mxu0 0.0
        %2498 = vmatpush1.msra.mxu0 0.0
        %2499 = vmatprep.subr.mxu0 0.0
        %2500 = vmatpush1.msra.mxu0 0.0
        %2501 = vmatprep.subr.mxu0 0.0
        %2502 = vmatpush1.msra.mxu0 0.0
        %2503 = vmatprep.subr.mxu0 0.0
        %2504 = vmatpush1.msra.mxu0 0.0
        %2505 = vmatprep.subr.mxu0 0.0
        %2506 = vmatpush1.msra.mxu0 0.0
        %2507 = vmatprep.subr.mxu0 0.0
        %2508 = vmatpush1.msra.mxu0 0.0
        %2509 = vmatprep.subr.mxu0 0.0
        %2510 = vmatpush1.msra.mxu0 0.0
        %2511 = vmatprep.subr.mxu0 0.0
        %2512 = vmatpush1.msra.mxu0 0.0
        %2513 = vmatprep.subr.mxu0 0.0
        %2514 = vmatpush1.msra.mxu0 0.0
        %2515 = vmatprep.subr.mxu0 0.0
        %2516 = vmatpush1.msra.mxu0 0.0
        %2517 = vmatprep.subr.mxu0 0.0
        %2518 = vmatpush1.msra.mxu0 0.0
        %2519 = vmatprep.subr.mxu0 0.0
        %2520 = vmatpush1.msra.mxu0 0.0
        %2521 = vmatprep.subr.mxu0 0.0
        %2522 = vmatpush1.msra.mxu0 0.0
        %2523 = vmatprep.subr.mxu0 0.0
        %2524 = vmatpush1.msra.mxu0 0.0
        %2525 = vmatprep.subr.mxu0 0.0
        %2526 = vmatpush1.msra.mxu0 0.0
        %2527 = vmatprep.subr.mxu0 0.0
        %2528 = vmatpush1.msra.mxu0 0.0
        %2529 = vmatprep.subr.mxu0 0.0
        %2530 = vmatpush1.msra.mxu0 0.0
        %2531 = vmatprep.subr.mxu0 0.0
        %2532 = vmatpush1.msra.mxu0 0.0
        %2533 = vmatprep.subr.mxu0 0.0
        %2534 = vmatpush1.msra.mxu0 0.0
        %2535 = vmatprep.subr.mxu0 0.0
        %2536 = vmatpush1.msra.mxu0 0.0
        %2537 = vmatprep.subr.mxu0 0.0
        %2538 = vmatpush1.msra.mxu0 0.0
        %2539 = vmatprep.subr.mxu0 0.0
        %2540 = vmatpush1.msra.mxu0 0.0
        %2541 = vmatprep.subr.mxu0 0.0
        %2542 = vmatpush1.msra.mxu0 0.0
        %2543 = vmatprep.mubr.f32.mxu0 0.0
        %v2544 = vand.u32 %v564, 4294901760
        %v2545 = vsub.f32 %v564, %v2544
        %2546 = vmatmul.mubr.f32.gmra.mrb[0].mxu0 %v2545
        %v2547 = vpop.f32.mrb[0].mxu0
        %v2548 = vadd.f32 %v2474, %v2547
        %v2549 = vpop.f32.mrb[0].mxu0
        %2550 = vdwg.mxu0
        %2551 = vmatprep.subr.mxu0 0.0
        %v2552 = vand.u32 %v2323, 4294901760
        %2553 = vmatpush1.msra.mxu0 %v2552
        %2554 = vmatprep.subr.mxu0 0.0
        %2555 = vmatpush1.msra.mxu0 0.0
        %2556 = vmatprep.subr.mxu0 0.0
        %2557 = vmatpush1.msra.mxu0 0.0
        %2558 = vmatprep.subr.mxu0 0.0
        %2559 = vmatpush1.msra.mxu0 0.0
        %2560 = vmatprep.subr.mxu0 0.0
        %2561 = vmatpush1.msra.mxu0 0.0
        %2562 = vmatprep.subr.mxu0 0.0
        %2563 = vmatpush1.msra.mxu0 0.0
        %2564 = vmatprep.subr.mxu0 0.0
        %2565 = vmatpush1.msra.mxu0 0.0
        %2566 = vmatprep.subr.mxu0 0.0
        %2567 = vmatpush1.msra.mxu0 0.0
        %2568 = vmatprep.subr.mxu0 0.0
        %2569 = vmatpush1.msra.mxu0 0.0
        %2570 = vmatprep.subr.mxu0 0.0
        %2571 = vmatpush1.msra.mxu0 0.0
        %2572 = vmatprep.subr.mxu0 0.0
        %2573 = vmatpush1.msra.mxu0 0.0
        %2574 = vmatprep.subr.mxu0 0.0
        %2575 = vmatpush1.msra.mxu0 0.0
        %2576 = vmatprep.subr.mxu0 0.0
        %2577 = vmatpush1.msra.mxu0 0.0
        %2578 = vmatprep.subr.mxu0 0.0
        %2579 = vmatpush1.msra.mxu0 0.0
        %2580 = vmatprep.subr.mxu0 0.0
        %2581 = vmatpush1.msra.mxu0 0.0
        %2582 = vmatprep.subr.mxu0 0.0
        %2583 = vmatpush1.msra.mxu0 0.0
        %2584 = vmatprep.subr.mxu0 0.0
        %2585 = vmatpush1.msra.mxu0 0.0
        %2586 = vmatprep.subr.mxu0 0.0
        %2587 = vmatpush1.msra.mxu0 0.0
        %2588 = vmatprep.subr.mxu0 0.0
        %2589 = vmatpush1.msra.mxu0 0.0
        %2590 = vmatprep.subr.mxu0 0.0
        %2591 = vmatpush1.msra.mxu0 0.0
        %2592 = vmatprep.subr.mxu0 0.0
        %2593 = vmatpush1.msra.mxu0 0.0
        %2594 = vmatprep.subr.mxu0 0.0
        %2595 = vmatpush1.msra.mxu0 0.0
        %2596 = vmatprep.subr.mxu0 0.0
        %2597 = vmatpush1.msra.mxu0 0.0
        %2598 = vmatprep.subr.mxu0 0.0
        %2599 = vmatpush1.msra.mxu0 0.0
        %2600 = vmatprep.subr.mxu0 0.0
        %2601 = vmatpush1.msra.mxu0 0.0
        %2602 = vmatprep.subr.mxu0 0.0
        %2603 = vmatpush1.msra.mxu0 0.0
        %2604 = vmatprep.subr.mxu0 0.0
        %2605 = vmatpush1.msra.mxu0 0.0
        %2606 = vmatprep.subr.mxu0 0.0
        %2607 = vmatpush1.msra.mxu0 0.0
        %2608 = vmatprep.subr.mxu0 0.0
        %2609 = vmatpush1.msra.mxu0 0.0
        %2610 = vmatprep.subr.mxu0 0.0
        %2611 = vmatpush1.msra.mxu0 0.0
        %2612 = vmatprep.subr.mxu0 0.0
        %2613 = vmatpush1.msra.mxu0 0.0
        %2614 = vmatprep.subr.mxu0 0.0
        %2615 = vmatpush1.msra.mxu0 0.0
        %2616 = vmatprep.mubr.f32.mxu0 0.0
        %v2617 = vand.u32 %v564, 4294901760
        %v2618 = vsub.f32 %v564, %v2617
        %v2619 = vand.u32 %v2618, 4294901760
        %2620 = vmatmul.mubr.f32.gmra.mrb[0].mxu0 %v2619
        %v2621 = vpop.f32.mrb[0].mxu0
        %v2622 = vadd.f32 %v2548, %v2621
        %v2623 = vpop.f32.mrb[0].mxu0
        %2624 = vdwg.mxu0
        %2625 = vmatprep.subr.mxu0 0.0
        %v2626 = vand.u32 %v2323, 4294901760
        %v2627 = vsub.f32 %v2323, %v2626
        %v2628 = vand.u32 %v2627, 4294901760
        %2629 = vmatpush1.msra.mxu0 %v2628
        %2630 = vmatprep.subr.mxu0 0.0
        %2631 = vmatpush1.msra.mxu0 0.0
        %2632 = vmatprep.subr.mxu0 0.0
        %2633 = vmatpush1.msra.mxu0 0.0
        %2634 = vmatprep.subr.mxu0 0.0
        %2635 = vmatpush1.msra.mxu0 0.0
        %2636 = vmatprep.subr.mxu0 0.0
        %2637 = vmatpush1.msra.mxu0 0.0
        %2638 = vmatprep.subr.mxu0 0.0
        %2639 = vmatpush1.msra.mxu0 0.0
        %2640 = vmatprep.subr.mxu0 0.0
        %2641 = vmatpush1.msra.mxu0 0.0
        %2642 = vmatprep.subr.mxu0 0.0
        %2643 = vmatpush1.msra.mxu0 0.0
        %2644 = vmatprep.subr.mxu0 0.0
        %2645 = vmatpush1.msra.mxu0 0.0
        %2646 = vmatprep.subr.mxu0 0.0
        %2647 = vmatpush1.msra.mxu0 0.0
        %2648 = vmatprep.subr.mxu0 0.0
        %2649 = vmatpush1.msra.mxu0 0.0
        %2650 = vmatprep.subr.mxu0 0.0
        %2651 = vmatpush1.msra.mxu0 0.0
        %2652 = vmatprep.subr.mxu0 0.0
        %2653 = vmatpush1.msra.mxu0 0.0
        %2654 = vmatprep.subr.mxu0 0.0
        %2655 = vmatpush1.msra.mxu0 0.0
        %2656 = vmatprep.subr.mxu0 0.0
        %2657 = vmatpush1.msra.mxu0 0.0
        %2658 = vmatprep.subr.mxu0 0.0
        %2659 = vmatpush1.msra.mxu0 0.0
        %2660 = vmatprep.subr.mxu0 0.0
        %2661 = vmatpush1.msra.mxu0 0.0
        %2662 = vmatprep.subr.mxu0 0.0
        %2663 = vmatpush1.msra.mxu0 0.0
        %2664 = vmatprep.subr.mxu0 0.0
        %2665 = vmatpush1.msra.mxu0 0.0
        %2666 = vmatprep.subr.mxu0 0.0
        %2667 = vmatpush1.msra.mxu0 0.0
        %2668 = vmatprep.subr.mxu0 0.0
        %2669 = vmatpush1.msra.mxu0 0.0
        %2670 = vmatprep.subr.mxu0 0.0
        %2671 = vmatpush1.msra.mxu0 0.0
        %2672 = vmatprep.subr.mxu0 0.0
        %2673 = vmatpush1.msra.mxu0 0.0
        %2674 = vmatprep.subr.mxu0 0.0
        %2675 = vmatpush1.msra.mxu0 0.0
        %2676 = vmatprep.subr.mxu0 0.0
        %2677 = vmatpush1.msra.mxu0 0.0
        %2678 = vmatprep.subr.mxu0 0.0
        %2679 = vmatpush1.msra.mxu0 0.0
        %2680 = vmatprep.subr.mxu0 0.0
        %2681 = vmatpush1.msra.mxu0 0.0
        %2682 = vmatprep.subr.mxu0 0.0
        %2683 = vmatpush1.msra.mxu0 0.0
        %2684 = vmatprep.subr.mxu0 0.0
        %2685 = vmatpush1.msra.mxu0 0.0
        %2686 = vmatprep.subr.mxu0 0.0
        %2687 = vmatpush1.msra.mxu0 0.0
        %2688 = vmatprep.subr.mxu0 0.0
        %2689 = vmatpush1.msra.mxu0 0.0
        %2690 = vmatprep.subr.mxu0 0.0
        %2691 = vmatpush1.msra.mxu0 0.0
        %2692 = vmatprep.mubr.f32.mxu0 0.0
        %v2693 = vand.u32 %v564, 4294901760
        %2694 = vmatmul.mubr.f32.gmra.mrb[0].mxu0 %v2693
        %v2695 = vpop.f32.mrb[0].mxu0
        %v2696 = vadd.f32 %v2622, %v2695
        %v2697 = vpop.f32.mrb[0].mxu0
        %2698 = vdwg.mxu0
        %2699 = vmatprep.subr.mxu0 0.0
        %v2700 = vand.u32 %v2323, 4294901760
        %2701 = vmatpush1.msra.mxu0 %v2700
        %2702 = vmatprep.subr.mxu0 0.0
        %2703 = vmatpush1.msra.mxu0 0.0
        %2704 = vmatprep.subr.mxu0 0.0
        %2705 = vmatpush1.msra.mxu0 0.0
        %2706 = vmatprep.subr.mxu0 0.0
        %2707 = vmatpush1.msra.mxu0 0.0
        %2708 = vmatprep.subr.mxu0 0.0
        %2709 = vmatpush1.msra.mxu0 0.0
        %2710 = vmatprep.subr.mxu0 0.0
        %2711 = vmatpush1.msra.mxu0 0.0
        %2712 = vmatprep.subr.mxu0 0.0
        %2713 = vmatpush1.msra.mxu0 0.0
        %2714 = vmatprep.subr.mxu0 0.0
        %2715 = vmatpush1.msra.mxu0 0.0
        %2716 = vmatprep.subr.mxu0 0.0
        %2717 = vmatpush1.msra.mxu0 0.0
        %2718 = vmatprep.subr.mxu0 0.0
        %2719 = vmatpush1.msra.mxu0 0.0
        %2720 = vmatprep.subr.mxu0 0.0
        %2721 = vmatpush1.msra.mxu0 0.0
        %2722 = vmatprep.subr.mxu0 0.0
        %2723 = vmatpush1.msra.mxu0 0.0
        %2724 = vmatprep.subr.mxu0 0.0
        %2725 = vmatpush1.msra.mxu0 0.0
        %2726 = vmatprep.subr.mxu0 0.0
        %2727 = vmatpush1.msra.mxu0 0.0
        %2728 = vmatprep.subr.mxu0 0.0
        %2729 = vmatpush1.msra.mxu0 0.0
        %2730 = vmatprep.subr.mxu0 0.0
        %2731 = vmatpush1.msra.mxu0 0.0
        %2732 = vmatprep.subr.mxu0 0.0
        %2733 = vmatpush1.msra.mxu0 0.0
        %2734 = vmatprep.subr.mxu0 0.0
        %2735 = vmatpush1.msra.mxu0 0.0
        %2736 = vmatprep.subr.mxu0 0.0
        %2737 = vmatpush1.msra.mxu0 0.0
        %2738 = vmatprep.subr.mxu0 0.0
        %2739 = vmatpush1.msra.mxu0 0.0
        %2740 = vmatprep.subr.mxu0 0.0
        %2741 = vmatpush1.msra.mxu0 0.0
        %2742 = vmatprep.subr.mxu0 0.0
        %2743 = vmatpush1.msra.mxu0 0.0
        %2744 = vmatprep.subr.mxu0 0.0
        %2745 = vmatpush1.msra.mxu0 0.0
        %2746 = vmatprep.subr.mxu0 0.0
        %2747 = vmatpush1.msra.mxu0 0.0
        %2748 = vmatprep.subr.mxu0 0.0
        %2749 = vmatpush1.msra.mxu0 0.0
        %2750 = vmatprep.subr.mxu0 0.0
        %2751 = vmatpush1.msra.mxu0 0.0
        %2752 = vmatprep.subr.mxu0 0.0
        %2753 = vmatpush1.msra.mxu0 0.0
        %2754 = vmatprep.subr.mxu0 0.0
        %2755 = vmatpush1.msra.mxu0 0.0
        %2756 = vmatprep.subr.mxu0 0.0
        %2757 = vmatpush1.msra.mxu0 0.0
        %2758 = vmatprep.subr.mxu0 0.0
        %2759 = vmatpush1.msra.mxu0 0.0
        %2760 = vmatprep.subr.mxu0 0.0
        %2761 = vmatpush1.msra.mxu0 0.0
        %2762 = vmatprep.subr.mxu0 0.0
        %2763 = vmatpush1.msra.mxu0 0.0
        %2764 = vmatprep.mubr.f32.mxu0 0.0
        %v2765 = vand.u32 %v564, 4294901760
        %2766 = vmatmul.mubr.f32.gmra.mrb[0].mxu0 %v2765
        %v2767 = vpop.f32.mrb[0].mxu0
        %v2768 = vadd.f32 %v2696, %v2767
        %v2769 = vpop.f32.mrb[0].mxu0
        %2770 = vdwg.mxu0
        %v2772 = vsel %vm535, %v2321, 0
        %2774 = vmatprep.subr.mxu0 0.0
        %v2775 = vand.u32 %v2772, 4294901760
        %2776 = vmatpush1.msra.mxu0 %v2775
        %2777 = vmatprep.subr.mxu0 0.0
        %2778 = vmatpush1.msra.mxu0 0.0
        %2779 = vmatprep.subr.mxu0 0.0
        %2780 = vmatpush1.msra.mxu0 0.0
        %2781 = vmatprep.subr.mxu0 0.0
        %2782 = vmatpush1.msra.mxu0 0.0
        %2783 = vmatprep.subr.mxu0 0.0
        %2784 = vmatpush1.msra.mxu0 0.0
        %2785 = vmatprep.subr.mxu0 0.0
        %2786 = vmatpush1.msra.mxu0 0.0
        %2787 = vmatprep.subr.mxu0 0.0
        %2788 = vmatpush1.msra.mxu0 0.0
        %2789 = vmatprep.subr.mxu0 0.0
        %2790 = vmatpush1.msra.mxu0 0.0
        %2791 = vmatprep.subr.mxu0 0.0
        %2792 = vmatpush1.msra.mxu0 0.0
        %2793 = vmatprep.subr.mxu0 0.0
        %2794 = vmatpush1.msra.mxu0 0.0
        %2795 = vmatprep.subr.mxu0 0.0
        %2796 = vmatpush1.msra.mxu0 0.0
        %2797 = vmatprep.subr.mxu0 0.0
        %2798 = vmatpush1.msra.mxu0 0.0
        %2799 = vmatprep.subr.mxu0 0.0
        %2800 = vmatpush1.msra.mxu0 0.0
        %2801 = vmatprep.subr.mxu0 0.0
        %2802 = vmatpush1.msra.mxu0 0.0
        %2803 = vmatprep.subr.mxu0 0.0
        %2804 = vmatpush1.msra.mxu0 0.0
        %2805 = vmatprep.subr.mxu0 0.0
        %2806 = vmatpush1.msra.mxu0 0.0
        %2807 = vmatprep.subr.mxu0 0.0
        %2808 = vmatpush1.msra.mxu0 0.0
        %2809 = vmatprep.subr.mxu0 0.0
        %2810 = vmatpush1.msra.mxu0 0.0
        %2811 = vmatprep.subr.mxu0 0.0
        %2812 = vmatpush1.msra.mxu0 0.0
        %2813 = vmatprep.subr.mxu0 0.0
        %2814 = vmatpush1.msra.mxu0 0.0
        %2815 = vmatprep.subr.mxu0 0.0
        %2816 = vmatpush1.msra.mxu0 0.0
        %2817 = vmatprep.subr.mxu0 0.0
        %2818 = vmatpush1.msra.mxu0 0.0
        %2819 = vmatprep.subr.mxu0 0.0
        %2820 = vmatpush1.msra.mxu0 0.0
        %2821 = vmatprep.subr.mxu0 0.0
        %2822 = vmatpush1.msra.mxu0 0.0
        %2823 = vmatprep.subr.mxu0 0.0
        %2824 = vmatpush1.msra.mxu0 0.0
        %2825 = vmatprep.subr.mxu0 0.0
        %2826 = vmatpush1.msra.mxu0 0.0
        %2827 = vmatprep.subr.mxu0 0.0
        %2828 = vmatpush1.msra.mxu0 0.0
        %2829 = vmatprep.subr.mxu0 0.0
        %2830 = vmatpush1.msra.mxu0 0.0
        %2831 = vmatprep.subr.mxu0 0.0
        %2832 = vmatpush1.msra.mxu0 0.0
        %2833 = vmatprep.subr.mxu0 0.0
        %2834 = vmatpush1.msra.mxu0 0.0
        %2835 = vmatprep.subr.mxu0 0.0
        %2836 = vmatpush1.msra.mxu0 0.0
        %2837 = vmatprep.subr.mxu0 0.0
        %2838 = vmatpush1.msra.mxu0 0.0
        %2839 = vmatprep.mubr.f32.mxu0 0.0
        %v2840 = vand.u32 %v564, 4294901760
        %v2841 = vsub.f32 %v564, %v2840
        %v2842 = vand.u32 %v2841, 4294901760
        %v2843 = vsub.f32 %v2841, %v2842
        %v2844 = vand.u32 %v2843, 4294901760
        %2845 = vmatmul.mubr.f32.gmra.mrb[0].mxu0 %v2844
        %v2846 = vpop.f32.mrb[0].mxu0
        %v2847 = vadd.f32 0.0, %v2846
        %v2848 = vpop.f32.mrb[0].mxu0
        %2849 = vdwg.mxu0
        %2850 = vmatprep.subr.mxu0 0.0
        %v2851 = vand.u32 %v2772, 4294901760
        %v2852 = vsub.f32 %v2772, %v2851
        %v2853 = vand.u32 %v2852, 4294901760
        %v2854 = vsub.f32 %v2852, %v2853
        %v2855 = vand.u32 %v2854, 4294901760
        %2856 = vmatpush1.msra.mxu0 %v2855
        %2857 = vmatprep.subr.mxu0 0.0
        %2858 = vmatpush1.msra.mxu0 0.0
        %2859 = vmatprep.subr.mxu0 0.0
        %2860 = vmatpush1.msra.mxu0 0.0
        %2861 = vmatprep.subr.mxu0 0.0
        %2862 = vmatpush1.msra.mxu0 0.0
        %2863 = vmatprep.subr.mxu0 0.0
        %2864 = vmatpush1.msra.mxu0 0.0
        %2865 = vmatprep.subr.mxu0 0.0
        %2866 = vmatpush1.msra.mxu0 0.0
        %2867 = vmatprep.subr.mxu0 0.0
        %2868 = vmatpush1.msra.mxu0 0.0
        %2869 = vmatprep.subr.mxu0 0.0
        %2870 = vmatpush1.msra.mxu0 0.0
        %2871 = vmatprep.subr.mxu0 0.0
        %2872 = vmatpush1.msra.mxu0 0.0
        %2873 = vmatprep.subr.mxu0 0.0
        %2874 = vmatpush1.msra.mxu0 0.0
        %2875 = vmatprep.subr.mxu0 0.0
        %2876 = vmatpush1.msra.mxu0 0.0
        %2877 = vmatprep.subr.mxu0 0.0
        %2878 = vmatpush1.msra.mxu0 0.0
        %2879 = vmatprep.subr.mxu0 0.0
        %2880 = vmatpush1.msra.mxu0 0.0
        %2881 = vmatprep.subr.mxu0 0.0
        %2882 = vmatpush1.msra.mxu0 0.0
        %2883 = vmatprep.subr.mxu0 0.0
        %2884 = vmatpush1.msra.mxu0 0.0
        %2885 = vmatprep.subr.mxu0 0.0
        %2886 = vmatpush1.msra.mxu0 0.0
        %2887 = vmatprep.subr.mxu0 0.0
        %2888 = vmatpush1.msra.mxu0 0.0
        %2889 = vmatprep.subr.mxu0 0.0
        %2890 = vmatpush1.msra.mxu0 0.0
        %2891 = vmatprep.subr.mxu0 0.0
        %2892 = vmatpush1.msra.mxu0 0.0
        %2893 = vmatprep.subr.mxu0 0.0
        %2894 = vmatpush1.msra.mxu0 0.0
        %2895 = vmatprep.subr.mxu0 0.0
        %2896 = vmatpush1.msra.mxu0 0.0
        %2897 = vmatprep.subr.mxu0 0.0
        %2898 = vmatpush1.msra.mxu0 0.0
        %2899 = vmatprep.subr.mxu0 0.0
        %2900 = vmatpush1.msra.mxu0 0.0
        %2901 = vmatprep.subr.mxu0 0.0
        %2902 = vmatpush1.msra.mxu0 0.0
        %2903 = vmatprep.subr.mxu0 0.0
        %2904 = vmatpush1.msra.mxu0 0.0
        %2905 = vmatprep.subr.mxu0 0.0
        %2906 = vmatpush1.msra.mxu0 0.0
        %2907 = vmatprep.subr.mxu0 0.0
        %2908 = vmatpush1.msra.mxu0 0.0
        %2909 = vmatprep.subr.mxu0 0.0
        %2910 = vmatpush1.msra.mxu0 0.0
        %2911 = vmatprep.subr.mxu0 0.0
        %2912 = vmatpush1.msra.mxu0 0.0
        %2913 = vmatprep.subr.mxu0 0.0
        %2914 = vmatpush1.msra.mxu0 0.0
        %2915 = vmatprep.subr.mxu0 0.0
        %2916 = vmatpush1.msra.mxu0 0.0
        %2917 = vmatprep.subr.mxu0 0.0
        %2918 = vmatpush1.msra.mxu0 0.0
        %2919 = vmatprep.mubr.f32.mxu0 0.0
        %v2920 = vand.u32 %v564, 4294901760
        %2921 = vmatmul.mubr.f32.gmra.mrb[0].mxu0 %v2920
        %v2922 = vpop.f32.mrb[0].mxu0
        %v2923 = vadd.f32 %v2847, %v2922
        %v2924 = vpop.f32.mrb[0].mxu0
        %2925 = vdwg.mxu0
        %2926 = vmatprep.subr.mxu0 0.0
        %v2927 = vand.u32 %v2772, 4294901760
        %v2928 = vsub.f32 %v2772, %v2927
        %2929 = vmatpush1.msra.mxu0 %v2928
        %2930 = vmatprep.subr.mxu0 0.0
        %2931 = vmatpush1.msra.mxu0 0.0
        %2932 = vmatprep.subr.mxu0 0.0
        %2933 = vmatpush1.msra.mxu0 0.0
        %2934 = vmatprep.subr.mxu0 0.0
        %2935 = vmatpush1.msra.mxu0 0.0
        %2936 = vmatprep.subr.mxu0 0.0
        %2937 = vmatpush1.msra.mxu0 0.0
        %2938 = vmatprep.subr.mxu0 0.0
        %2939 = vmatpush1.msra.mxu0 0.0
        %2940 = vmatprep.subr.mxu0 0.0
        %2941 = vmatpush1.msra.mxu0 0.0
        %2942 = vmatprep.subr.mxu0 0.0
        %2943 = vmatpush1.msra.mxu0 0.0
        %2944 = vmatprep.subr.mxu0 0.0
        %2945 = vmatpush1.msra.mxu0 0.0
        %2946 = vmatprep.subr.mxu0 0.0
        %2947 = vmatpush1.msra.mxu0 0.0
        %2948 = vmatprep.subr.mxu0 0.0
        %2949 = vmatpush1.msra.mxu0 0.0
        %2950 = vmatprep.subr.mxu0 0.0
        %2951 = vmatpush1.msra.mxu0 0.0
        %2952 = vmatprep.subr.mxu0 0.0
        %2953 = vmatpush1.msra.mxu0 0.0
        %2954 = vmatprep.subr.mxu0 0.0
        %2955 = vmatpush1.msra.mxu0 0.0
        %2956 = vmatprep.subr.mxu0 0.0
        %2957 = vmatpush1.msra.mxu0 0.0
        %2958 = vmatprep.subr.mxu0 0.0
        %2959 = vmatpush1.msra.mxu0 0.0
        %2960 = vmatprep.subr.mxu0 0.0
        %2961 = vmatpush1.msra.mxu0 0.0
        %2962 = vmatprep.subr.mxu0 0.0
        %2963 = vmatpush1.msra.mxu0 0.0
        %2964 = vmatprep.subr.mxu0 0.0
        %2965 = vmatpush1.msra.mxu0 0.0
        %2966 = vmatprep.subr.mxu0 0.0
        %2967 = vmatpush1.msra.mxu0 0.0
        %2968 = vmatprep.subr.mxu0 0.0
        %2969 = vmatpush1.msra.mxu0 0.0
        %2970 = vmatprep.subr.mxu0 0.0
        %2971 = vmatpush1.msra.mxu0 0.0
        %2972 = vmatprep.subr.mxu0 0.0
        %2973 = vmatpush1.msra.mxu0 0.0
        %2974 = vmatprep.subr.mxu0 0.0
        %2975 = vmatpush1.msra.mxu0 0.0
        %2976 = vmatprep.subr.mxu0 0.0
        %2977 = vmatpush1.msra.mxu0 0.0
        %2978 = vmatprep.subr.mxu0 0.0
        %2979 = vmatpush1.msra.mxu0 0.0
        %2980 = vmatprep.subr.mxu0 0.0
        %2981 = vmatpush1.msra.mxu0 0.0
        %2982 = vmatprep.subr.mxu0 0.0
        %2983 = vmatpush1.msra.mxu0 0.0
        %2984 = vmatprep.subr.mxu0 0.0
        %2985 = vmatpush1.msra.mxu0 0.0
        %2986 = vmatprep.subr.mxu0 0.0
        %2987 = vmatpush1.msra.mxu0 0.0
        %2988 = vmatprep.subr.mxu0 0.0
        %2989 = vmatpush1.msra.mxu0 0.0
        %2990 = vmatprep.subr.mxu0 0.0
        %2991 = vmatpush1.msra.mxu0 0.0
        %2992 = vmatprep.mubr.f32.mxu0 0.0
        %v2993 = vand.u32 %v564, 4294901760
        %v2994 = vsub.f32 %v564, %v2993
        %2995 = vmatmul.mubr.f32.gmra.mrb[0].mxu0 %v2994
        %v2996 = vpop.f32.mrb[0].mxu0
        %v2997 = vadd.f32 %v2923, %v2996
        %v2998 = vpop.f32.mrb[0].mxu0
        %2999 = vdwg.mxu0
        %3000 = vmatprep.subr.mxu0 0.0
        %v3001 = vand.u32 %v2772, 4294901760
        %3002 = vmatpush1.msra.mxu0 %v3001
        %3003 = vmatprep.subr.mxu0 0.0
        %3004 = vmatpush1.msra.mxu0 0.0
        %3005 = vmatprep.subr.mxu0 0.0
        %3006 = vmatpush1.msra.mxu0 0.0
        %3007 = vmatprep.subr.mxu0 0.0
        %3008 = vmatpush1.msra.mxu0 0.0
        %3009 = vmatprep.subr.mxu0 0.0
        %3010 = vmatpush1.msra.mxu0 0.0
        %3011 = vmatprep.subr.mxu0 0.0
        %3012 = vmatpush1.msra.mxu0 0.0
        %3013 = vmatprep.subr.mxu0 0.0
        %3014 = vmatpush1.msra.mxu0 0.0
        %3015 = vmatprep.subr.mxu0 0.0
        %3016 = vmatpush1.msra.mxu0 0.0
        %3017 = vmatprep.subr.mxu0 0.0
        %3018 = vmatpush1.msra.mxu0 0.0
        %3019 = vmatprep.subr.mxu0 0.0
        %3020 = vmatpush1.msra.mxu0 0.0
        %3021 = vmatprep.subr.mxu0 0.0
        %3022 = vmatpush1.msra.mxu0 0.0
        %3023 = vmatprep.subr.mxu0 0.0
        %3024 = vmatpush1.msra.mxu0 0.0
        %3025 = vmatprep.subr.mxu0 0.0
        %3026 = vmatpush1.msra.mxu0 0.0
        %3027 = vmatprep.subr.mxu0 0.0
        %3028 = vmatpush1.msra.mxu0 0.0
        %3029 = vmatprep.subr.mxu0 0.0
        %3030 = vmatpush1.msra.mxu0 0.0
        %3031 = vmatprep.subr.mxu0 0.0
        %3032 = vmatpush1.msra.mxu0 0.0
        %3033 = vmatprep.subr.mxu0 0.0
        %3034 = vmatpush1.msra.mxu0 0.0
        %3035 = vmatprep.subr.mxu0 0.0
        %3036 = vmatpush1.msra.mxu0 0.0
        %3037 = vmatprep.subr.mxu0 0.0
        %3038 = vmatpush1.msra.mxu0 0.0
        %3039 = vmatprep.subr.mxu0 0.0
        %3040 = vmatpush1.msra.mxu0 0.0
        %3041 = vmatprep.subr.mxu0 0.0
        %3042 = vmatpush1.msra.mxu0 0.0
        %3043 = vmatprep.subr.mxu0 0.0
        %3044 = vmatpush1.msra.mxu0 0.0
        %3045 = vmatprep.subr.mxu0 0.0
        %3046 = vmatpush1.msra.mxu0 0.0
        %3047 = vmatprep.subr.mxu0 0.0
        %3048 = vmatpush1.msra.mxu0 0.0
        %3049 = vmatprep.subr.mxu0 0.0
        %3050 = vmatpush1.msra.mxu0 0.0
        %3051 = vmatprep.subr.mxu0 0.0
        %3052 = vmatpush1.msra.mxu0 0.0
        %3053 = vmatprep.subr.mxu0 0.0
        %3054 = vmatpush1.msra.mxu0 0.0
        %3055 = vmatprep.subr.mxu0 0.0
        %3056 = vmatpush1.msra.mxu0 0.0
        %3057 = vmatprep.subr.mxu0 0.0
        %3058 = vmatpush1.msra.mxu0 0.0
        %3059 = vmatprep.subr.mxu0 0.0
        %3060 = vmatpush1.msra.mxu0 0.0
        %3061 = vmatprep.subr.mxu0 0.0
        %3062 = vmatpush1.msra.mxu0 0.0
        %3063 = vmatprep.subr.mxu0 0.0
        %3064 = vmatpush1.msra.mxu0 0.0
        %3065 = vmatprep.mubr.f32.mxu0 0.0
        %v3066 = vand.u32 %v564, 4294901760
        %v3067 = vsub.f32 %v564, %v3066
        %v3068 = vand.u32 %v3067, 4294901760
        %3069 = vmatmul.mubr.f32.gmra.mrb[0].mxu0 %v3068
        %v3070 = vpop.f32.mrb[0].mxu0
        %v3071 = vadd.f32 %v2997, %v3070
        %v3072 = vpop.f32.mrb[0].mxu0
        %3073 = vdwg.mxu0
        %3074 = vmatprep.subr.mxu0 0.0
        %v3075 = vand.u32 %v2772, 4294901760
        %v3076 = vsub.f32 %v2772, %v3075
        %v3077 = vand.u32 %v3076, 4294901760
        %3078 = vmatpush1.msra.mxu0 %v3077
        %3079 = vmatprep.subr.mxu0 0.0
        %3080 = vmatpush1.msra.mxu0 0.0
        %3081 = vmatprep.subr.mxu0 0.0
        %3082 = vmatpush1.msra.mxu0 0.0
        %3083 = vmatprep.subr.mxu0 0.0
        %3084 = vmatpush1.msra.mxu0 0.0
        %3085 = vmatprep.subr.mxu0 0.0
        %3086 = vmatpush1.msra.mxu0 0.0
        %3087 = vmatprep.subr.mxu0 0.0
        %3088 = vmatpush1.msra.mxu0 0.0
        %3089 = vmatprep.subr.mxu0 0.0
        %3090 = vmatpush1.msra.mxu0 0.0
        %3091 = vmatprep.subr.mxu0 0.0
        %3092 = vmatpush1.msra.mxu0 0.0
        %3093 = vmatprep.subr.mxu0 0.0
        %3094 = vmatpush1.msra.mxu0 0.0
        %3095 = vmatprep.subr.mxu0 0.0
        %3096 = vmatpush1.msra.mxu0 0.0
        %3097 = vmatprep.subr.mxu0 0.0
        %3098 = vmatpush1.msra.mxu0 0.0
        %3099 = vmatprep.subr.mxu0 0.0
        %3100 = vmatpush1.msra.mxu0 0.0
        %3101 = vmatprep.subr.mxu0 0.0
        %3102 = vmatpush1.msra.mxu0 0.0
        %3103 = vmatprep.subr.mxu0 0.0
        %3104 = vmatpush1.msra.mxu0 0.0
        %3105 = vmatprep.subr.mxu0 0.0
        %3106 = vmatpush1.msra.mxu0 0.0
        %3107 = vmatprep.subr.mxu0 0.0
        %3108 = vmatpush1.msra.mxu0 0.0
        %3109 = vmatprep.subr.mxu0 0.0
        %3110 = vmatpush1.msra.mxu0 0.0
        %3111 = vmatprep.subr.mxu0 0.0
        %3112 = vmatpush1.msra.mxu0 0.0
        %3113 = vmatprep.subr.mxu0 0.0
        %3114 = vmatpush1.msra.mxu0 0.0
        %3115 = vmatprep.subr.mxu0 0.0
        %3116 = vmatpush1.msra.mxu0 0.0
        %3117 = vmatprep.subr.mxu0 0.0
        %3118 = vmatpush1.msra.mxu0 0.0
        %3119 = vmatprep.subr.mxu0 0.0
        %3120 = vmatpush1.msra.mxu0 0.0
        %3121 = vmatprep.subr.mxu0 0.0
        %3122 = vmatpush1.msra.mxu0 0.0
        %3123 = vmatprep.subr.mxu0 0.0
        %3124 = vmatpush1.msra.mxu0 0.0
        %3125 = vmatprep.subr.mxu0 0.0
        %3126 = vmatpush1.msra.mxu0 0.0
        %3127 = vmatprep.subr.mxu0 0.0
        %3128 = vmatpush1.msra.mxu0 0.0
        %3129 = vmatprep.subr.mxu0 0.0
        %3130 = vmatpush1.msra.mxu0 0.0
        %3131 = vmatprep.subr.mxu0 0.0
        %3132 = vmatpush1.msra.mxu0 0.0
        %3133 = vmatprep.subr.mxu0 0.0
        %3134 = vmatpush1.msra.mxu0 0.0
        %3135 = vmatprep.subr.mxu0 0.0
        %3136 = vmatpush1.msra.mxu0 0.0
        %3137 = vmatprep.subr.mxu0 0.0
        %3138 = vmatpush1.msra.mxu0 0.0
        %3139 = vmatprep.subr.mxu0 0.0
        %3140 = vmatpush1.msra.mxu0 0.0
        %3141 = vmatprep.mubr.f32.mxu0 0.0
        %v3142 = vand.u32 %v564, 4294901760
        %3143 = vmatmul.mubr.f32.gmra.mrb[0].mxu0 %v3142
        %v3144 = vpop.f32.mrb[0].mxu0
        %v3145 = vadd.f32 %v3071, %v3144
        %v3146 = vpop.f32.mrb[0].mxu0
        %3147 = vdwg.mxu0
        %3148 = vmatprep.subr.mxu0 0.0
        %v3149 = vand.u32 %v2772, 4294901760
        %3150 = vmatpush1.msra.mxu0 %v3149
        %3151 = vmatprep.subr.mxu0 0.0
        %3152 = vmatpush1.msra.mxu0 0.0
        %3153 = vmatprep.subr.mxu0 0.0
        %3154 = vmatpush1.msra.mxu0 0.0
        %3155 = vmatprep.subr.mxu0 0.0
        %3156 = vmatpush1.msra.mxu0 0.0
        %3157 = vmatprep.subr.mxu0 0.0
        %3158 = vmatpush1.msra.mxu0 0.0
        %3159 = vmatprep.subr.mxu0 0.0
        %3160 = vmatpush1.msra.mxu0 0.0
        %3161 = vmatprep.subr.mxu0 0.0
        %3162 = vmatpush1.msra.mxu0 0.0
        %3163 = vmatprep.subr.mxu0 0.0
        %3164 = vmatpush1.msra.mxu0 0.0
        %3165 = vmatprep.subr.mxu0 0.0
        %3166 = vmatpush1.msra.mxu0 0.0
        %3167 = vmatprep.subr.mxu0 0.0
        %3168 = vmatpush1.msra.mxu0 0.0
        %3169 = vmatprep.subr.mxu0 0.0
        %3170 = vmatpush1.msra.mxu0 0.0
        %3171 = vmatprep.subr.mxu0 0.0
        %3172 = vmatpush1.msra.mxu0 0.0
        %3173 = vmatprep.subr.mxu0 0.0
        %3174 = vmatpush1.msra.mxu0 0.0
        %3175 = vmatprep.subr.mxu0 0.0
        %3176 = vmatpush1.msra.mxu0 0.0
        %3177 = vmatprep.subr.mxu0 0.0
        %3178 = vmatpush1.msra.mxu0 0.0
        %3179 = vmatprep.subr.mxu0 0.0
        %3180 = vmatpush1.msra.mxu0 0.0
        %3181 = vmatprep.subr.mxu0 0.0
        %3182 = vmatpush1.msra.mxu0 0.0
        %3183 = vmatprep.subr.mxu0 0.0
        %3184 = vmatpush1.msra.mxu0 0.0
        %3185 = vmatprep.subr.mxu0 0.0
        %3186 = vmatpush1.msra.mxu0 0.0
        %3187 = vmatprep.subr.mxu0 0.0
        %3188 = vmatpush1.msra.mxu0 0.0
        %3189 = vmatprep.subr.mxu0 0.0
        %3190 = vmatpush1.msra.mxu0 0.0
        %3191 = vmatprep.subr.mxu0 0.0
        %3192 = vmatpush1.msra.mxu0 0.0
        %3193 = vmatprep.subr.mxu0 0.0
        %3194 = vmatpush1.msra.mxu0 0.0
        %3195 = vmatprep.subr.mxu0 0.0
        %3196 = vmatpush1.msra.mxu0 0.0
        %3197 = vmatprep.subr.mxu0 0.0
        %3198 = vmatpush1.msra.mxu0 0.0
        %3199 = vmatprep.subr.mxu0 0.0
        %3200 = vmatpush1.msra.mxu0 0.0
        %3201 = vmatprep.subr.mxu0 0.0
        %3202 = vmatpush1.msra.mxu0 0.0
        %3203 = vmatprep.subr.mxu0 0.0
        %3204 = vmatpush1.msra.mxu0 0.0
        %3205 = vmatprep.subr.mxu0 0.0
        %3206 = vmatpush1.msra.mxu0 0.0
        %3207 = vmatprep.subr.mxu0 0.0
        %3208 = vmatpush1.msra.mxu0 0.0
        %3209 = vmatprep.subr.mxu0 0.0
        %3210 = vmatpush1.msra.mxu0 0.0
        %3211 = vmatprep.subr.mxu0 0.0
        %3212 = vmatpush1.msra.mxu0 0.0
        %3213 = vmatprep.mubr.f32.mxu0 0.0
        %v3214 = vand.u32 %v564, 4294901760
        %3215 = vmatmul.mubr.f32.gmra.mrb[0].mxu0 %v3214
        %v3216 = vpop.f32.mrb[0].mxu0
        %v3217 = vadd.f32 %v3145, %v3216
        %v3218 = vpop.f32.mrb[0].mxu0
        %3219 = vdwg.mxu0
        %v3220 = vmul.f32 %v2768, %v2768
        %v3221 = vsub.f32 %v3217, %v3220
        %v3222 = vmax.f32 %v3221, 0.0
        %v3223 = vadd.f32 %v3222, 1e-05
        %v3224 = vrsqrt.pop %v3223
        %v3225 = vmul.f32 %v3224, %v2298
        %v3226 = vmul.f32 %v2768, %v3225
        %v3227 = vsub.f32 %v2299, %v3226
        %3229 = vset.pattern.permute.xlu0 0
        %3230 = vperm.xlu0 %3229, %v3225
        %v3231 = vpop.permute.xlu0 %3230
        %v3233 = vmul.f32 %v2294, %v3231
        %v3234 = vmul.f32 %v2295, %v3231
        %v3235 = vmul.f32 %v2296, %v3231
        %v3236 = vmul.f32 %v2297, %v3231
        %3238 = vset.pattern.permute.xlu0 0
        %3239 = vperm.xlu0 %3238, %v3227
        %v3240 = vpop.permute.xlu0 %3239
        %v3242 = vadd.f32 %v3233, %v3240
        %v3243 = vadd.f32 %v3234, %v3240
        %v3244 = vadd.f32 %v3235, %v3240
        %v3245 = vadd.f32 %v3236, %v3240
        %v3246 = vxor.u32 %v3242, 2147483648
        %v3247 = vxor.u32 %v3243, 2147483648
        %v3248 = vxor.u32 %v3244, 2147483648
        %v3249 = vxor.u32 %v3245, 2147483648
        %v3250 = vmul.f32 %v3246, 1.442695
        %v3251 = vpow.pop %v3250
        %v3252 = vmul.f32 %v3247, 1.442695
        %v3253 = vpow.pop %v3252
        %v3254 = vmul.f32 %v3248, 1.442695
        %v3255 = vpow.pop %v3254
        %v3256 = vmul.f32 %v3249, 1.442695
        %v3257 = vpow.pop %v3256
        %v3258 = vadd.f32 %v3251, 1.0
        %v3259 = vadd.f32 %v3253, 1.0
        %v3260 = vadd.f32 %v3255, 1.0
        %v3261 = vadd.f32 %v3257, 1.0
        %v3262 = vrcp.pop %v3258
        %v3263 = vmul.f32 1.0, %v3262
        %v3264 = vrcp.pop %v3259
        %v3265 = vmul.f32 1.0, %v3264
        %v3266 = vrcp.pop %v3260
        %v3267 = vmul.f32 1.0, %v3266
        %v3268 = vrcp.pop %v3261
        %v3269 = vmul.f32 1.0, %v3268
        %v3270 = vmul.f32 %v3242, %v3263
        %v3271 = vmul.f32 %v3243, %v3265
        %v3272 = vmul.f32 %v3244, %v3267
        %v3273 = vmul.f32 %v3245, %v3269
        %v3274 = vld [vmem:[%s8] sm:$0xf]
        %3275 = vrot.lane.b32.xlu0 %v3270, 9
        %v3276 = vpop.permute.xlu0 %3275
        %3277 = vrot.lane.b32.xlu0 %v3271, 9
        %v3278 = vpop.permute.xlu0 %3277
        %3279 = vrot.lane.b32.xlu0 %v3272, 9
        %v3280 = vpop.permute.xlu0 %3279
        %3281 = vrot.lane.b32.xlu0 %v3273, 9
        %v3282 = vpop.permute.xlu0 %3281
        %v3283 = vsel %vm1531, %v3280, %v3282
        %v3284 = vsel %vm1531, %v3278, %v3280
        %v3285 = vsel %vm1531, %v3276, %v3278
        %v3286 = vsel %vm1531, %v3282, %v3276
        %v3287 = vld [vmem:[%s10] ss:$8 sm:$0xf]
        %v3289 = vlaneseq
        %v3290 = vshrl.u32 %v3289, 7
        %v3291 = vsub.s32 0, %v3290
        %v3292 = vrot.slane %v3287, %v3291
        %v3293 = vlaneseq
        %v3294 = vshrl.u32 %v3293, 7
        %v3295 = vsub.s32 1, %v3294
        %v3296 = vrot.slane %v3287, %v3295
        %v3297 = vlaneseq
        %v3298 = vshrl.u32 %v3297, 7
        %v3299 = vsub.s32 2, %v3298
        %v3300 = vrot.slane %v3287, %v3299
        %v3301 = vlaneseq
        %v3302 = vshrl.u32 %v3301, 7
        %v3303 = vsub.s32 3, %v3302
        %v3304 = vrot.slane %v3287, %v3303
        %v3309 = vmul.f32 %v3286, %v3292
        %v3310 = vmul.f32 %v3285, %v3296
        %v3311 = vmul.f32 %v3284, %v3300
        %v3312 = vmul.f32 %v3283, %v3304
        %3313 = vst [vmem:[#allocation2] sm:$0xf] %v3309
        %3314 = vst [vmem:[#allocation2 + $0x8] sm:$0xf] %v3310
        %3315 = vst [vmem:[#allocation2 + $0x10] sm:$0xf] %v3311
        %3316 = vst [vmem:[#allocation2 + $0x18] sm:$0xf] %v3312
        %3317 = vrot.lane.b32.xlu0 %v3270, 8
        %v3318 = vpop.permute.xlu0 %3317
        %3319 = vrot.lane.b32.xlu0 %v3271, 8
        %v3320 = vpop.permute.xlu0 %3319
        %3321 = vrot.lane.b32.xlu0 %v3272, 8
        %v3322 = vpop.permute.xlu0 %3321
        %3323 = vrot.lane.b32.xlu0 %v3273, 8
        %v3324 = vpop.permute.xlu0 %3323
        %v3325 = vsel %vm1574, %v3322, %v3324
        %v3326 = vsel %vm1574, %v3320, %v3322
        %v3327 = vsel %vm1574, %v3318, %v3320
        %v3328 = vsel %vm1574, %v3324, %v3318
        %v3329 = vld [vmem:[%s1579] ss:$8 sm:$0xf]
        %v3331 = vlaneseq
        %v3332 = vshrl.u32 %v3331, 7
        %v3333 = vsub.s32 0, %v3332
        %v3334 = vrot.slane %v3329, %v3333
        %v3335 = vlaneseq
        %v3336 = vshrl.u32 %v3335, 7
        %v3337 = vsub.s32 1, %v3336
        %v3338 = vrot.slane %v3329, %v3337
        %v3339 = vlaneseq
        %v3340 = vshrl.u32 %v3339, 7
        %v3341 = vsub.s32 2, %v3340
        %v3342 = vrot.slane %v3329, %v3341
        %v3343 = vlaneseq
        %v3344 = vshrl.u32 %v3343, 7
        %v3345 = vsub.s32 3, %v3344
        %v3346 = vrot.slane %v3329, %v3345
        %v3351 = vmul.f32 %v3328, %v3334
        %v3352 = vmul.f32 %v3327, %v3338
        %v3353 = vmul.f32 %v3326, %v3342
        %v3354 = vmul.f32 %v3325, %v3346
        %3355 = vst [vmem:[#allocation2 + $0x20] sm:$0xf] %v3351
        %3356 = vst [vmem:[#allocation2 + $0x28] sm:$0xf] %v3352
        %3357 = vst [vmem:[#allocation2 + $0x30] sm:$0xf] %v3353
        %3358 = vst [vmem:[#allocation2 + $0x38] sm:$0xf] %v3354
        %3359 = vrot.lane.b32.xlu0 %v3270, 7
        %v3360 = vpop.permute.xlu0 %3359
        %3361 = vrot.lane.b32.xlu0 %v3271, 7
        %v3362 = vpop.permute.xlu0 %3361
        %3363 = vrot.lane.b32.xlu0 %v3272, 7
        %v3364 = vpop.permute.xlu0 %3363
        %3365 = vrot.lane.b32.xlu0 %v3273, 7
        %v3366 = vpop.permute.xlu0 %3365
        %v3367 = vsel %vm1618, %v3364, %v3366
        %v3368 = vsel %vm1618, %v3362, %v3364
        %v3369 = vsel %vm1618, %v3360, %v3362
        %v3370 = vsel %vm1618, %v3366, %v3360
        %v3371 = vld [vmem:[%s1623] ss:$8 sm:$0xf]
        %v3373 = vlaneseq
        %v3374 = vshrl.u32 %v3373, 7
        %v3375 = vsub.s32 0, %v3374
        %v3376 = vrot.slane %v3371, %v3375
        %v3377 = vlaneseq
        %v3378 = vshrl.u32 %v3377, 7
        %v3379 = vsub.s32 1, %v3378
        %v3380 = vrot.slane %v3371, %v3379
        %v3381 = vlaneseq
        %v3382 = vshrl.u32 %v3381, 7
        %v3383 = vsub.s32 2, %v3382
        %v3384 = vrot.slane %v3371, %v3383
        %v3385 = vlaneseq
        %v3386 = vshrl.u32 %v3385, 7
        %v3387 = vsub.s32 3, %v3386
        %v3388 = vrot.slane %v3371, %v3387
        %v3393 = vmul.f32 %v3370, %v3376
        %v3394 = vmul.f32 %v3369, %v3380
        %v3395 = vmul.f32 %v3368, %v3384
        %v3396 = vmul.f32 %v3367, %v3388
        %3397 = vst [vmem:[#allocation2 + $0x40] sm:$0xf] %v3393
        %3398 = vst [vmem:[#allocation2 + $0x48] sm:$0xf] %v3394
        %3399 = vst [vmem:[#allocation2 + $0x50] sm:$0xf] %v3395
        %3400 = vst [vmem:[#allocation2 + $0x58] sm:$0xf] %v3396
        %3401 = vrot.lane.b32.xlu0 %v3270, 1
        %v3402 = vpop.permute.xlu0 %3401
        %3403 = vrot.lane.b32.xlu0 %v3271, 1
        %v3404 = vpop.permute.xlu0 %3403
        %3405 = vrot.lane.b32.xlu0 %v3272, 1
        %v3406 = vpop.permute.xlu0 %3405
        %3407 = vrot.lane.b32.xlu0 %v3273, 1
        %v3408 = vpop.permute.xlu0 %3407
        %v3409 = vsel %vm1662, %v3406, %v3408
        %v3410 = vsel %vm1662, %v3404, %v3406
        %v3411 = vsel %vm1662, %v3402, %v3404
        %v3412 = vsel %vm1662, %v3408, %v3402
        %v3413 = vld [vmem:[%s1667] ss:$8 sm:$0xf]
        %v3415 = vlaneseq
        %v3416 = vshrl.u32 %v3415, 7
        %v3417 = vsub.s32 0, %v3416
        %v3418 = vrot.slane %v3413, %v3417
        %v3419 = vlaneseq
        %v3420 = vshrl.u32 %v3419, 7
        %v3421 = vsub.s32 1, %v3420
        %v3422 = vrot.slane %v3413, %v3421
        %v3423 = vlaneseq
        %v3424 = vshrl.u32 %v3423, 7
        %v3425 = vsub.s32 2, %v3424
        %v3426 = vrot.slane %v3413, %v3425
        %v3427 = vlaneseq
        %v3428 = vshrl.u32 %v3427, 7
        %v3429 = vsub.s32 3, %v3428
        %v3430 = vrot.slane %v3413, %v3429
        %v3435 = vmul.f32 %v3412, %v3418
        %v3436 = vmul.f32 %v3411, %v3422
        %v3437 = vmul.f32 %v3410, %v3426
        %v3438 = vmul.f32 %v3409, %v3430
        %3439 = vst [vmem:[#allocation2 + $0x60] sm:$0xf] %v3435
        %3440 = vst [vmem:[#allocation2 + $0x68] sm:$0xf] %v3436
        %3441 = vst [vmem:[#allocation2 + $0x70] sm:$0xf] %v3437
        %3442 = vst [vmem:[#allocation2 + $0x78] sm:$0xf] %v3438
        %3443 = vst [vmem:[#allocation2 + $0x80] sm:$0xf] %v3270
        %3444 = vst [vmem:[#allocation2 + $0x88] sm:$0xf] %v3271
        %3445 = vst [vmem:[#allocation2 + $0x90] sm:$0xf] %v3272
        %3446 = vst [vmem:[#allocation2 + $0x98] sm:$0xf] %v3273
        %3447 = vrot.lane.b32.xlu0 %v3270, 127
        %v3448 = vpop.permute.xlu0 %3447
        %3449 = vrot.lane.b32.xlu0 %v3271, 127
        %v3450 = vpop.permute.xlu0 %3449
        %3451 = vrot.lane.b32.xlu0 %v3272, 127
        %v3452 = vpop.permute.xlu0 %3451
        %3453 = vrot.lane.b32.xlu0 %v3273, 127
        %v3454 = vpop.permute.xlu0 %3453
        %v3455 = vsel %vm1710, %v3452, %v3454
        %v3456 = vsel %vm1710, %v3450, %v3452
        %v3457 = vsel %vm1710, %v3448, %v3450
        %v3458 = vsel %vm1710, %v3454, %v3448
        %v3459 = vld [vmem:[%s1715] ss:$8 sm:$0xf]
        %v3461 = vlaneseq
        %v3462 = vshrl.u32 %v3461, 7
        %v3463 = vsub.s32 0, %v3462
        %v3464 = vrot.slane %v3459, %v3463
        %v3465 = vlaneseq
        %v3466 = vshrl.u32 %v3465, 7
        %v3467 = vsub.s32 1, %v3466
        %v3468 = vrot.slane %v3459, %v3467
        %v3469 = vlaneseq
        %v3470 = vshrl.u32 %v3469, 7
        %v3471 = vsub.s32 2, %v3470
        %v3472 = vrot.slane %v3459, %v3471
        %v3473 = vlaneseq
        %v3474 = vshrl.u32 %v3473, 7
        %v3475 = vsub.s32 3, %v3474
        %v3476 = vrot.slane %v3459, %v3475
        %v3481 = vmul.f32 %v3457, %v3464
        %v3482 = vmul.f32 %v3456, %v3468
        %v3483 = vmul.f32 %v3455, %v3472
        %v3484 = vmul.f32 %v3458, %v3476
        %3485 = vst [vmem:[#allocation2 + $0xa0] sm:$0xf] %v3481
        %3486 = vst [vmem:[#allocation2 + $0xa8] sm:$0xf] %v3482
        %3487 = vst [vmem:[#allocation2 + $0xb0] sm:$0xf] %v3483
        %3488 = vst [vmem:[#allocation2 + $0xb8] sm:$0xf] %v3484
        %3489 = vrot.lane.b32.xlu0 %v3270, 121
        %v3490 = vpop.permute.xlu0 %3489
        %3491 = vrot.lane.b32.xlu0 %v3271, 121
        %v3492 = vpop.permute.xlu0 %3491
        %3493 = vrot.lane.b32.xlu0 %v3272, 121
        %v3494 = vpop.permute.xlu0 %3493
        %3495 = vrot.lane.b32.xlu0 %v3273, 121
        %v3496 = vpop.permute.xlu0 %3495
        %v3497 = vsel %vm1754, %v3494, %v3496
        %v3498 = vsel %vm1754, %v3492, %v3494
        %v3499 = vsel %vm1754, %v3490, %v3492
        %v3500 = vsel %vm1754, %v3496, %v3490
        %v3501 = vld [vmem:[%s1759] ss:$8 sm:$0xf]
        %v3503 = vlaneseq
        %v3504 = vshrl.u32 %v3503, 7
        %v3505 = vsub.s32 0, %v3504
        %v3506 = vrot.slane %v3501, %v3505
        %v3507 = vlaneseq
        %v3508 = vshrl.u32 %v3507, 7
        %v3509 = vsub.s32 1, %v3508
        %v3510 = vrot.slane %v3501, %v3509
        %v3511 = vlaneseq
        %v3512 = vshrl.u32 %v3511, 7
        %v3513 = vsub.s32 2, %v3512
        %v3514 = vrot.slane %v3501, %v3513
        %v3515 = vlaneseq
        %v3516 = vshrl.u32 %v3515, 7
        %v3517 = vsub.s32 3, %v3516
        %v3518 = vrot.slane %v3501, %v3517
        %v3523 = vmul.f32 %v3499, %v3506
        %v3524 = vmul.f32 %v3498, %v3510
        %v3525 = vmul.f32 %v3497, %v3514
        %v3526 = vmul.f32 %v3500, %v3518
        %3527 = vst [vmem:[#allocation2 + $0xc0] sm:$0xf] %v3523
        %3528 = vst [vmem:[#allocation2 + $0xc8] sm:$0xf] %v3524
        %3529 = vst [vmem:[#allocation2 + $0xd0] sm:$0xf] %v3525
        %3530 = vst [vmem:[#allocation2 + $0xd8] sm:$0xf] %v3526
        %3531 = vrot.lane.b32.xlu0 %v3270, 120
        %v3532 = vpop.permute.xlu0 %3531
        %3533 = vrot.lane.b32.xlu0 %v3271, 120
        %v3534 = vpop.permute.xlu0 %3533
        %3535 = vrot.lane.b32.xlu0 %v3272, 120
        %v3536 = vpop.permute.xlu0 %3535
        %3537 = vrot.lane.b32.xlu0 %v3273, 120
        %v3538 = vpop.permute.xlu0 %3537
        %v3539 = vsel %vm1798, %v3536, %v3538
        %v3540 = vsel %vm1798, %v3534, %v3536
        %v3541 = vsel %vm1798, %v3532, %v3534
        %v3542 = vsel %vm1798, %v3538, %v3532
        %v3543 = vld [vmem:[%s1803] ss:$8 sm:$0xf]
        %v3545 = vlaneseq
        %v3546 = vshrl.u32 %v3545, 7
        %v3547 = vsub.s32 0, %v3546
        %v3548 = vrot.slane %v3543, %v3547
        %v3549 = vlaneseq
        %v3550 = vshrl.u32 %v3549, 7
        %v3551 = vsub.s32 1, %v3550
        %v3552 = vrot.slane %v3543, %v3551
        %v3553 = vlaneseq
        %v3554 = vshrl.u32 %v3553, 7
        %v3555 = vsub.s32 2, %v3554
        %v3556 = vrot.slane %v3543, %v3555
        %v3557 = vlaneseq
        %v3558 = vshrl.u32 %v3557, 7
        %v3559 = vsub.s32 3, %v3558
        %v3560 = vrot.slane %v3543, %v3559
        %v3565 = vmul.f32 %v3541, %v3548
        %v3566 = vmul.f32 %v3540, %v3552
        %v3567 = vmul.f32 %v3539, %v3556
        %v3568 = vmul.f32 %v3542, %v3560
        %3569 = vst [vmem:[#allocation2 + $0xe0] sm:$0xf] %v3565
        %3570 = vst [vmem:[#allocation2 + $0xe8] sm:$0xf] %v3566
        %3571 = vst [vmem:[#allocation2 + $0xf0] sm:$0xf] %v3567
        %3572 = vst [vmem:[#allocation2 + $0xf8] sm:$0xf] %v3568
        %3573 = vrot.lane.b32.xlu0 %v3270, 119
        %v3574 = vpop.permute.xlu0 %3573
        %3575 = vrot.lane.b32.xlu0 %v3271, 119
        %v3576 = vpop.permute.xlu0 %3575
        %3577 = vrot.lane.b32.xlu0 %v3272, 119
        %v3578 = vpop.permute.xlu0 %3577
        %3579 = vrot.lane.b32.xlu0 %v3273, 119
        %v3580 = vpop.permute.xlu0 %3579
        %v3581 = vsel %vm1842, %v3578, %v3580
        %v3582 = vsel %vm1842, %v3576, %v3578
        %v3583 = vsel %vm1842, %v3574, %v3576
        %v3584 = vsel %vm1842, %v3580, %v3574
        %v3585 = vld [vmem:[%s1847] ss:$8 sm:$0xf]
        %v3587 = vlaneseq
        %v3588 = vshrl.u32 %v3587, 7
        %v3589 = vsub.s32 0, %v3588
        %v3590 = vrot.slane %v3585, %v3589
        %v3591 = vlaneseq
        %v3592 = vshrl.u32 %v3591, 7
        %v3593 = vsub.s32 1, %v3592
        %v3594 = vrot.slane %v3585, %v3593
        %v3595 = vlaneseq
        %v3596 = vshrl.u32 %v3595, 7
        %v3597 = vsub.s32 2, %v3596
        %v3598 = vrot.slane %v3585, %v3597
        %v3599 = vlaneseq
        %v3600 = vshrl.u32 %v3599, 7
        %v3601 = vsub.s32 3, %v3600
        %v3602 = vrot.slane %v3585, %v3601
        %v3607 = vmul.f32 %v3583, %v3590
        %v3608 = vmul.f32 %v3582, %v3594
        %v3609 = vmul.f32 %v3581, %v3598
        %v3610 = vmul.f32 %v3584, %v3602
        %3611 = vst [vmem:[#allocation2 + $0x100] sm:$0xf] %v3607
        %3612 = vst [vmem:[#allocation2 + $0x108] sm:$0xf] %v3608
        %3613 = vst [vmem:[#allocation2 + $0x110] sm:$0xf] %v3609
        %3614 = vst [vmem:[#allocation2 + $0x118] sm:$0xf] %v3610
        %v3615 = vld [vmem:[#allocation2] sm:$0xff]
        %v3616 = vld [vmem:[#allocation2 + $0x8] sm:$0xff]
        %v3617 = vld [vmem:[#allocation2 + $0x10] sm:$0xff]
        %v3618 = vld [vmem:[#allocation2 + $0x18] sm:$0xff]
        %v3619 = vld [vmem:[#allocation2 + $0x20] sm:$0xff]
        %v3620 = vld [vmem:[#allocation2 + $0x28] sm:$0xff]
        %v3621 = vld [vmem:[#allocation2 + $0x30] sm:$0xff]
        %v3622 = vld [vmem:[#allocation2 + $0x38] sm:$0xff]
        %v3623 = vld [vmem:[#allocation2 + $0x40] sm:$0xff]
        %v3624 = vld [vmem:[#allocation2 + $0x48] sm:$0xff]
        %v3625 = vld [vmem:[#allocation2 + $0x50] sm:$0xff]
        %v3626 = vld [vmem:[#allocation2 + $0x58] sm:$0xff]
        %v3627 = vld [vmem:[#allocation2 + $0x60] sm:$0xff]
        %v3628 = vld [vmem:[#allocation2 + $0x68] sm:$0xff]
        %v3629 = vld [vmem:[#allocation2 + $0x70] sm:$0xff]
        %v3630 = vld [vmem:[#allocation2 + $0x78] sm:$0xff]
        %v3631 = vld [vmem:[#allocation2 + $0x80] sm:$0xff]
        %v3632 = vld [vmem:[#allocation2 + $0x88] sm:$0xff]
        %v3633 = vld [vmem:[#allocation2 + $0x90] sm:$0xff]
        %v3634 = vld [vmem:[#allocation2 + $0x98] sm:$0xff]
        %v3635 = vld [vmem:[#allocation2 + $0xa0] sm:$0xff]
        %v3636 = vld [vmem:[#allocation2 + $0xa8] sm:$0xff]
        %v3637 = vld [vmem:[#allocation2 + $0xb0] sm:$0xff]
        %v3638 = vld [vmem:[#allocation2 + $0xb8] sm:$0xff]
        %v3639 = vld [vmem:[#allocation2 + $0xc0] sm:$0xff]
        %v3640 = vld [vmem:[#allocation2 + $0xc8] sm:$0xff]
        %v3641 = vld [vmem:[#allocation2 + $0xd0] sm:$0xff]
        %v3642 = vld [vmem:[#allocation2 + $0xd8] sm:$0xff]
        %v3643 = vld [vmem:[#allocation2 + $0xe0] sm:$0xff]
        %v3644 = vld [vmem:[#allocation2 + $0xe8] sm:$0xff]
        %v3645 = vld [vmem:[#allocation2 + $0xf0] sm:$0xff]
        %v3646 = vld [vmem:[#allocation2 + $0xf8] sm:$0xff]
        %v3647 = vld [vmem:[#allocation2 + $0x100] sm:$0xff]
        %v3648 = vld [vmem:[#allocation2 + $0x108] sm:$0xff]
        %v3649 = vld [vmem:[#allocation2 + $0x110] sm:$0xff]
        %v3650 = vld [vmem:[#allocation2 + $0x118] sm:$0xff]
        %v3651 = vpack.c.bf16 %v3619, %v3615
        %v3652 = vpack.c.bf16 %v3620, %v3616
        %v3653 = vpack.c.bf16 %v3621, %v3617
        %v3654 = vpack.c.bf16 %v3622, %v3618
        %v3655 = vpack.c.bf16 %v3627, %v3623
        %v3656 = vpack.c.bf16 %v3628, %v3624
        %v3657 = vpack.c.bf16 %v3629, %v3625
        %v3658 = vpack.c.bf16 %v3630, %v3626
        %v3659 = vpack.c.bf16 %v3635, %v3631
        %v3660 = vpack.c.bf16 %v3636, %v3632
        %v3661 = vpack.c.bf16 %v3637, %v3633
        %v3662 = vpack.c.bf16 %v3638, %v3634
        %v3663 = vpack.c.bf16 %v3643, %v3639
        %v3664 = vpack.c.bf16 %v3644, %v3640
        %v3665 = vpack.c.bf16 %v3645, %v3641
        %v3666 = vpack.c.bf16 %v3646, %v3642
        %v3667 = vpack.c.bf16 %v3647, %v3647
        %v3668 = vpack.c.bf16 %v3648, %v3648
        %v3669 = vpack.c.bf16 %v3649, %v3649
        %v3670 = vpack.c.bf16 %v3650, %v3650
        %v3671 = vld [vmem:[%s7] sm:$0x3]
        %v3673 = vsel %vm1935, %v3671, 0
        %v3676 = vsel %vm535, %v3667, 0
        %v3679 = vsel %vm535, %v3668, 0
        %v3682 = vsel %vm535, %v3669, 0
        %v3685 = vsel %vm535, %v3670, 0
        %3687 = vmatprep.subr.bf16.mxu0 %v3652
        %3688 = vmatpush1.bf16.msra.mxu0 %v3651
        %3689 = vmatprep.subr.bf16.mxu0 %v3656
        %3690 = vmatpush1.bf16.msra.mxu0 %v3655
        %3691 = vmatprep.subr.bf16.mxu0 %v3660
        %3692 = vmatpush1.bf16.msra.mxu0 %v3659
        %3693 = vmatprep.subr.bf16.mxu0 %v3664
        %3694 = vmatpush1.bf16.msra.mxu0 %v3663
        %3695 = vmatprep.subr.bf16.mxu0 %v3679
        %3696 = vmatpush1.bf16.msra.mxu0 %v3676
        %3697 = vmatprep.subr.bf16.mxu0 0
        %3698 = vmatpush1.bf16.msra.mxu0 0
        %3699 = vmatprep.subr.bf16.mxu0 0
        %3700 = vmatpush1.bf16.msra.mxu0 0
        %3701 = vmatprep.subr.bf16.mxu0 0
        %3702 = vmatpush1.bf16.msra.mxu0 0
        %3703 = vmatprep.subr.bf16.mxu0 0
        %3704 = vmatpush1.bf16.msra.mxu0 0
        %3705 = vmatprep.subr.bf16.mxu0 0
        %3706 = vmatpush1.bf16.msra.mxu0 0
        %3707 = vmatprep.subr.bf16.mxu0 0
        %3708 = vmatpush1.bf16.msra.mxu0 0
        %3709 = vmatprep.subr.bf16.mxu0 0
        %3710 = vmatpush1.bf16.msra.mxu0 0
        %3711 = vmatprep.subr.bf16.mxu0 0
        %3712 = vmatpush1.bf16.msra.mxu0 0
        %3713 = vmatprep.subr.bf16.mxu0 0
        %3714 = vmatpush1.bf16.msra.mxu0 0
        %3715 = vmatprep.subr.bf16.mxu0 0
        %3716 = vmatpush1.bf16.msra.mxu0 0
        %3717 = vmatprep.subr.bf16.mxu0 0
        %3718 = vmatpush1.bf16.msra.mxu0 0
        %3719 = vmatprep.mubr.bf16.mxu0 0
        %3720 = vmatmul.mubr.bf16.gmra.mrb[0].mxu0 %v3673
        %v3721 = vpop.f32.mrb[0].mxu0
        %v3722 = vadd.f32 0.0, %v3721
        %v3723 = vpop.f32.mrb[0].mxu0
        %v3724 = vadd.f32 0.0, %v3723
        %v3725 = vpop.f32.mrb[0].mxu0
        %v3726 = vpop.f32.mrb[0].mxu0
        %3727 = vdwg.mxu0
        %3728 = vmatprep.subr.bf16.mxu0 %v3654
        %3729 = vmatpush1.bf16.msra.mxu0 %v3653
        %3730 = vmatprep.subr.bf16.mxu0 %v3658
        %3731 = vmatpush1.bf16.msra.mxu0 %v3657
        %3732 = vmatprep.subr.bf16.mxu0 %v3662
        %3733 = vmatpush1.bf16.msra.mxu0 %v3661
        %3734 = vmatprep.subr.bf16.mxu0 %v3666
        %3735 = vmatpush1.bf16.msra.mxu0 %v3665
        %3736 = vmatprep.subr.bf16.mxu0 %v3685
        %3737 = vmatpush1.bf16.msra.mxu0 %v3682
        %3738 = vmatprep.subr.bf16.mxu0 0
        %3739 = vmatpush1.bf16.msra.mxu0 0
        %3740 = vmatprep.subr.bf16.mxu0 0
        %3741 = vmatpush1.bf16.msra.mxu0 0
        %3742 = vmatprep.subr.bf16.mxu0 0
        %3743 = vmatpush1.bf16.msra.mxu0 0
        %3744 = vmatprep.subr.bf16.mxu0 0
        %3745 = vmatpush1.bf16.msra.mxu0 0
        %3746 = vmatprep.subr.bf16.mxu0 0
        %3747 = vmatpush1.bf16.msra.mxu0 0
        %3748 = vmatprep.subr.bf16.mxu0 0
        %3749 = vmatpush1.bf16.msra.mxu0 0
        %3750 = vmatprep.subr.bf16.mxu0 0
        %3751 = vmatpush1.bf16.msra.mxu0 0
        %3752 = vmatprep.subr.bf16.mxu0 0
        %3753 = vmatpush1.bf16.msra.mxu0 0
        %3754 = vmatprep.subr.bf16.mxu0 0
        %3755 = vmatpush1.bf16.msra.mxu0 0
        %3756 = vmatprep.subr.bf16.mxu0 0
        %3757 = vmatpush1.bf16.msra.mxu0 0
        %3758 = vmatprep.subr.bf16.mxu0 0
        %3759 = vmatpush1.bf16.msra.mxu0 0
        %3760 = vmatprep.mubr.bf16.mxu0 0
        %3761 = vmatmul.mubr.bf16.gmra.mrb[0].mxu0 %v3673
        %v3762 = vpop.f32.mrb[0].mxu0
        %v3763 = vadd.f32 0.0, %v3762
        %v3764 = vpop.f32.mrb[0].mxu0
        %v3765 = vadd.f32 0.0, %v3764
        %v3766 = vpop.f32.mrb[0].mxu0
        %v3767 = vpop.f32.mrb[0].mxu0
        %3768 = vdwg.mxu0
        %s3769 = scalar_lea.vmem %s7, 2
        %v3770 = vld [vmem:[%s3769] sm:$0x3]
        %s3771 = scalar_lea.vmem %s7, 4
        %v3772 = vld [vmem:[%s3771] sm:$0x3]
        %v3774 = vsel %vm1935, %v3772, 0
        %3776 = vmatprep.subr.bf16.mxu0 %v3652
        %3777 = vmatpush1.bf16.msra.mxu0 %v3651
        %3778 = vmatprep.subr.bf16.mxu0 %v3656
        %3779 = vmatpush1.bf16.msra.mxu0 %v3655
        %3780 = vmatprep.subr.bf16.mxu0 %v3660
        %3781 = vmatpush1.bf16.msra.mxu0 %v3659
        %3782 = vmatprep.subr.bf16.mxu0 %v3664
        %3783 = vmatpush1.bf16.msra.mxu0 %v3663
        %3784 = vmatprep.subr.bf16.mxu0 %v3679
        %3785 = vmatpush1.bf16.msra.mxu0 %v3676
        %3786 = vmatprep.subr.bf16.mxu0 0
        %3787 = vmatpush1.bf16.msra.mxu0 0
        %3788 = vmatprep.subr.bf16.mxu0 0
        %3789 = vmatpush1.bf16.msra.mxu0 0
        %3790 = vmatprep.subr.bf16.mxu0 0
        %3791 = vmatpush1.bf16.msra.mxu0 0
        %3792 = vmatprep.subr.bf16.mxu0 0
        %3793 = vmatpush1.bf16.msra.mxu0 0
        %3794 = vmatprep.subr.bf16.mxu0 0
        %3795 = vmatpush1.bf16.msra.mxu0 0
        %3796 = vmatprep.subr.bf16.mxu0 0
        %3797 = vmatpush1.bf16.msra.mxu0 0
        %3798 = vmatprep.subr.bf16.mxu0 0
        %3799 = vmatpush1.bf16.msra.mxu0 0
        %3800 = vmatprep.subr.bf16.mxu0 0
        %3801 = vmatpush1.bf16.msra.mxu0 0
        %3802 = vmatprep.subr.bf16.mxu0 0
        %3803 = vmatpush1.bf16.msra.mxu0 0
        %3804 = vmatprep.subr.bf16.mxu0 0
        %3805 = vmatpush1.bf16.msra.mxu0 0
        %3806 = vmatprep.subr.bf16.mxu0 0
        %3807 = vmatpush1.bf16.msra.mxu0 0
        %3808 = vmatprep.mubr.bf16.mxu0 0
        %3809 = vmatmul.mubr.bf16.gmra.mrb[0].mxu0 %v3774
        %v3810 = vpop.f32.mrb[0].mxu0
        %v3811 = vadd.f32 0.0, %v3810
        %v3812 = vpop.f32.mrb[0].mxu0
        %v3813 = vadd.f32 0.0, %v3812
        %v3814 = vpop.f32.mrb[0].mxu0
        %v3815 = vpop.f32.mrb[0].mxu0
        %3816 = vdwg.mxu0
        %3817 = vmatprep.subr.bf16.mxu0 %v3654
        %3818 = vmatpush1.bf16.msra.mxu0 %v3653
        %3819 = vmatprep.subr.bf16.mxu0 %v3658
        %3820 = vmatpush1.bf16.msra.mxu0 %v3657
        %3821 = vmatprep.subr.bf16.mxu0 %v3662
        %3822 = vmatpush1.bf16.msra.mxu0 %v3661
        %3823 = vmatprep.subr.bf16.mxu0 %v3666
        %3824 = vmatpush1.bf16.msra.mxu0 %v3665
        %3825 = vmatprep.subr.bf16.mxu0 %v3685
        %3826 = vmatpush1.bf16.msra.mxu0 %v3682
        %3827 = vmatprep.subr.bf16.mxu0 0
        %3828 = vmatpush1.bf16.msra.mxu0 0
        %3829 = vmatprep.subr.bf16.mxu0 0
        %3830 = vmatpush1.bf16.msra.mxu0 0
        %3831 = vmatprep.subr.bf16.mxu0 0
        %3832 = vmatpush1.bf16.msra.mxu0 0
        %3833 = vmatprep.subr.bf16.mxu0 0
        %3834 = vmatpush1.bf16.msra.mxu0 0
        %3835 = vmatprep.subr.bf16.mxu0 0
        %3836 = vmatpush1.bf16.msra.mxu0 0
        %3837 = vmatprep.subr.bf16.mxu0 0
        %3838 = vmatpush1.bf16.msra.mxu0 0
        %3839 = vmatprep.subr.bf16.mxu0 0
        %3840 = vmatpush1.bf16.msra.mxu0 0
        %3841 = vmatprep.subr.bf16.mxu0 0
        %3842 = vmatpush1.bf16.msra.mxu0 0
        %3843 = vmatprep.subr.bf16.mxu0 0
        %3844 = vmatpush1.bf16.msra.mxu0 0
        %3845 = vmatprep.subr.bf16.mxu0 0
        %3846 = vmatpush1.bf16.msra.mxu0 0
        %3847 = vmatprep.subr.bf16.mxu0 0
        %3848 = vmatpush1.bf16.msra.mxu0 0
        %3849 = vmatprep.mubr.bf16.mxu0 0
        %3850 = vmatmul.mubr.bf16.gmra.mrb[0].mxu0 %v3774
        %v3851 = vpop.f32.mrb[0].mxu0
        %v3852 = vadd.f32 0.0, %v3851
        %v3853 = vpop.f32.mrb[0].mxu0
        %v3854 = vadd.f32 0.0, %v3853
        %v3855 = vpop.f32.mrb[0].mxu0
        %v3856 = vpop.f32.mrb[0].mxu0
        %3857 = vdwg.mxu0
        %3859 = vset.pattern.permute.xlu0 0
        %3860 = vperm.xlu0 %3859, %v3274
        %v3861 = vpop.permute.xlu0 %3860
        %v3864 = vsel %vm1935, %v3770, 0
        %3866 = vmatprep.subr.bf16.mxu0 %v3652
        %3867 = vmatpush1.bf16.msra.mxu0 %v3651
        %3868 = vmatprep.subr.bf16.mxu0 %v3656
        %3869 = vmatpush1.bf16.msra.mxu0 %v3655
        %3870 = vmatprep.subr.bf16.mxu0 %v3660
        %3871 = vmatpush1.bf16.msra.mxu0 %v3659
        %3872 = vmatprep.subr.bf16.mxu0 %v3664
        %3873 = vmatpush1.bf16.msra.mxu0 %v3663
        %3874 = vmatprep.subr.bf16.mxu0 %v3679
        %3875 = vmatpush1.bf16.msra.mxu0 %v3676
        %3876 = vmatprep.subr.bf16.mxu0 0
        %3877 = vmatpush1.bf16.msra.mxu0 0
        %3878 = vmatprep.subr.bf16.mxu0 0
        %3879 = vmatpush1.bf16.msra.mxu0 0
        %3880 = vmatprep.subr.bf16.mxu0 0
        %3881 = vmatpush1.bf16.msra.mxu0 0
        %3882 = vmatprep.subr.bf16.mxu0 0
        %3883 = vmatpush1.bf16.msra.mxu0 0
        %3884 = vmatprep.subr.bf16.mxu0 0
        %3885 = vmatpush1.bf16.msra.mxu0 0
        %3886 = vmatprep.subr.bf16.mxu0 0
        %3887 = vmatpush1.bf16.msra.mxu0 0
        %3888 = vmatprep.subr.bf16.mxu0 0
        %3889 = vmatpush1.bf16.msra.mxu0 0
        %3890 = vmatprep.subr.bf16.mxu0 0
        %3891 = vmatpush1.bf16.msra.mxu0 0
        %3892 = vmatprep.subr.bf16.mxu0 0
        %3893 = vmatpush1.bf16.msra.mxu0 0
        %3894 = vmatprep.subr.bf16.mxu0 0
        %3895 = vmatpush1.bf16.msra.mxu0 0
        %3896 = vmatprep.subr.bf16.mxu0 0
        %3897 = vmatpush1.bf16.msra.mxu0 0
        %3898 = vmatprep.mubr.bf16.mxu0 0
        %3899 = vmatmul.mubr.bf16.gmra.mrb[0].mxu0 %v3864
        %v3900 = vpop.f32.mrb[0].mxu0
        %v3901 = vadd.f32 %v3861, %v3900
        %v3902 = vpop.f32.mrb[0].mxu0
        %v3903 = vadd.f32 %v3861, %v3902
        %v3904 = vpop.f32.mrb[0].mxu0
        %v3905 = vpop.f32.mrb[0].mxu0
        %3906 = vdwg.mxu0
        %3907 = vmatprep.subr.bf16.mxu0 %v3654
        %3908 = vmatpush1.bf16.msra.mxu0 %v3653
        %3909 = vmatprep.subr.bf16.mxu0 %v3658
        %3910 = vmatpush1.bf16.msra.mxu0 %v3657
        %3911 = vmatprep.subr.bf16.mxu0 %v3662
        %3912 = vmatpush1.bf16.msra.mxu0 %v3661
        %3913 = vmatprep.subr.bf16.mxu0 %v3666
        %3914 = vmatpush1.bf16.msra.mxu0 %v3665
        %3915 = vmatprep.subr.bf16.mxu0 %v3685
        %3916 = vmatpush1.bf16.msra.mxu0 %v3682
        %3917 = vmatprep.subr.bf16.mxu0 0
        %3918 = vmatpush1.bf16.msra.mxu0 0
        %3919 = vmatprep.subr.bf16.mxu0 0
        %3920 = vmatpush1.bf16.msra.mxu0 0
        %3921 = vmatprep.subr.bf16.mxu0 0
        %3922 = vmatpush1.bf16.msra.mxu0 0
        %3923 = vmatprep.subr.bf16.mxu0 0
        %3924 = vmatpush1.bf16.msra.mxu0 0
        %3925 = vmatprep.subr.bf16.mxu0 0
        %3926 = vmatpush1.bf16.msra.mxu0 0
        %3927 = vmatprep.subr.bf16.mxu0 0
        %3928 = vmatpush1.bf16.msra.mxu0 0
        %3929 = vmatprep.subr.bf16.mxu0 0
        %3930 = vmatpush1.bf16.msra.mxu0 0
        %3931 = vmatprep.subr.bf16.mxu0 0
        %3932 = vmatpush1.bf16.msra.mxu0 0
        %3933 = vmatprep.subr.bf16.mxu0 0
        %3934 = vmatpush1.bf16.msra.mxu0 0
        %3935 = vmatprep.subr.bf16.mxu0 0
        %3936 = vmatpush1.bf16.msra.mxu0 0
        %3937 = vmatprep.subr.bf16.mxu0 0
        %3938 = vmatpush1.bf16.msra.mxu0 0
        %3939 = vmatprep.mubr.bf16.mxu0 0
        %3940 = vmatmul.mubr.bf16.gmra.mrb[0].mxu0 %v3864
        %v3941 = vpop.f32.mrb[0].mxu0
        %v3942 = vadd.f32 %v3861, %v3941
        %v3943 = vpop.f32.mrb[0].mxu0
        %v3944 = vadd.f32 %v3861, %v3943
        %v3945 = vpop.f32.mrb[0].mxu0
        %v3946 = vpop.f32.mrb[0].mxu0
        %3947 = vdwg.mxu0
        %3948 = vrot.lane.b32.xlu0 %v3722, 64
        %v3949 = vpop.permute.xlu0 %3948
        %3950 = vrot.lane.b32.xlu0 %v3724, 64
        %v3951 = vpop.permute.xlu0 %3950
        %3952 = vrot.lane.b32.xlu0 %v3763, 64
        %v3953 = vpop.permute.xlu0 %3952
        %3954 = vrot.lane.b32.xlu0 %v3765, 64
        %v3955 = vpop.permute.xlu0 %3954
        %v3956 = vsel %vm2220, %v3953, %v3955
        %v3957 = vsel %vm2220, %v3951, %v3953
        %v3958 = vsel %vm2220, %v3949, %v3951
        %v3959 = vsel %vm2220, %v3955, %v3949
        %v3960 = vld [vmem:[%s11] ss:$2 sm:$0xf]
        %v3962 = vlaneseq
        %v3963 = vshrl.u32 %v3962, 7
        %v3964 = vsub.s32 0, %v3963
        %v3965 = vrot.slane %v3960, %v3964
        %v3966 = vlaneseq
        %v3967 = vshrl.u32 %v3966, 7
        %v3968 = vsub.s32 1, %v3967
        %v3969 = vrot.slane %v3960, %v3968
        %v3970 = vlaneseq
        %v3971 = vshrl.u32 %v3970, 7
        %v3972 = vsub.s32 2, %v3971
        %v3973 = vrot.slane %v3960, %v3972
        %v3974 = vlaneseq
        %v3975 = vshrl.u32 %v3974, 7
        %v3976 = vsub.s32 3, %v3975
        %v3977 = vrot.slane %v3960, %v3976
        %v3982 = vmul.f32 %v3959, %v3965
        %v3983 = vmul.f32 %v3958, %v3969
        %v3984 = vmul.f32 %v3957, %v3973
        %v3985 = vmul.f32 %v3956, %v3977
        %v3986 = vadd.f32 %v3901, %v3982
        %v3987 = vadd.f32 %v3903, %v3983
        %v3988 = vadd.f32 %v3942, %v3984
        %v3989 = vadd.f32 %v3944, %v3985
        %3990 = vrot.lane.b32.xlu0 %v3811, 64
        %v3991 = vpop.permute.xlu0 %3990
        %3992 = vrot.lane.b32.xlu0 %v3813, 64
        %v3993 = vpop.permute.xlu0 %3992
        %3994 = vrot.lane.b32.xlu0 %v3852, 64
        %v3995 = vpop.permute.xlu0 %3994
        %3996 = vrot.lane.b32.xlu0 %v3854, 64
        %v3997 = vpop.permute.xlu0 %3996
        %v3998 = vsel %vm2220, %v3995, %v3997
        %v3999 = vsel %vm2220, %v3993, %v3995
        %v4000 = vsel %vm2220, %v3991, %v3993
        %v4001 = vsel %vm2220, %v3997, %v3991
        %v4002 = vld [vmem:[%s2267] ss:$2 sm:$0xf]
        %v4004 = vlaneseq
        %v4005 = vshrl.u32 %v4004, 7
        %v4006 = vsub.s32 0, %v4005
        %v4007 = vrot.slane %v4002, %v4006
        %v4008 = vlaneseq
        %v4009 = vshrl.u32 %v4008, 7
        %v4010 = vsub.s32 1, %v4009
        %v4011 = vrot.slane %v4002, %v4010
        %v4012 = vlaneseq
        %v4013 = vshrl.u32 %v4012, 7
        %v4014 = vsub.s32 2, %v4013
        %v4015 = vrot.slane %v4002, %v4014
        %v4016 = vlaneseq
        %v4017 = vshrl.u32 %v4016, 7
        %v4018 = vsub.s32 3, %v4017
        %v4019 = vrot.slane %v4002, %v4018
        %v4024 = vmul.f32 %v4000, %v4007
        %v4025 = vmul.f32 %v3999, %v4011
        %v4026 = vmul.f32 %v3998, %v4015
        %v4027 = vmul.f32 %v4001, %v4019
        %v4028 = vadd.f32 %v3986, %v4024
        %v4029 = vadd.f32 %v3987, %v4025
        %v4030 = vadd.f32 %v3988, %v4026
        %v4031 = vadd.f32 %v3989, %v4027
        %v4032 = vadd.f32 %v4028, %v488
        %v4033 = vadd.f32 %v4029, %v531
        %v4034 = vadd.f32 %v4030, %v489
        %v4035 = vadd.f32 %v4031, %v532
        %v4036 = vld [vmem:[%s486] sm:$0xff]
        %4038 = vset.pattern.permute.xlu0 0
        %4039 = vperm.xlu0 %4038, %v4036
        %v4040 = vpop.permute.xlu0 %4039
        %v4042 = vmul.f32 %v4032, %v4040
        %v4043 = vmul.f32 %v4033, %v4040
        %v4044 = vmul.f32 %v4034, %v4040
        %v4045 = vmul.f32 %v4035, %v4040
        %v4046 = vrot.slane %v4040, 4
        %v4048 = vadd.f32 %v4042, %v4046
        %v4049 = vadd.f32 %v4043, %v4046
        %v4050 = vadd.f32 %v4044, %v4046
        %v4051 = vadd.f32 %v4045, %v4046
        %v4056 = vcombine.low %v4048, %v4049
        %v4057 = vcombine.low %v4050, %v4051
        %4060 = vst [vmem:[%s482] sm:$0xff] %v4056
        %4061 = vst [vmem:[%s482 + $0x8] sm:$0xff] %v4057
        %s4062 = sand.u32 %s322, 1
        %s4063 = scalar_lea.sflag [#allocation5], %s4062
        %s4064 = sand.u32 %s322, 1
        %s4065 = smul.addr %s4064, 16
        %s4066 = scalar_lea.vmem [#allocation8], %s4065
        // Predicated region
        $region81: #{tpu_custom_call.1} parent=71 // pred_check
          %p4067 = pneg %p332
        $region82: #{tpu_custom_call.1} parent=71 // pred_check_branch
          %4069 = sbr.rel (%p4067) target = $region84
        $region83: #{tpu_custom_call.1} parent=71 // pred_region
          %s4071 = ssub.s32 256, 256
          %4072 = vsyncadd %s4063, %s4071
          %s4073 = smul.addr %s31, 4
          %s4074 = smul.addr %s4073, 64
          %s4075 = scalar_lea.hbm %s13, %s4074
          %s4077 = sshll.u32 %s4066, 4
          %s4078 = int_to_ptr.vmem [resolvable:$true] %s4077
          %4080 = dma.vmem_to_hbm [thread:$0]  %s4078, 256, %s4075, %s4063
        $region84: #{tpu_custom_call.1} parent=71 // pred_fallthru
          _
      $region72: #{tpu_custom_call.1} parent=5 // pred_fallthru
        _
      %p4081 = scmp.le.s32.totalorder 2, %s26
      // Predicated region
      $region85: #{tpu_custom_call.1} parent=5 // pred_check
        %p4082 = pneg %p4081
      $region86: #{tpu_custom_call.1} parent=5 // pred_check_branch
        %4084 = sbr.rel (%p4082) target = $region88
      $region87: #{tpu_custom_call.1} parent=5 // pred_region
        %s4085 = ssub.s32 %s26, 2
        // Predicated region
        $region89: #{tpu_custom_call.1} parent=87 // pred_check
          %p4086 = pneg %p338
        $region90: #{tpu_custom_call.1} parent=87 // pred_check_branch
          %4088 = sbr.rel (%p4086) target = $region92
        $region91: #{tpu_custom_call.1} parent=87 // pred_region
          %s4089 = sand.u32 %s323, 1
          %s4090 = scalar_lea.sflag [#allocation5], %s4089
          %s4091 = sand.u32 %s323, 1
          %s4092 = smul.addr %s4091, 16
          %s4093 = scalar_lea.vmem [#allocation8], %s4092
          %4094 = dma.done %s4090, 256
        $region92: #{tpu_custom_call.1} parent=87 // pred_fallthru
          _
      $region88: #{tpu_custom_call.1} parent=5 // pred_fallthru
        _
    $region6: #{tpu_custom_call.1} parent=1 // loop_footer
      %s30 = sadd.s32 1, %s26
    $region7: #{tpu_custom_call.1} parent=1 // loop_footer_branch
      %25 = sbr.rel target = $region3
    $region8: #{tpu_custom_call.1} parent=1 // loop_exit
      _
    %4095 = vsyncpa [#allocation4], 1
    %s4096 = scalar_lea.sflag [#allocation4], 1
    %4097 = vsyncpa %s4096, 1
    %4098 = vsyncpa [#allocation7], 1
    %4099 = vsyncpa [#allocation5], 1
    %s4100 = scalar_lea.sflag [#allocation5], 1
    %4101 = vsyncpa %s4100, 1

</llo_original>
